<compile_context>
chip_gen: v6e
topology: v6e:2x2x1
jax: 0.10.0
libtpu: 0.0.40
codegen_flags: <defaults>
</compile_context>

<pallas_src>
import jax
import jax.numpy as jnp
from jax.experimental import pallas as pl
from jax.experimental.pallas import tpu as pltpu

IN_DIM = 28 * 28     # 784 (kept unpadded; full-dim blocks are legal)
HID_DIM = 1000
HID_PAD = 1024       # 8 * 128
OUT_DIM = 10
OUT_PAD = 128        # lane-dense output
NEG_INF = -1e30      # baked into padded b2 lanes (f32-representable)


def _round_up(x, m):
    return ((x + m - 1) // m) * m


def _mlp_kernel(x_ref, w1_ref, b1_ref, w2_ref, b2_ref, o_ref):
    # --- fc1 on the MXU: x streamed as f32, cast to bf16 in-register ---------
    x = x_ref[...].astype(jnp.bfloat16)                      # (tb, 784)
    h = jnp.dot(x, w1_ref[...], preferred_element_type=jnp.float32)
    h = h + b1_ref[...]                                      # (1, 1024) bcast

    # --- sigmoid(h) = 0.5*(tanh(0.5*h)+1): single EUP transcendental ---------
    # Done in bf16: h must be bf16 for the fc2 MXU anyway; v5e upcasts
    # internally (no benefit there, but no harm either).
    hb = h.astype(jnp.bfloat16)
    s = 0.5 * (jnp.tanh(0.5 * hb) + 1.0)                     # bf16 (tb, 1024)

    # --- fc2 on the MXU (f32 accumulation) ------------------------------------
    # Padded output lanes are masked for free: W2 pad columns are zero and the
    # corresponding b2 lanes hold -1e30.
    z = jnp.dot(s, w2_ref[...], preferred_element_type=jnp.float32)
    z = z + b2_ref[...]                                      # f32 (tb, 128)

    # --- numerically-stable log_softmax over the last axis, strictly f32 ------
    m = jnp.max(z, axis=1, keepdims=True)
    zs = z - m
    lse = jnp.log(jnp.sum(jnp.exp(zs), axis=1, keepdims=True))
    o_ref[...] = zs - lse


def _pad_params(w1, b1, w2, b2):
    """Pad params to MXU/lane-friendly shapes; weights bf16, biases f32.

    Weights are stored (in_features, out_features), i.e. transposed vs.
    torch.nn.Linear, so the kernel computes plain x @ W.  Hidden dim is padded
    1000->1024 (zero W1 columns / b1 lanes; zero W2 *rows* so the padded hidden
    units, which sit at sigmoid(0)=0.5, contribute nothing).  Output dim is
    padded 10->128; padded b2 lanes carry -1e30 so the log_softmax mask is
    baked into the bias (W2 pad columns are zero, so those logits == b2).
    """
    w1p = jnp.zeros((IN_DIM, HID_PAD), jnp.bfloat16)
    w1p = w1p.at[:, :HID_DIM].set(w1.astype(jnp.bfloat16))
    b1p = jnp.zeros((1, HID_PAD), jnp.float32)
    b1p = b1p.at[:, :HID_DIM].set(b1.reshape(1, -1).astype(jnp.float32))
    w2p = jnp.zeros((HID_PAD, OUT_PAD), jnp.bfloat16)
    w2p = w2p.at[:HID_DIM, :OUT_DIM].set(w2.astype(jnp.bfloat16))
    b2p = jnp.full((1, OUT_PAD), NEG_INF, jnp.float32)
    b2p = b2p.at[:, :OUT_DIM].set(b2.reshape(1, -1).astype(jnp.float32))
    return w1p, b1p, w2p, b2p


def _pick_tb(batch):
    """Batch tile: >=16 rows (bf16 sublane packing); for large batches use
    256-multiples (MXU M dim on v6e/v7x), cap at 1024 (VMEM headroom on v7x),
    and force >=2 grid steps so both v7x TensorCores get work."""
    if batch <= 512:
        return _round_up(batch, 16)
    return min(1024, _round_up(-(-batch // 2), 256))


def dlnetwork_forward(x, w1p, b1p, w2p, b2p, *, tb=None):
    """x: (B, 784) f32. Params must already be padded via _pad_params."""
    B = x.shape[0]
    if tb is None:
        tb = _pick_tb(B)
    b_pad = _round_up(B, tb)

    # Only the batch dim is padded; x stays f32 / 784-wide. The bf16 cast
    # happens in-register inside the kernel (no extra HBM pass).
    xp = x if b_pad == B else jnp.pad(x, ((0, b_pad - B), (0, 0)))

    out = pl.pallas_call(
        _mlp_kernel,
        out_shape=jax.ShapeDtypeStruct((b_pad, OUT_PAD), jnp.float32),
        grid=(b_pad // tb,),
        in_specs=[
            pl.BlockSpec((tb, IN_DIM), lambda i: (i, 0)),         # x: streamed
            pl.BlockSpec((IN_DIM, HID_PAD), lambda i: (0, 0)),    # W1: resident
            pl.BlockSpec((1, HID_PAD), lambda i: (0, 0)),         # b1: resident
            pl.BlockSpec((HID_PAD, OUT_PAD), lambda i: (0, 0)),   # W2: resident
            pl.BlockSpec((1, OUT_PAD), lambda i: (0, 0)),         # b2: resident
        ],
        out_specs=pl.BlockSpec((tb, OUT_PAD), lambda i: (i, 0)),  # lane-dense
        compiler_params=pltpu.CompilerParams(
            dimension_semantics=("parallel",),
            vmem_limit_bytes=32 * 1024 * 1024,
        ),
    )(xp, w1p, b1p, w2p, b2p)

    return out[:B, :OUT_DIM]


def _init_params(key):
    """Deterministic init mimicking torch.nn.Linear's U(-1/sqrt(fan_in), ...)."""
    k1, k2, k3, k4 = jax.random.split(key, 4)
    bnd1 = 1.0 / jnp.sqrt(jnp.float32(IN_DIM))
    bnd2 = 1.0 / jnp.sqrt(jnp.float32(HID_DIM))
    w1 = jax.random.uniform(k1, (IN_DIM, HID_DIM), jnp.float32, -bnd1, bnd1)
    b1 = jax.random.uniform(k2, (1, HID_DIM), jnp.float32, -bnd1, bnd1)
    w2 = jax.random.uniform(k3, (HID_DIM, OUT_DIM), jnp.float32, -bnd2, bnd2)
    b2 = jax.random.uniform(k4, (1, OUT_DIM), jnp.float32, -bnd2, bnd2)
    return w1, b1, w2, b2


def _reference(x, w1, b1, w2, b2):
    """Pure-JAX f32 reference matching the PyTorch forward semantics."""
    h = jax.nn.sigmoid(jnp.dot(x, w1) + b1)
    z = jnp.dot(h, w2) + b2
    return jax.nn.log_softmax(z, axis=1)


if __name__ == "__main__":
    key = jax.random.PRNGKey(0)
    kx, kp = jax.random.split(key)

    B = 8  # small batch for the demo
    x = jax.random.normal(kx, (B, IN_DIM), jnp.float32)
    w1, b1, w2, b2 = _init_params(kp)
    w1p, b1p, w2p, b2p = _pad_params(w1, b1, w2, b2)

    fwd = jax.jit(dlnetwork_forward)
    out = jax.block_until_ready(fwd(x, w1p, b1p, w2p, b2p))

    ref = _reference(x, w1, b1, w2, b2)
    assert out.shape == (B, OUT_DIM)
    # Loose tolerance: kernel uses bf16 weights/activations + bf16 tanh sigmoid.
    assert bool(jnp.allclose(out, ref, atol=2e-2, rtol=2e-2)), "mismatch vs. reference"
    # Rows must be valid log-probabilities regardless of dtype choices.
    assert bool(jnp.allclose(jnp.sum(jnp.exp(out), axis=1), 1.0, atol=1e-3))

    print("KERNEL_OK")
</pallas_src>

<mosaic_0001>
module attributes {stable_mosaic.version = 11 : i64} {
  func.func @_mlp_kernel(%arg0: i32, %arg1: memref<16x784xf32, #tpu.memory_space<vmem>>, %arg2: memref<784x1024xbf16, #tpu.memory_space<vmem>>, %arg3: memref<1x1024xf32, #tpu.memory_space<vmem>>, %arg4: memref<1024x128xbf16, #tpu.memory_space<vmem>>, %arg5: memref<1x128xf32, #tpu.memory_space<vmem>>, %arg6: memref<16x128xf32, #tpu.memory_space<vmem>>) attributes {dimension_semantics = [#tpu.dimension_semantics<parallel>], iteration_bounds = array<i64: 1>, scalar_prefetch = 0 : i64, scratch_operands = 0 : i64, tpu.core_type = #tpu.core_type<tc>, window_params = [{transform_indices = @transform_0, window_bounds = array<i64: 16, 784>}, {pipeline_mode = #tpu.pipeline_mode<synchronous>, transform_indices = @transform_1, window_bounds = array<i64: 784, 1024>}, {pipeline_mode = #tpu.pipeline_mode<synchronous>, transform_indices = @transform_2, window_bounds = array<i64: 1, 1024>}, {pipeline_mode = #tpu.pipeline_mode<synchronous>, transform_indices = @transform_3, window_bounds = array<i64: 1024, 128>}, {pipeline_mode = #tpu.pipeline_mode<synchronous>, transform_indices = @transform_4, window_bounds = array<i64: 1, 128>}, {transform_indices = @transform_5, window_bounds = array<i64: 16, 128>}]} {
    %c0 = arith.constant 0 : index
    %c0_0 = arith.constant 0 : index
    %0 = vector.load %arg1[%c0, %c0_0] : memref<16x784xf32, #tpu.memory_space<vmem>>, vector<16x784xf32>
    %1 = arith.truncf %0 : vector<16x784xf32> to vector<16x784xbf16>
    %c0_1 = arith.constant 0 : index
    %c0_2 = arith.constant 0 : index
    %2 = vector.load %arg2[%c0_1, %c0_2] : memref<784x1024xbf16, #tpu.memory_space<vmem>>, vector<784x1024xbf16>
    %cst = arith.constant dense<0.000000e+00> : vector<16x1024xf32>
    %3 = tpu.matmul %1, %2, %cst {dimension_numbers = #tpu.dot_dimension_numbers<[1], [0], [0], [1], [0, 0, 1, 1], [], []>} : vector<16x784xbf16>, vector<784x1024xbf16>, vector<16x1024xf32> -> vector<16x1024xf32>
    %c0_3 = arith.constant 0 : index
    %c0_4 = arith.constant 0 : index
    %4 = vector.load %arg3[%c0_3, %c0_4] : memref<1x1024xf32, #tpu.memory_space<vmem>>, vector<1x1024xf32>
    %5 = vector.broadcast %4 : vector<1x1024xf32> to vector<16x1024xf32>
    %6 = arith.addf %3, %5 : vector<16x1024xf32>
    %7 = arith.truncf %6 : vector<16x1024xf32> to vector<16x1024xbf16>
    %cst_5 = arith.constant 5.000000e-01 : bf16
    %8 = vector.broadcast %cst_5 : bf16 to vector<16x1024xbf16>
    %9 = arith.mulf %8, %7 : vector<16x1024xbf16>
    %10 = math.tanh %9 : vector<16x1024xbf16>
    %cst_6 = arith.constant 1.000000e+00 : bf16
    %11 = vector.broadcast %cst_6 : bf16 to vector<16x1024xbf16>
    %12 = arith.addf %10, %11 : vector<16x1024xbf16>
    %cst_7 = arith.constant 5.000000e-01 : bf16
    %13 = vector.broadcast %cst_7 : bf16 to vector<16x1024xbf16>
    %14 = arith.mulf %13, %12 : vector<16x1024xbf16>
    %c0_8 = arith.constant 0 : index
    %c0_9 = arith.constant 0 : index
    %15 = vector.load %arg4[%c0_8, %c0_9] : memref<1024x128xbf16, #tpu.memory_space<vmem>>, vector<1024x128xbf16>
    %cst_10 = arith.constant dense<0.000000e+00> : vector<16x128xf32>
    %16 = tpu.matmul %14, %15, %cst_10 {dimension_numbers = #tpu.dot_dimension_numbers<[1], [0], [0], [1], [0, 0, 1, 1], [], []>} : vector<16x1024xbf16>, vector<1024x128xbf16>, vector<16x128xf32> -> vector<16x128xf32>
    %c0_11 = arith.constant 0 : index
    %c0_12 = arith.constant 0 : index
    %17 = vector.load %arg5[%c0_11, %c0_12] : memref<1x128xf32, #tpu.memory_space<vmem>>, vector<1x128xf32>
    %18 = vector.broadcast %17 : vector<1x128xf32> to vector<16x128xf32>
    %19 = arith.addf %16, %18 : vector<16x128xf32>
    %cst_13 = arith.constant dense<0xFF800000> : vector<16xf32>
    %20 = vector.multi_reduction <maximumf>, %19, %cst_13 [1] : vector<16x128xf32> to vector<16xf32>
    %21 = vector.shape_cast %20 : vector<16xf32> to vector<16x1xf32>
    %22 = vector.broadcast %21 : vector<16x1xf32> to vector<16x128xf32>
    %23 = arith.subf %19, %22 : vector<16x128xf32>
    %24 = math.exp %23 : vector<16x128xf32>
    %cst_14 = arith.constant dense<0.000000e+00> : vector<16xf32>
    %25 = vector.multi_reduction <add>, %24, %cst_14 [1] : vector<16x128xf32> to vector<16xf32>
    %26 = vector.shape_cast %25 : vector<16xf32> to vector<16x1xf32>
    %27 = math.log %26 : vector<16x1xf32>
    %28 = vector.broadcast %27 : vector<16x1xf32> to vector<16x128xf32>
    %29 = arith.subf %23, %28 : vector<16x128xf32>
    %c0_15 = arith.constant 0 : index
    %c0_16 = arith.constant 0 : index
    %30 = vector.load %arg6[%c0_15, %c0_16] : memref<16x128xf32, #tpu.memory_space<vmem>>, vector<16x128xf32>
    tpu.vector_store %arg6[%c0_15, %c0_16], %29 {strides = array<i32>} : memref<16x128xf32, #tpu.memory_space<vmem>>, vector<16x128xf32>,
    return
  }
  func.func @transform_0(%arg0: i32) -> (i32, i32) {
    %c0_i32 = arith.constant 0 : i32
    %c0_i32_0 = arith.constant 0 : i32
    return %arg0, %c0_i32 : i32, i32
  }
  func.func @transform_1(%arg0: i32) -> (i32, i32) {
    %c0_i32 = arith.constant 0 : i32
    %c0_i32_0 = arith.constant 0 : i32
    %c0_i32_1 = arith.constant 0 : i32
    return %c0_i32, %c0_i32_0 : i32, i32
  }
  func.func @transform_2(%arg0: i32) -> (i32, i32) {
    %c0_i32 = arith.constant 0 : i32
    %c0_i32_0 = arith.constant 0 : i32
    %c0_i32_1 = arith.constant 0 : i32
    return %c0_i32, %c0_i32_0 : i32, i32
  }
  func.func @transform_3(%arg0: i32) -> (i32, i32) {
    %c0_i32 = arith.constant 0 : i32
    %c0_i32_0 = arith.constant 0 : i32
    %c0_i32_1 = arith.constant 0 : i32
    return %c0_i32, %c0_i32_0 : i32, i32
  }
  func.func @transform_4(%arg0: i32) -> (i32, i32) {
    %c0_i32 = arith.constant 0 : i32
    %c0_i32_0 = arith.constant 0 : i32
    %c0_i32_1 = arith.constant 0 : i32
    return %c0_i32, %c0_i32_0 : i32, i32
  }
  func.func @transform_5(%arg0: i32) -> (i32, i32) {
    %c0_i32 = arith.constant 0 : i32
    %c0_i32_0 = arith.constant 0 : i32
    return %arg0, %c0_i32 : i32, i32
  }
}

</mosaic_0001>

<llo_original>
// kernel: dlnetwork_forward.1
$region0: #{dlnetwork_forward.1}
  #allocation0 [shape = 'u32[]', space=smem, size = 0x4, offset = 0x4, fixed_abs, tag = 'smem constant byte address 0x4 - core index']
  #allocation1 [shape = 'u32[144,128]{1,0:T(1,128)}', space=vmem, size = 0x12000, scoped, tag = 'internal scratch']
  %s0 = inlined_call_operand.vmem [shape: f32[16,784], index: 0, kind: input, shape index: {}]
  %s1 = inlined_call_operand.hbm [shape: bf16[784,1024], index: 1, kind: input, shape index: {}]
  %s2 = inlined_call_operand.hbm [shape: f32[1,1024], index: 2, kind: input, shape index: {}]
  %s3 = inlined_call_operand.hbm [shape: bf16[1024,128], index: 3, kind: input, shape index: {}]
  %s4 = inlined_call_operand.hbm [shape: f32[1,128], index: 4, kind: input, shape index: {}]
  %s5 = inlined_call_operand.vmem [shape: f32[16,128], index: 5, kind: output, shape index: {}]
  %s6 = sld [smem:[#allocation0]]
  $region46: #{dlnetwork_forward.1} parent=0
    _
  %s8 = ssub.s32 1, %s6
  %s9 = scalar_select 0, %s8, %s6
  $region1: #{dlnetwork_forward.1} parent=0
    #allocation2 [shape = 'u8[1605632]{0}', space=vmem, size = 0x188000, scoped, tag = 'input window, operand 1, single buffered']
    #allocation3 [shape = 's32[1]{0}', space=sflag, size = 0x4, scoped, tag = 'scoped memory for dlnetwork_forward.1']
    #allocation4 [shape = 'u8[4096]{0}', space=vmem, size = 0x1000, scoped, tag = 'input window, operand 2, single buffered']
    #allocation5 [shape = 's32[1]{0}', space=sflag, size = 0x4, scoped, tag = 'scoped memory for dlnetwork_forward.1']
    #allocation6 [shape = 'u8[262144]{0}', space=vmem, size = 0x40000, scoped, tag = 'input window, operand 3, single buffered']
    #allocation7 [shape = 'u8[512]{0}', space=vmem, size = 0x400, scoped, tag = 'input window, operand 4, single buffered']
    #allocation8 [shape = 's32[1]{0}', space=sflag, size = 0x4, scoped, tag = 'scoped memory for dlnetwork_forward.1']
    %10 = vsyncpa [#allocation3], 0
    %11 = vsyncpa [#allocation5], 0
    %12 = vsyncpa [#allocation8], 0
    // Predicated region
    $region2: #{dlnetwork_forward.1} parent=1 // pred_check
      _
    $region3: #{dlnetwork_forward.1} parent=1 // pred_check_branch
      %14 = sbr.rel (0) target = $region5
    $region4: #{dlnetwork_forward.1} parent=1 // pred_region
      _
    $region5: #{dlnetwork_forward.1} parent=1 // pred_fallthru
      _
    // Predicated region
    $region6: #{dlnetwork_forward.1} parent=1 // pred_check
      _
    $region7: #{dlnetwork_forward.1} parent=1 // pred_check_branch
      %16 = sbr.rel (0) target = $region9
    $region8: #{dlnetwork_forward.1} parent=1 // pred_region
      %s18 = ssub.s32 50176, 50176
      %19 = vsyncadd [#allocation3], %s18
      %s20 = sshll.u32 [#allocation2], 4
      %s21 = int_to_ptr.vmem [resolvable:$true] %s20
      %26 = dma.hbm_to_vmem [thread:$0]  %s1, 50176, %s21, [#allocation3], 512, 512, 32
    $region9: #{dlnetwork_forward.1} parent=1 // pred_fallthru
      _
    // Predicated region
    $region10: #{dlnetwork_forward.1} parent=1 // pred_check
      _
    $region11: #{dlnetwork_forward.1} parent=1 // pred_check_branch
      %28 = sbr.rel (0) target = $region13
    $region12: #{dlnetwork_forward.1} parent=1 // pred_region
      %s30 = ssub.s32 128, 128
      %31 = vsyncadd [#allocation5], %s30
      %s33 = sshll.u32 [#allocation4], 4
      %s34 = int_to_ptr.vmem [resolvable:$true] %s33
      %36 = dma.hbm_to_vmem [thread:$0]  %s2, 128, %s34, [#allocation5]
    $region13: #{dlnetwork_forward.1} parent=1 // pred_fallthru
      _
    // Predicated region
    $region14: #{dlnetwork_forward.1} parent=1 // pred_check
      _
    $region15: #{dlnetwork_forward.1} parent=1 // pred_check_branch
      %38 = sbr.rel (0) target = $region17
    $region16: #{dlnetwork_forward.1} parent=1 // pred_region
      %s40 = ssub.s32 8192, 8192
      %41 = vsyncadd [#allocation5], %s40
      %s42 = sshll.u32 [#allocation6], 4
      %s43 = int_to_ptr.vmem [resolvable:$true] %s42
      %48 = dma.hbm_to_vmem [thread:$0]  %s3, 8192, %s43, [#allocation5], 64, 64, 4
    $region17: #{dlnetwork_forward.1} parent=1 // pred_fallthru
      _
    // Predicated region
    $region18: #{dlnetwork_forward.1} parent=1 // pred_check
      _
    $region19: #{dlnetwork_forward.1} parent=1 // pred_check_branch
      %50 = sbr.rel (0) target = $region21
    $region20: #{dlnetwork_forward.1} parent=1 // pred_region
      %s52 = ssub.s32 16, 16
      %53 = vsyncadd [#allocation8], %s52
      %s55 = sshll.u32 [#allocation7], 4
      %s56 = int_to_ptr.vmem [resolvable:$true] %s55
      %58 = dma.hbm_to_vmem [thread:$0]  %s4, 16, %s56, [#allocation8]
    $region21: #{dlnetwork_forward.1} parent=1 // pred_fallthru
      _
    // Predicated region
    $region22: #{dlnetwork_forward.1} parent=1 // pred_check
      _
    $region23: #{dlnetwork_forward.1} parent=1 // pred_check_branch
      %60 = sbr.rel (0) target = $region25
    $region24: #{dlnetwork_forward.1} parent=1 // pred_region
      %61 = dma.done [#allocation3], 50176
    $region25: #{dlnetwork_forward.1} parent=1 // pred_fallthru
      _
    // Predicated region
    $region26: #{dlnetwork_forward.1} parent=1 // pred_check
      _
    $region27: #{dlnetwork_forward.1} parent=1 // pred_check_branch
      %63 = sbr.rel (0) target = $region29
    $region28: #{dlnetwork_forward.1} parent=1 // pred_region
      %64 = dma.done [#allocation5], 128
    $region29: #{dlnetwork_forward.1} parent=1 // pred_fallthru
      _
    // Predicated region
    $region30: #{dlnetwork_forward.1} parent=1 // pred_check
      _
    $region31: #{dlnetwork_forward.1} parent=1 // pred_check_branch
      %66 = sbr.rel (0) target = $region33
    $region32: #{dlnetwork_forward.1} parent=1 // pred_region
      %67 = dma.done [#allocation5], 8192
    $region33: #{dlnetwork_forward.1} parent=1 // pred_fallthru
      _
    // Predicated region
    $region34: #{dlnetwork_forward.1} parent=1 // pred_check
      _
    $region35: #{dlnetwork_forward.1} parent=1 // pred_check_branch
      %69 = sbr.rel (0) target = $region37
    $region36: #{dlnetwork_forward.1} parent=1 // pred_region
      %70 = dma.done [#allocation8], 16
    $region37: #{dlnetwork_forward.1} parent=1 // pred_fallthru
      _
    %v74 = vld [vmem:[%s0] sm:$0xff]
    %v75 = vld [vmem:[%s0 + $0x8] sm:$0xff]
    %v76 = vld [vmem:[%s0 + $0x10] sm:$0xff]
    %v77 = vld [vmem:[%s0 + $0x18] sm:$0xff]
    %v78 = vld [vmem:[%s0 + $0x20] sm:$0xff]
    %v79 = vld [vmem:[%s0 + $0x28] sm:$0xff]
    %v80 = vld [vmem:[%s0 + $0x30] sm:$0xff]
    %v81 = vld [vmem:[%s0 + $0x38] sm:$0xff]
    %v82 = vld [vmem:[%s0 + $0x40] sm:$0xff]
    %v83 = vld [vmem:[%s0 + $0x48] sm:$0xff]
    %v84 = vld [vmem:[%s0 + $0x50] sm:$0xff]
    %v85 = vld [vmem:[%s0 + $0x58] sm:$0xff]
    %v86 = vld [vmem:[%s0 + $0x60] sm:$0xff]
    %v87 = vld [vmem:[%s0 + $0x68] sm:$0xff]
    %v88 = vpack.c.bf16 %v81, %v74
    %v89 = vpack.c.bf16 %v82, %v75
    %v90 = vpack.c.bf16 %v83, %v76
    %v91 = vpack.c.bf16 %v84, %v77
    %v92 = vpack.c.bf16 %v85, %v78
    %v93 = vpack.c.bf16 %v86, %v79
    %v94 = vpack.c.bf16 %v87, %v80
    %v95 = vld [vmem:[#allocation2] sm:$0xff]
    %v96 = vld [vmem:[#allocation2 + $0x8] sm:$0xff]
    %v97 = vld [vmem:[#allocation2 + $0x10] sm:$0xff]
    %v98 = vld [vmem:[#allocation2 + $0x18] sm:$0xff]
    %v99 = vld [vmem:[#allocation2 + $0x20] sm:$0xff]
    %v100 = vld [vmem:[#allocation2 + $0x28] sm:$0xff]
    %v101 = vld [vmem:[#allocation2 + $0x30] sm:$0xff]
    %v102 = vld [vmem:[#allocation2 + $0x38] sm:$0xff]
    %v103 = vld [vmem:[#allocation2 + $0x40] sm:$0xff]
    %v104 = vld [vmem:[#allocation2 + $0x48] sm:$0xff]
    %v105 = vld [vmem:[#allocation2 + $0x50] sm:$0xff]
    %v106 = vld [vmem:[#allocation2 + $0x58] sm:$0xff]
    %v107 = vld [vmem:[#allocation2 + $0x60] sm:$0xff]
    %v108 = vld [vmem:[#allocation2 + $0x68] sm:$0xff]
    %v109 = vld [vmem:[#allocation2 + $0x70] sm:$0xff]
    %v110 = vld [vmem:[#allocation2 + $0x78] sm:$0xff]
    %v111 = vld [vmem:[#allocation2 + $0x80] sm:$0xff]
    %v112 = vld [vmem:[#allocation2 + $0x88] sm:$0xff]
    %v113 = vld [vmem:[#allocation2 + $0x90] sm:$0xff]
    %v114 = vld [vmem:[#allocation2 + $0x98] sm:$0xff]
    %v115 = vld [vmem:[#allocation2 + $0xa0] sm:$0xff]
    %v116 = vld [vmem:[#allocation2 + $0xa8] sm:$0xff]
    %v117 = vld [vmem:[#allocation2 + $0xb0] sm:$0xff]
    %v118 = vld [vmem:[#allocation2 + $0xb8] sm:$0xff]
    %v119 = vld [vmem:[#allocation2 + $0xc0] sm:$0xff]
    %v120 = vld [vmem:[#allocation2 + $0xc8] sm:$0xff]
    %v121 = vld [vmem:[#allocation2 + $0xd0] sm:$0xff]
    %v122 = vld [vmem:[#allocation2 + $0xd8] sm:$0xff]
    %v123 = vld [vmem:[#allocation2 + $0xe0] sm:$0xff]
    %v124 = vld [vmem:[#allocation2 + $0xe8] sm:$0xff]
    %v125 = vld [vmem:[#allocation2 + $0xf0] sm:$0xff]
    %v126 = vld [vmem:[#allocation2 + $0xf8] sm:$0xff]
    %v127 = vld [vmem:[#allocation2 + $0x100] sm:$0xff]
    %v128 = vld [vmem:[#allocation2 + $0x108] sm:$0xff]
    %v129 = vld [vmem:[#allocation2 + $0x110] sm:$0xff]
    %v130 = vld [vmem:[#allocation2 + $0x118] sm:$0xff]
    %v131 = vld [vmem:[#allocation2 + $0x120] sm:$0xff]
    %v132 = vld [vmem:[#allocation2 + $0x128] sm:$0xff]
    %v133 = vld [vmem:[#allocation2 + $0x130] sm:$0xff]
    %v134 = vld [vmem:[#allocation2 + $0x138] sm:$0xff]
    %v135 = vld [vmem:[#allocation2 + $0x140] sm:$0xff]
    %v136 = vld [vmem:[#allocation2 + $0x148] sm:$0xff]
    %v137 = vld [vmem:[#allocation2 + $0x150] sm:$0xff]
    %v138 = vld [vmem:[#allocation2 + $0x158] sm:$0xff]
    %v139 = vld [vmem:[#allocation2 + $0x160] sm:$0xff]
    %v140 = vld [vmem:[#allocation2 + $0x168] sm:$0xff]
    %v141 = vld [vmem:[#allocation2 + $0x170] sm:$0xff]
    %v142 = vld [vmem:[#allocation2 + $0x178] sm:$0xff]
    %v143 = vld [vmem:[#allocation2 + $0x180] sm:$0xff]
    %v144 = vld [vmem:[#allocation2 + $0x188] sm:$0xff]
    %v145 = vld [vmem:[#allocation2 + $0x190] sm:$0xff]
    %v146 = vld [vmem:[#allocation2 + $0x198] sm:$0xff]
    %v147 = vld [vmem:[#allocation2 + $0x1a0] sm:$0xff]
    %v148 = vld [vmem:[#allocation2 + $0x1a8] sm:$0xff]
    %v149 = vld [vmem:[#allocation2 + $0x1b0] sm:$0xff]
    %v150 = vld [vmem:[#allocation2 + $0x1b8] sm:$0xff]
    %v151 = vld [vmem:[#allocation2 + $0x1c0] sm:$0xff]
    %v152 = vld [vmem:[#allocation2 + $0x1c8] sm:$0xff]
    %v153 = vld [vmem:[#allocation2 + $0x1d0] sm:$0xff]
    %v154 = vld [vmem:[#allocation2 + $0x1d8] sm:$0xff]
    %v155 = vld [vmem:[#allocation2 + $0x1e0] sm:$0xff]
    %v156 = vld [vmem:[#allocation2 + $0x1e8] sm:$0xff]
    %v157 = vld [vmem:[#allocation2 + $0x1f0] sm:$0xff]
    %v158 = vld [vmem:[#allocation2 + $0x1f8] sm:$0xff]
    %v159 = vld [vmem:[#allocation2 + $0x200] sm:$0xff]
    %v160 = vld [vmem:[#allocation2 + $0x208] sm:$0xff]
    %v161 = vld [vmem:[#allocation2 + $0x210] sm:$0xff]
    %v162 = vld [vmem:[#allocation2 + $0x218] sm:$0xff]
    %v163 = vld [vmem:[#allocation2 + $0x220] sm:$0xff]
    %v164 = vld [vmem:[#allocation2 + $0x228] sm:$0xff]
    %v165 = vld [vmem:[#allocation2 + $0x230] sm:$0xff]
    %v166 = vld [vmem:[#allocation2 + $0x238] sm:$0xff]
    %v167 = vld [vmem:[#allocation2 + $0x240] sm:$0xff]
    %v168 = vld [vmem:[#allocation2 + $0x248] sm:$0xff]
    %v169 = vld [vmem:[#allocation2 + $0x250] sm:$0xff]
    %v170 = vld [vmem:[#allocation2 + $0x258] sm:$0xff]
    %v171 = vld [vmem:[#allocation2 + $0x260] sm:$0xff]
    %v172 = vld [vmem:[#allocation2 + $0x268] sm:$0xff]
    %v173 = vld [vmem:[#allocation2 + $0x270] sm:$0xff]
    %v174 = vld [vmem:[#allocation2 + $0x278] sm:$0xff]
    %v175 = vld [vmem:[#allocation2 + $0x280] sm:$0xff]
    %v176 = vld [vmem:[#allocation2 + $0x288] sm:$0xff]
    %v177 = vld [vmem:[#allocation2 + $0x290] sm:$0xff]
    %v178 = vld [vmem:[#allocation2 + $0x298] sm:$0xff]
    %v179 = vld [vmem:[#allocation2 + $0x2a0] sm:$0xff]
    %v180 = vld [vmem:[#allocation2 + $0x2a8] sm:$0xff]
    %v181 = vld [vmem:[#allocation2 + $0x2b0] sm:$0xff]
    %v182 = vld [vmem:[#allocation2 + $0x2b8] sm:$0xff]
    %v183 = vld [vmem:[#allocation2 + $0x2c0] sm:$0xff]
    %v184 = vld [vmem:[#allocation2 + $0x2c8] sm:$0xff]
    %v185 = vld [vmem:[#allocation2 + $0x2d0] sm:$0xff]
    %v186 = vld [vmem:[#allocation2 + $0x2d8] sm:$0xff]
    %v187 = vld [vmem:[#allocation2 + $0x2e0] sm:$0xff]
    %v188 = vld [vmem:[#allocation2 + $0x2e8] sm:$0xff]
    %v189 = vld [vmem:[#allocation2 + $0x2f0] sm:$0xff]
    %v190 = vld [vmem:[#allocation2 + $0x2f8] sm:$0xff]
    %v191 = vld [vmem:[#allocation2 + $0x300] sm:$0xff]
    %v192 = vld [vmem:[#allocation2 + $0x308] sm:$0xff]
    %v193 = vld [vmem:[#allocation2 + $0x310] sm:$0xff]
    %v194 = vld [vmem:[#allocation2 + $0x318] sm:$0xff]
    %v195 = vld [vmem:[#allocation2 + $0x320] sm:$0xff]
    %v196 = vld [vmem:[#allocation2 + $0x328] sm:$0xff]
    %v197 = vld [vmem:[#allocation2 + $0x330] sm:$0xff]
    %v198 = vld [vmem:[#allocation2 + $0x338] sm:$0xff]
    %v199 = vld [vmem:[#allocation2 + $0x340] sm:$0xff]
    %v200 = vld [vmem:[#allocation2 + $0x348] sm:$0xff]
    %v201 = vld [vmem:[#allocation2 + $0x350] sm:$0xff]
    %v202 = vld [vmem:[#allocation2 + $0x358] sm:$0xff]
    %v203 = vld [vmem:[#allocation2 + $0x360] sm:$0xff]
    %v204 = vld [vmem:[#allocation2 + $0x368] sm:$0xff]
    %v205 = vld [vmem:[#allocation2 + $0x370] sm:$0xff]
    %v206 = vld [vmem:[#allocation2 + $0x378] sm:$0xff]
    %v207 = vld [vmem:[#allocation2 + $0x380] sm:$0xff]
    %v208 = vld [vmem:[#allocation2 + $0x388] sm:$0xff]
    %v209 = vld [vmem:[#allocation2 + $0x390] sm:$0xff]
    %v210 = vld [vmem:[#allocation2 + $0x398] sm:$0xff]
    %v211 = vld [vmem:[#allocation2 + $0x3a0] sm:$0xff]
    %v212 = vld [vmem:[#allocation2 + $0x3a8] sm:$0xff]
    %v213 = vld [vmem:[#allocation2 + $0x3b0] sm:$0xff]
    %v214 = vld [vmem:[#allocation2 + $0x3b8] sm:$0xff]
    %v215 = vld [vmem:[#allocation2 + $0x3c0] sm:$0xff]
    %v216 = vld [vmem:[#allocation2 + $0x3c8] sm:$0xff]
    %v217 = vld [vmem:[#allocation2 + $0x3d0] sm:$0xff]
    %v218 = vld [vmem:[#allocation2 + $0x3d8] sm:$0xff]
    %v219 = vld [vmem:[#allocation2 + $0x3e0] sm:$0xff]
    %v220 = vld [vmem:[#allocation2 + $0x3e8] sm:$0xff]
    %v221 = vld [vmem:[#allocation2 + $0x3f0] sm:$0xff]
    %v222 = vld [vmem:[#allocation2 + $0x3f8] sm:$0xff]
    %v223 = vld [vmem:[#allocation2 + $0x400] sm:$0xff]
    %v224 = vld [vmem:[#allocation2 + $0x408] sm:$0xff]
    %v225 = vld [vmem:[#allocation2 + $0x410] sm:$0xff]
    %v226 = vld [vmem:[#allocation2 + $0x418] sm:$0xff]
    %v227 = vld [vmem:[#allocation2 + $0x420] sm:$0xff]
    %v228 = vld [vmem:[#allocation2 + $0x428] sm:$0xff]
    %v229 = vld [vmem:[#allocation2 + $0x430] sm:$0xff]
    %v230 = vld [vmem:[#allocation2 + $0x438] sm:$0xff]
    %v231 = vld [vmem:[#allocation2 + $0x440] sm:$0xff]
    %v232 = vld [vmem:[#allocation2 + $0x448] sm:$0xff]
    %v233 = vld [vmem:[#allocation2 + $0x450] sm:$0xff]
    %v234 = vld [vmem:[#allocation2 + $0x458] sm:$0xff]
    %v235 = vld [vmem:[#allocation2 + $0x460] sm:$0xff]
    %v236 = vld [vmem:[#allocation2 + $0x468] sm:$0xff]
    %v237 = vld [vmem:[#allocation2 + $0x470] sm:$0xff]
    %v238 = vld [vmem:[#allocation2 + $0x478] sm:$0xff]
    %v239 = vld [vmem:[#allocation2 + $0x480] sm:$0xff]
    %v240 = vld [vmem:[#allocation2 + $0x488] sm:$0xff]
    %v241 = vld [vmem:[#allocation2 + $0x490] sm:$0xff]
    %v242 = vld [vmem:[#allocation2 + $0x498] sm:$0xff]
    %v243 = vld [vmem:[#allocation2 + $0x4a0] sm:$0xff]
    %v244 = vld [vmem:[#allocation2 + $0x4a8] sm:$0xff]
    %v245 = vld [vmem:[#allocation2 + $0x4b0] sm:$0xff]
    %v246 = vld [vmem:[#allocation2 + $0x4b8] sm:$0xff]
    %v247 = vld [vmem:[#allocation2 + $0x4c0] sm:$0xff]
    %v248 = vld [vmem:[#allocation2 + $0x4c8] sm:$0xff]
    %v249 = vld [vmem:[#allocation2 + $0x4d0] sm:$0xff]
    %v250 = vld [vmem:[#allocation2 + $0x4d8] sm:$0xff]
    %v251 = vld [vmem:[#allocation2 + $0x4e0] sm:$0xff]
    %v252 = vld [vmem:[#allocation2 + $0x4e8] sm:$0xff]
    %v253 = vld [vmem:[#allocation2 + $0x4f0] sm:$0xff]
    %v254 = vld [vmem:[#allocation2 + $0x4f8] sm:$0xff]
    %v255 = vld [vmem:[#allocation2 + $0x500] sm:$0xff]
    %v256 = vld [vmem:[#allocation2 + $0x508] sm:$0xff]
    %v257 = vld [vmem:[#allocation2 + $0x510] sm:$0xff]
    %v258 = vld [vmem:[#allocation2 + $0x518] sm:$0xff]
    %v259 = vld [vmem:[#allocation2 + $0x520] sm:$0xff]
    %v260 = vld [vmem:[#allocation2 + $0x528] sm:$0xff]
    %v261 = vld [vmem:[#allocation2 + $0x530] sm:$0xff]
    %v262 = vld [vmem:[#allocation2 + $0x538] sm:$0xff]
    %v263 = vld [vmem:[#allocation2 + $0x540] sm:$0xff]
    %v264 = vld [vmem:[#allocation2 + $0x548] sm:$0xff]
    %v265 = vld [vmem:[#allocation2 + $0x550] sm:$0xff]
    %v266 = vld [vmem:[#allocation2 + $0x558] sm:$0xff]
    %v267 = vld [vmem:[#allocation2 + $0x560] sm:$0xff]
    %v268 = vld [vmem:[#allocation2 + $0x568] sm:$0xff]
    %v269 = vld [vmem:[#allocation2 + $0x570] sm:$0xff]
    %v270 = vld [vmem:[#allocation2 + $0x578] sm:$0xff]
    %v271 = vld [vmem:[#allocation2 + $0x580] sm:$0xff]
    %v272 = vld [vmem:[#allocation2 + $0x588] sm:$0xff]
    %v273 = vld [vmem:[#allocation2 + $0x590] sm:$0xff]
    %v274 = vld [vmem:[#allocation2 + $0x598] sm:$0xff]
    %v275 = vld [vmem:[#allocation2 + $0x5a0] sm:$0xff]
    %v276 = vld [vmem:[#allocation2 + $0x5a8] sm:$0xff]
    %v277 = vld [vmem:[#allocation2 + $0x5b0] sm:$0xff]
    %v278 = vld [vmem:[#allocation2 + $0x5b8] sm:$0xff]
    %v279 = vld [vmem:[#allocation2 + $0x5c0] sm:$0xff]
    %v280 = vld [vmem:[#allocation2 + $0x5c8] sm:$0xff]
    %v281 = vld [vmem:[#allocation2 + $0x5d0] sm:$0xff]
    %v282 = vld [vmem:[#allocation2 + $0x5d8] sm:$0xff]
    %v283 = vld [vmem:[#allocation2 + $0x5e0] sm:$0xff]
    %v284 = vld [vmem:[#allocation2 + $0x5e8] sm:$0xff]
    %v285 = vld [vmem:[#allocation2 + $0x5f0] sm:$0xff]
    %v286 = vld [vmem:[#allocation2 + $0x5f8] sm:$0xff]
    %v287 = vld [vmem:[#allocation2 + $0x600] sm:$0xff]
    %v288 = vld [vmem:[#allocation2 + $0x608] sm:$0xff]
    %v289 = vld [vmem:[#allocation2 + $0x610] sm:$0xff]
    %v290 = vld [vmem:[#allocation2 + $0x618] sm:$0xff]
    %v291 = vld [vmem:[#allocation2 + $0x620] sm:$0xff]
    %v292 = vld [vmem:[#allocation2 + $0x628] sm:$0xff]
    %v293 = vld [vmem:[#allocation2 + $0x630] sm:$0xff]
    %v294 = vld [vmem:[#allocation2 + $0x638] sm:$0xff]
    %v295 = vld [vmem:[#allocation2 + $0x640] sm:$0xff]
    %v296 = vld [vmem:[#allocation2 + $0x648] sm:$0xff]
    %v297 = vld [vmem:[#allocation2 + $0x650] sm:$0xff]
    %v298 = vld [vmem:[#allocation2 + $0x658] sm:$0xff]
    %v299 = vld [vmem:[#allocation2 + $0x660] sm:$0xff]
    %v300 = vld [vmem:[#allocation2 + $0x668] sm:$0xff]
    %v301 = vld [vmem:[#allocation2 + $0x670] sm:$0xff]
    %v302 = vld [vmem:[#allocation2 + $0x678] sm:$0xff]
    %v303 = vld [vmem:[#allocation2 + $0x680] sm:$0xff]
    %v304 = vld [vmem:[#allocation2 + $0x688] sm:$0xff]
    %v305 = vld [vmem:[#allocation2 + $0x690] sm:$0xff]
    %v306 = vld [vmem:[#allocation2 + $0x698] sm:$0xff]
    %v307 = vld [vmem:[#allocation2 + $0x6a0] sm:$0xff]
    %v308 = vld [vmem:[#allocation2 + $0x6a8] sm:$0xff]
    %v309 = vld [vmem:[#allocation2 + $0x6b0] sm:$0xff]
    %v310 = vld [vmem:[#allocation2 + $0x6b8] sm:$0xff]
    %v311 = vld [vmem:[#allocation2 + $0x6c0] sm:$0xff]
    %v312 = vld [vmem:[#allocation2 + $0x6c8] sm:$0xff]
    %v313 = vld [vmem:[#allocation2 + $0x6d0] sm:$0xff]
    %v314 = vld [vmem:[#allocation2 + $0x6d8] sm:$0xff]
    %v315 = vld [vmem:[#allocation2 + $0x6e0] sm:$0xff]
    %v316 = vld [vmem:[#allocation2 + $0x6e8] sm:$0xff]
    %v317 = vld [vmem:[#allocation2 + $0x6f0] sm:$0xff]
    %v318 = vld [vmem:[#allocation2 + $0x6f8] sm:$0xff]
    %v319 = vld [vmem:[#allocation2 + $0x700] sm:$0xff]
    %v320 = vld [vmem:[#allocation2 + $0x708] sm:$0xff]
    %v321 = vld [vmem:[#allocation2 + $0x710] sm:$0xff]
    %v322 = vld [vmem:[#allocation2 + $0x718] sm:$0xff]
    %v323 = vld [vmem:[#allocation2 + $0x720] sm:$0xff]
    %v324 = vld [vmem:[#allocation2 + $0x728] sm:$0xff]
    %v325 = vld [vmem:[#allocation2 + $0x730] sm:$0xff]
    %v326 = vld [vmem:[#allocation2 + $0x738] sm:$0xff]
    %v327 = vld [vmem:[#allocation2 + $0x740] sm:$0xff]
    %v328 = vld [vmem:[#allocation2 + $0x748] sm:$0xff]
    %v329 = vld [vmem:[#allocation2 + $0x750] sm:$0xff]
    %v330 = vld [vmem:[#allocation2 + $0x758] sm:$0xff]
    %v331 = vld [vmem:[#allocation2 + $0x760] sm:$0xff]
    %v332 = vld [vmem:[#allocation2 + $0x768] sm:$0xff]
    %v333 = vld [vmem:[#allocation2 + $0x770] sm:$0xff]
    %v334 = vld [vmem:[#allocation2 + $0x778] sm:$0xff]
    %v335 = vld [vmem:[#allocation2 + $0x780] sm:$0xff]
    %v336 = vld [vmem:[#allocation2 + $0x788] sm:$0xff]
    %v337 = vld [vmem:[#allocation2 + $0x790] sm:$0xff]
    %v338 = vld [vmem:[#allocation2 + $0x798] sm:$0xff]
    %v339 = vld [vmem:[#allocation2 + $0x7a0] sm:$0xff]
    %v340 = vld [vmem:[#allocation2 + $0x7a8] sm:$0xff]
    %v341 = vld [vmem:[#allocation2 + $0x7b0] sm:$0xff]
    %v342 = vld [vmem:[#allocation2 + $0x7b8] sm:$0xff]
    %v343 = vld [vmem:[#allocation2 + $0x7c0] sm:$0xff]
    %v344 = vld [vmem:[#allocation2 + $0x7c8] sm:$0xff]
    %v345 = vld [vmem:[#allocation2 + $0x7d0] sm:$0xff]
    %v346 = vld [vmem:[#allocation2 + $0x7d8] sm:$0xff]
    %v347 = vld [vmem:[#allocation2 + $0x7e0] sm:$0xff]
    %v348 = vld [vmem:[#allocation2 + $0x7e8] sm:$0xff]
    %v349 = vld [vmem:[#allocation2 + $0x7f0] sm:$0xff]
    %v350 = vld [vmem:[#allocation2 + $0x7f8] sm:$0xff]
    %v351 = vld [vmem:[#allocation2 + $0x800] sm:$0xff]
    %v352 = vld [vmem:[#allocation2 + $0x808] sm:$0xff]
    %v353 = vld [vmem:[#allocation2 + $0x810] sm:$0xff]
    %v354 = vld [vmem:[#allocation2 + $0x818] sm:$0xff]
    %v355 = vld [vmem:[#allocation2 + $0x820] sm:$0xff]
    %v356 = vld [vmem:[#allocation2 + $0x828] sm:$0xff]
    %v357 = vld [vmem:[#allocation2 + $0x830] sm:$0xff]
    %v358 = vld [vmem:[#allocation2 + $0x838] sm:$0xff]
    %v359 = vld [vmem:[#allocation2 + $0x840] sm:$0xff]
    %v360 = vld [vmem:[#allocation2 + $0x848] sm:$0xff]
    %v361 = vld [vmem:[#allocation2 + $0x850] sm:$0xff]
    %v362 = vld [vmem:[#allocation2 + $0x858] sm:$0xff]
    %v363 = vld [vmem:[#allocation2 + $0x860] sm:$0xff]
    %v364 = vld [vmem:[#allocation2 + $0x868] sm:$0xff]
    %v365 = vld [vmem:[#allocation2 + $0x870] sm:$0xff]
    %v366 = vld [vmem:[#allocation2 + $0x878] sm:$0xff]
    %v367 = vld [vmem:[#allocation2 + $0x880] sm:$0xff]
    %v368 = vld [vmem:[#allocation2 + $0x888] sm:$0xff]
    %v369 = vld [vmem:[#allocation2 + $0x890] sm:$0xff]
    %v370 = vld [vmem:[#allocation2 + $0x898] sm:$0xff]
    %v371 = vld [vmem:[#allocation2 + $0x8a0] sm:$0xff]
    %v372 = vld [vmem:[#allocation2 + $0x8a8] sm:$0xff]
    %v373 = vld [vmem:[#allocation2 + $0x8b0] sm:$0xff]
    %v374 = vld [vmem:[#allocation2 + $0x8b8] sm:$0xff]
    %v375 = vld [vmem:[#allocation2 + $0x8c0] sm:$0xff]
    %v376 = vld [vmem:[#allocation2 + $0x8c8] sm:$0xff]
    %v377 = vld [vmem:[#allocation2 + $0x8d0] sm:$0xff]
    %v378 = vld [vmem:[#allocation2 + $0x8d8] sm:$0xff]
    %v379 = vld [vmem:[#allocation2 + $0x8e0] sm:$0xff]
    %v380 = vld [vmem:[#allocation2 + $0x8e8] sm:$0xff]
    %v381 = vld [vmem:[#allocation2 + $0x8f0] sm:$0xff]
    %v382 = vld [vmem:[#allocation2 + $0x8f8] sm:$0xff]
    %v383 = vld [vmem:[#allocation2 + $0x900] sm:$0xff]
    %v384 = vld [vmem:[#allocation2 + $0x908] sm:$0xff]
    %v385 = vld [vmem:[#allocation2 + $0x910] sm:$0xff]
    %v386 = vld [vmem:[#allocation2 + $0x918] sm:$0xff]
    %v387 = vld [vmem:[#allocation2 + $0x920] sm:$0xff]
    %v388 = vld [vmem:[#allocation2 + $0x928] sm:$0xff]
    %v389 = vld [vmem:[#allocation2 + $0x930] sm:$0xff]
    %v390 = vld [vmem:[#allocation2 + $0x938] sm:$0xff]
    %v391 = vld [vmem:[#allocation2 + $0x940] sm:$0xff]
    %v392 = vld [vmem:[#allocation2 + $0x948] sm:$0xff]
    %v393 = vld [vmem:[#allocation2 + $0x950] sm:$0xff]
    %v394 = vld [vmem:[#allocation2 + $0x958] sm:$0xff]
    %v395 = vld [vmem:[#allocation2 + $0x960] sm:$0xff]
    %v396 = vld [vmem:[#allocation2 + $0x968] sm:$0xff]
    %v397 = vld [vmem:[#allocation2 + $0x970] sm:$0xff]
    %v398 = vld [vmem:[#allocation2 + $0x978] sm:$0xff]
    %v399 = vld [vmem:[#allocation2 + $0x980] sm:$0xff]
    %v400 = vld [vmem:[#allocation2 + $0x988] sm:$0xff]
    %v401 = vld [vmem:[#allocation2 + $0x990] sm:$0xff]
    %v402 = vld [vmem:[#allocation2 + $0x998] sm:$0xff]
    %v403 = vld [vmem:[#allocation2 + $0x9a0] sm:$0xff]
    %v404 = vld [vmem:[#allocation2 + $0x9a8] sm:$0xff]
    %v405 = vld [vmem:[#allocation2 + $0x9b0] sm:$0xff]
    %v406 = vld [vmem:[#allocation2 + $0x9b8] sm:$0xff]
    %v407 = vld [vmem:[#allocation2 + $0x9c0] sm:$0xff]
    %v408 = vld [vmem:[#allocation2 + $0x9c8] sm:$0xff]
    %v409 = vld [vmem:[#allocation2 + $0x9d0] sm:$0xff]
    %v410 = vld [vmem:[#allocation2 + $0x9d8] sm:$0xff]
    %v411 = vld [vmem:[#allocation2 + $0x9e0] sm:$0xff]
    %v412 = vld [vmem:[#allocation2 + $0x9e8] sm:$0xff]
    %v413 = vld [vmem:[#allocation2 + $0x9f0] sm:$0xff]
    %v414 = vld [vmem:[#allocation2 + $0x9f8] sm:$0xff]
    %v415 = vld [vmem:[#allocation2 + $0xa00] sm:$0xff]
    %v416 = vld [vmem:[#allocation2 + $0xa08] sm:$0xff]
    %v417 = vld [vmem:[#allocation2 + $0xa10] sm:$0xff]
    %v418 = vld [vmem:[#allocation2 + $0xa18] sm:$0xff]
    %v419 = vld [vmem:[#allocation2 + $0xa20] sm:$0xff]
    %v420 = vld [vmem:[#allocation2 + $0xa28] sm:$0xff]
    %v421 = vld [vmem:[#allocation2 + $0xa30] sm:$0xff]
    %v422 = vld [vmem:[#allocation2 + $0xa38] sm:$0xff]
    %v423 = vld [vmem:[#allocation2 + $0xa40] sm:$0xff]
    %v424 = vld [vmem:[#allocation2 + $0xa48] sm:$0xff]
    %v425 = vld [vmem:[#allocation2 + $0xa50] sm:$0xff]
    %v426 = vld [vmem:[#allocation2 + $0xa58] sm:$0xff]
    %v427 = vld [vmem:[#allocation2 + $0xa60] sm:$0xff]
    %v428 = vld [vmem:[#allocation2 + $0xa68] sm:$0xff]
    %v429 = vld [vmem:[#allocation2 + $0xa70] sm:$0xff]
    %v430 = vld [vmem:[#allocation2 + $0xa78] sm:$0xff]
    %v431 = vld [vmem:[#allocation2 + $0xa80] sm:$0xff]
    %v432 = vld [vmem:[#allocation2 + $0xa88] sm:$0xff]
    %v433 = vld [vmem:[#allocation2 + $0xa90] sm:$0xff]
    %v434 = vld [vmem:[#allocation2 + $0xa98] sm:$0xff]
    %v435 = vld [vmem:[#allocation2 + $0xaa0] sm:$0xff]
    %v436 = vld [vmem:[#allocation2 + $0xaa8] sm:$0xff]
    %v437 = vld [vmem:[#allocation2 + $0xab0] sm:$0xff]
    %v438 = vld [vmem:[#allocation2 + $0xab8] sm:$0xff]
    %v439 = vld [vmem:[#allocation2 + $0xac0] sm:$0xff]
    %v440 = vld [vmem:[#allocation2 + $0xac8] sm:$0xff]
    %v441 = vld [vmem:[#allocation2 + $0xad0] sm:$0xff]
    %v442 = vld [vmem:[#allocation2 + $0xad8] sm:$0xff]
    %v443 = vld [vmem:[#allocation2 + $0xae0] sm:$0xff]
    %v444 = vld [vmem:[#allocation2 + $0xae8] sm:$0xff]
    %v445 = vld [vmem:[#allocation2 + $0xaf0] sm:$0xff]
    %v446 = vld [vmem:[#allocation2 + $0xaf8] sm:$0xff]
    %v447 = vld [vmem:[#allocation2 + $0xb00] sm:$0xff]
    %v448 = vld [vmem:[#allocation2 + $0xb08] sm:$0xff]
    %v449 = vld [vmem:[#allocation2 + $0xb10] sm:$0xff]
    %v450 = vld [vmem:[#allocation2 + $0xb18] sm:$0xff]
    %v451 = vld [vmem:[#allocation2 + $0xb20] sm:$0xff]
    %v452 = vld [vmem:[#allocation2 + $0xb28] sm:$0xff]
    %v453 = vld [vmem:[#allocation2 + $0xb30] sm:$0xff]
    %v454 = vld [vmem:[#allocation2 + $0xb38] sm:$0xff]
    %v455 = vld [vmem:[#allocation2 + $0xb40] sm:$0xff]
    %v456 = vld [vmem:[#allocation2 + $0xb48] sm:$0xff]
    %v457 = vld [vmem:[#allocation2 + $0xb50] sm:$0xff]
    %v458 = vld [vmem:[#allocation2 + $0xb58] sm:$0xff]
    %v459 = vld [vmem:[#allocation2 + $0xb60] sm:$0xff]
    %v460 = vld [vmem:[#allocation2 + $0xb68] sm:$0xff]
    %v461 = vld [vmem:[#allocation2 + $0xb70] sm:$0xff]
    %v462 = vld [vmem:[#allocation2 + $0xb78] sm:$0xff]
    %v463 = vld [vmem:[#allocation2 + $0xb80] sm:$0xff]
    %v464 = vld [vmem:[#allocation2 + $0xb88] sm:$0xff]
    %v465 = vld [vmem:[#allocation2 + $0xb90] sm:$0xff]
    %v466 = vld [vmem:[#allocation2 + $0xb98] sm:$0xff]
    %v467 = vld [vmem:[#allocation2 + $0xba0] sm:$0xff]
    %v468 = vld [vmem:[#allocation2 + $0xba8] sm:$0xff]
    %v469 = vld [vmem:[#allocation2 + $0xbb0] sm:$0xff]
    %v470 = vld [vmem:[#allocation2 + $0xbb8] sm:$0xff]
    %v471 = vld [vmem:[#allocation2 + $0xbc0] sm:$0xff]
    %v472 = vld [vmem:[#allocation2 + $0xbc8] sm:$0xff]
    %v473 = vld [vmem:[#allocation2 + $0xbd0] sm:$0xff]
    %v474 = vld [vmem:[#allocation2 + $0xbd8] sm:$0xff]
    %v475 = vld [vmem:[#allocation2 + $0xbe0] sm:$0xff]
    %v476 = vld [vmem:[#allocation2 + $0xbe8] sm:$0xff]
    %v477 = vld [vmem:[#allocation2 + $0xbf0] sm:$0xff]
    %v478 = vld [vmem:[#allocation2 + $0xbf8] sm:$0xff]
    %v479 = vld [vmem:[#allocation2 + $0xc00] sm:$0xff]
    %v480 = vld [vmem:[#allocation2 + $0xc08] sm:$0xff]
    %v481 = vld [vmem:[#allocation2 + $0xc10] sm:$0xff]
    %v482 = vld [vmem:[#allocation2 + $0xc18] sm:$0xff]
    %v483 = vld [vmem:[#allocation2 + $0xc20] sm:$0xff]
    %v484 = vld [vmem:[#allocation2 + $0xc28] sm:$0xff]
    %v485 = vld [vmem:[#allocation2 + $0xc30] sm:$0xff]
    %v486 = vld [vmem:[#allocation2 + $0xc38] sm:$0xff]
    %v487 = vld [vmem:[#allocation4] sm:$0xff]
    %v489 = vlaneseq
    %v490 = vshrl.u32 %v489, 7
    %v491 = vsub.s32 0, %v490
    %v492 = vrot.slane %v487, %v491
    %v493 = vlaneseq
    %v494 = vshrl.u32 %v493, 7
    %v495 = vsub.s32 1, %v494
    %v496 = vrot.slane %v487, %v495
    %v497 = vlaneseq
    %v498 = vshrl.u32 %v497, 7
    %v499 = vsub.s32 2, %v498
    %v500 = vrot.slane %v487, %v499
    %v501 = vlaneseq
    %v502 = vshrl.u32 %v501, 7
    %v503 = vsub.s32 3, %v502
    %v504 = vrot.slane %v487, %v503
    %v505 = vlaneseq
    %v506 = vshrl.u32 %v505, 7
    %v507 = vsub.s32 4, %v506
    %v508 = vrot.slane %v487, %v507
    %v509 = vlaneseq
    %v510 = vshrl.u32 %v509, 7
    %v511 = vsub.s32 5, %v510
    %v512 = vrot.slane %v487, %v511
    %v513 = vlaneseq
    %v514 = vshrl.u32 %v513, 7
    %v515 = vsub.s32 6, %v514
    %v516 = vrot.slane %v487, %v515
    %v517 = vlaneseq
    %v518 = vshrl.u32 %v517, 7
    %v519 = vsub.s32 7, %v518
    %v520 = vrot.slane %v487, %v519
    %v921 = vunpack.c.l.b16 %v95
    %v922 = vunpack.c.h.b16 %v95
    %v923 = vunpack.c.l.b16 %v96
    %v924 = vunpack.c.h.b16 %v96
    %v925 = vunpack.c.l.b16 %v97
    %v926 = vunpack.c.h.b16 %v97
    %v927 = vunpack.c.l.b16 %v98
    %v928 = vunpack.c.h.b16 %v98
    %v929 = vunpack.c.l.b16 %v99
    %v930 = vunpack.c.h.b16 %v99
    %v931 = vunpack.c.l.b16 %v100
    %v932 = vunpack.c.h.b16 %v100
    %v933 = vunpack.c.l.b16 %v101
    %v934 = vunpack.c.h.b16 %v101
    %v935 = vunpack.c.l.b16 %v102
    %v936 = vunpack.c.h.b16 %v102
    %v937 = vunpack.c.l.b16 %v103
    %v938 = vunpack.c.h.b16 %v103
    %v939 = vunpack.c.l.b16 %v104
    %v940 = vunpack.c.h.b16 %v104
    %v941 = vunpack.c.l.b16 %v105
    %v942 = vunpack.c.h.b16 %v105
    %v943 = vunpack.c.l.b16 %v106
    %v944 = vunpack.c.h.b16 %v106
    %v945 = vunpack.c.l.b16 %v107
    %v946 = vunpack.c.h.b16 %v107
    %v947 = vunpack.c.l.b16 %v108
    %v948 = vunpack.c.h.b16 %v108
    %v949 = vunpack.c.l.b16 %v109
    %v950 = vunpack.c.h.b16 %v109
    %v951 = vunpack.c.l.b16 %v110
    %v952 = vunpack.c.h.b16 %v110
    %v953 = vunpack.c.l.b16 %v111
    %v954 = vunpack.c.h.b16 %v111
    %v955 = vunpack.c.l.b16 %v112
    %v956 = vunpack.c.h.b16 %v112
    %v957 = vunpack.c.l.b16 %v113
    %v958 = vunpack.c.h.b16 %v113
    %v959 = vunpack.c.l.b16 %v114
    %v960 = vunpack.c.h.b16 %v114
    %v961 = vunpack.c.l.b16 %v115
    %v962 = vunpack.c.h.b16 %v115
    %v963 = vunpack.c.l.b16 %v116
    %v964 = vunpack.c.h.b16 %v116
    %v965 = vunpack.c.l.b16 %v117
    %v966 = vunpack.c.h.b16 %v117
    %v967 = vunpack.c.l.b16 %v118
    %v968 = vunpack.c.h.b16 %v118
    %v969 = vunpack.c.l.b16 %v119
    %v970 = vunpack.c.h.b16 %v119
    %v971 = vunpack.c.l.b16 %v120
    %v972 = vunpack.c.h.b16 %v120
    %v973 = vunpack.c.l.b16 %v121
    %v974 = vunpack.c.h.b16 %v121
    %v975 = vunpack.c.l.b16 %v122
    %v976 = vunpack.c.h.b16 %v122
    %v977 = vunpack.c.l.b16 %v123
    %v978 = vunpack.c.h.b16 %v123
    %v979 = vunpack.c.l.b16 %v124
    %v980 = vunpack.c.h.b16 %v124
    %v981 = vunpack.c.l.b16 %v125
    %v982 = vunpack.c.h.b16 %v125
    %v983 = vunpack.c.l.b16 %v126
    %v984 = vunpack.c.h.b16 %v126
    %v985 = vunpack.c.l.b16 %v127
    %v986 = vunpack.c.h.b16 %v127
    %v987 = vunpack.c.l.b16 %v128
    %v988 = vunpack.c.h.b16 %v128
    %v989 = vunpack.c.l.b16 %v129
    %v990 = vunpack.c.h.b16 %v129
    %v991 = vunpack.c.l.b16 %v130
    %v992 = vunpack.c.h.b16 %v130
    %v993 = vunpack.c.l.b16 %v131
    %v994 = vunpack.c.h.b16 %v131
    %v995 = vunpack.c.l.b16 %v132
    %v996 = vunpack.c.h.b16 %v132
    %v997 = vunpack.c.l.b16 %v133
    %v998 = vunpack.c.h.b16 %v133
    %v999 = vunpack.c.l.b16 %v134
    %v1000 = vunpack.c.h.b16 %v134
    %v1001 = vunpack.c.l.b16 %v135
    %v1002 = vunpack.c.h.b16 %v135
    %v1003 = vunpack.c.l.b16 %v136
    %v1004 = vunpack.c.h.b16 %v136
    %v1005 = vunpack.c.l.b16 %v137
    %v1006 = vunpack.c.h.b16 %v137
    %v1007 = vunpack.c.l.b16 %v138
    %v1008 = vunpack.c.h.b16 %v138
    %v1009 = vunpack.c.l.b16 %v139
    %v1010 = vunpack.c.h.b16 %v139
    %v1011 = vunpack.c.l.b16 %v140
    %v1012 = vunpack.c.h.b16 %v140
    %v1013 = vunpack.c.l.b16 %v141
    %v1014 = vunpack.c.h.b16 %v141
    %v1015 = vunpack.c.l.b16 %v142
    %v1016 = vunpack.c.h.b16 %v142
    %v1017 = vunpack.c.l.b16 %v143
    %v1018 = vunpack.c.h.b16 %v143
    %v1019 = vunpack.c.l.b16 %v144
    %v1020 = vunpack.c.h.b16 %v144
    %v1021 = vunpack.c.l.b16 %v145
    %v1022 = vunpack.c.h.b16 %v145
    %v1023 = vunpack.c.l.b16 %v146
    %v1024 = vunpack.c.h.b16 %v146
    %v1025 = vunpack.c.l.b16 %v147
    %v1026 = vunpack.c.h.b16 %v147
    %v1027 = vunpack.c.l.b16 %v148
    %v1028 = vunpack.c.h.b16 %v148
    %v1029 = vunpack.c.l.b16 %v149
    %v1030 = vunpack.c.h.b16 %v149
    %v1031 = vunpack.c.l.b16 %v150
    %v1032 = vunpack.c.h.b16 %v150
    %v1033 = vunpack.c.l.b16 %v151
    %v1034 = vunpack.c.h.b16 %v151
    %v1035 = vunpack.c.l.b16 %v152
    %v1036 = vunpack.c.h.b16 %v152
    %v1037 = vunpack.c.l.b16 %v153
    %v1038 = vunpack.c.h.b16 %v153
    %v1039 = vunpack.c.l.b16 %v154
    %v1040 = vunpack.c.h.b16 %v154
    %v1041 = vunpack.c.l.b16 %v155
    %v1042 = vunpack.c.h.b16 %v155
    %v1043 = vunpack.c.l.b16 %v156
    %v1044 = vunpack.c.h.b16 %v156
    %v1045 = vunpack.c.l.b16 %v157
    %v1046 = vunpack.c.h.b16 %v157
    %v1047 = vunpack.c.l.b16 %v158
    %v1048 = vunpack.c.h.b16 %v158
    %v1049 = vunpack.c.l.b16 %v159
    %v1050 = vunpack.c.h.b16 %v159
    %v1051 = vunpack.c.l.b16 %v160
    %v1052 = vunpack.c.h.b16 %v160
    %v1053 = vunpack.c.l.b16 %v161
    %v1054 = vunpack.c.h.b16 %v161
    %v1055 = vunpack.c.l.b16 %v162
    %v1056 = vunpack.c.h.b16 %v162
    %v1057 = vunpack.c.l.b16 %v163
    %v1058 = vunpack.c.h.b16 %v163
    %v1059 = vunpack.c.l.b16 %v164
    %v1060 = vunpack.c.h.b16 %v164
    %v1061 = vunpack.c.l.b16 %v165
    %v1062 = vunpack.c.h.b16 %v165
    %v1063 = vunpack.c.l.b16 %v166
    %v1064 = vunpack.c.h.b16 %v166
    %v1065 = vunpack.c.l.b16 %v167
    %v1066 = vunpack.c.h.b16 %v167
    %v1067 = vunpack.c.l.b16 %v168
    %v1068 = vunpack.c.h.b16 %v168
    %v1069 = vunpack.c.l.b16 %v169
    %v1070 = vunpack.c.h.b16 %v169
    %v1071 = vunpack.c.l.b16 %v170
    %v1072 = vunpack.c.h.b16 %v170
    %v1073 = vunpack.c.l.b16 %v171
    %v1074 = vunpack.c.h.b16 %v171
    %v1075 = vunpack.c.l.b16 %v172
    %v1076 = vunpack.c.h.b16 %v172
    %v1077 = vunpack.c.l.b16 %v173
    %v1078 = vunpack.c.h.b16 %v173
    %v1079 = vunpack.c.l.b16 %v174
    %v1080 = vunpack.c.h.b16 %v174
    %v1081 = vunpack.c.l.b16 %v175
    %v1082 = vunpack.c.h.b16 %v175
    %v1083 = vunpack.c.l.b16 %v176
    %v1084 = vunpack.c.h.b16 %v176
    %v1085 = vunpack.c.l.b16 %v177
    %v1086 = vunpack.c.h.b16 %v177
    %v1087 = vunpack.c.l.b16 %v178
    %v1088 = vunpack.c.h.b16 %v178
    %v1089 = vunpack.c.l.b16 %v179
    %v1090 = vunpack.c.h.b16 %v179
    %v1091 = vunpack.c.l.b16 %v180
    %v1092 = vunpack.c.h.b16 %v180
    %v1093 = vunpack.c.l.b16 %v181
    %v1094 = vunpack.c.h.b16 %v181
    %v1095 = vunpack.c.l.b16 %v182
    %v1096 = vunpack.c.h.b16 %v182
    %v1097 = vunpack.c.l.b16 %v183
    %v1098 = vunpack.c.h.b16 %v183
    %v1099 = vunpack.c.l.b16 %v184
    %v1100 = vunpack.c.h.b16 %v184
    %v1101 = vunpack.c.l.b16 %v185
    %v1102 = vunpack.c.h.b16 %v185
    %v1103 = vunpack.c.l.b16 %v186
    %v1104 = vunpack.c.h.b16 %v186
    %v1105 = vunpack.c.l.b16 %v187
    %v1106 = vunpack.c.h.b16 %v187
    %v1107 = vunpack.c.l.b16 %v188
    %v1108 = vunpack.c.h.b16 %v188
    %v1109 = vunpack.c.l.b16 %v189
    %v1110 = vunpack.c.h.b16 %v189
    %v1111 = vunpack.c.l.b16 %v190
    %v1112 = vunpack.c.h.b16 %v190
    %v1113 = vunpack.c.l.b16 %v191
    %v1114 = vunpack.c.h.b16 %v191
    %v1115 = vunpack.c.l.b16 %v192
    %v1116 = vunpack.c.h.b16 %v192
    %v1117 = vunpack.c.l.b16 %v193
    %v1118 = vunpack.c.h.b16 %v193
    %v1119 = vunpack.c.l.b16 %v194
    %v1120 = vunpack.c.h.b16 %v194
    %v1121 = vunpack.c.l.b16 %v195
    %v1122 = vunpack.c.h.b16 %v195
    %v1123 = vunpack.c.l.b16 %v196
    %v1124 = vunpack.c.h.b16 %v196
    %v1125 = vunpack.c.l.b16 %v197
    %v1126 = vunpack.c.h.b16 %v197
    %v1127 = vunpack.c.l.b16 %v198
    %v1128 = vunpack.c.h.b16 %v198
    %v1129 = vunpack.c.l.b16 %v199
    %v1130 = vunpack.c.h.b16 %v199
    %v1131 = vunpack.c.l.b16 %v200
    %v1132 = vunpack.c.h.b16 %v200
    %v1133 = vunpack.c.l.b16 %v201
    %v1134 = vunpack.c.h.b16 %v201
    %v1135 = vunpack.c.l.b16 %v202
    %v1136 = vunpack.c.h.b16 %v202
    %v1137 = vunpack.c.l.b16 %v203
    %v1138 = vunpack.c.h.b16 %v203
    %v1139 = vunpack.c.l.b16 %v204
    %v1140 = vunpack.c.h.b16 %v204
    %v1141 = vunpack.c.l.b16 %v205
    %v1142 = vunpack.c.h.b16 %v205
    %v1143 = vunpack.c.l.b16 %v206
    %v1144 = vunpack.c.h.b16 %v206
    %v1145 = vunpack.c.l.b16 %v207
    %v1146 = vunpack.c.h.b16 %v207
    %v1147 = vunpack.c.l.b16 %v208
    %v1148 = vunpack.c.h.b16 %v208
    %v1149 = vunpack.c.l.b16 %v209
    %v1150 = vunpack.c.h.b16 %v209
    %v1151 = vunpack.c.l.b16 %v210
    %v1152 = vunpack.c.h.b16 %v210
    %v1153 = vunpack.c.l.b16 %v211
    %v1154 = vunpack.c.h.b16 %v211
    %v1155 = vunpack.c.l.b16 %v212
    %v1156 = vunpack.c.h.b16 %v212
    %v1157 = vunpack.c.l.b16 %v213
    %v1158 = vunpack.c.h.b16 %v213
    %v1159 = vunpack.c.l.b16 %v214
    %v1160 = vunpack.c.h.b16 %v214
    %v1161 = vunpack.c.l.b16 %v215
    %v1162 = vunpack.c.h.b16 %v215
    %v1163 = vunpack.c.l.b16 %v216
    %v1164 = vunpack.c.h.b16 %v216
    %v1165 = vunpack.c.l.b16 %v217
    %v1166 = vunpack.c.h.b16 %v217
    %v1167 = vunpack.c.l.b16 %v218
    %v1168 = vunpack.c.h.b16 %v218
    %v1169 = vunpack.c.l.b16 %v219
    %v1170 = vunpack.c.h.b16 %v219
    %v1171 = vunpack.c.l.b16 %v220
    %v1172 = vunpack.c.h.b16 %v220
    %v1173 = vunpack.c.l.b16 %v221
    %v1174 = vunpack.c.h.b16 %v221
    %v1175 = vunpack.c.l.b16 %v222
    %v1176 = vunpack.c.h.b16 %v222
    %v1177 = vunpack.c.l.b16 %v223
    %v1178 = vunpack.c.h.b16 %v223
    %v1179 = vunpack.c.l.b16 %v224
    %v1180 = vunpack.c.h.b16 %v224
    %v1181 = vunpack.c.l.b16 %v225
    %v1182 = vunpack.c.h.b16 %v225
    %v1183 = vunpack.c.l.b16 %v226
    %v1184 = vunpack.c.h.b16 %v226
    %v1185 = vunpack.c.l.b16 %v227
    %v1186 = vunpack.c.h.b16 %v227
    %v1187 = vunpack.c.l.b16 %v228
    %v1188 = vunpack.c.h.b16 %v228
    %v1189 = vunpack.c.l.b16 %v229
    %v1190 = vunpack.c.h.b16 %v229
    %v1191 = vunpack.c.l.b16 %v230
    %v1192 = vunpack.c.h.b16 %v230
    %v1193 = vunpack.c.l.b16 %v231
    %v1194 = vunpack.c.h.b16 %v231
    %v1195 = vunpack.c.l.b16 %v232
    %v1196 = vunpack.c.h.b16 %v232
    %v1197 = vunpack.c.l.b16 %v233
    %v1198 = vunpack.c.h.b16 %v233
    %v1199 = vunpack.c.l.b16 %v234
    %v1200 = vunpack.c.h.b16 %v234
    %v1201 = vunpack.c.l.b16 %v235
    %v1202 = vunpack.c.h.b16 %v235
    %v1203 = vunpack.c.l.b16 %v236
    %v1204 = vunpack.c.h.b16 %v236
    %v1205 = vunpack.c.l.b16 %v237
    %v1206 = vunpack.c.h.b16 %v237
    %v1207 = vunpack.c.l.b16 %v238
    %v1208 = vunpack.c.h.b16 %v238
    %v1209 = vunpack.c.l.b16 %v239
    %v1210 = vunpack.c.h.b16 %v239
    %v1211 = vunpack.c.l.b16 %v240
    %v1212 = vunpack.c.h.b16 %v240
    %v1213 = vunpack.c.l.b16 %v241
    %v1214 = vunpack.c.h.b16 %v241
    %v1215 = vunpack.c.l.b16 %v242
    %v1216 = vunpack.c.h.b16 %v242
    %v1217 = vunpack.c.l.b16 %v243
    %v1218 = vunpack.c.h.b16 %v243
    %v1219 = vunpack.c.l.b16 %v244
    %v1220 = vunpack.c.h.b16 %v244
    %v1221 = vunpack.c.l.b16 %v245
    %v1222 = vunpack.c.h.b16 %v245
    %v1223 = vunpack.c.l.b16 %v246
    %v1224 = vunpack.c.h.b16 %v246
    %v1225 = vunpack.c.l.b16 %v247
    %v1226 = vunpack.c.h.b16 %v247
    %v1227 = vunpack.c.l.b16 %v248
    %v1228 = vunpack.c.h.b16 %v248
    %v1229 = vunpack.c.l.b16 %v249
    %v1230 = vunpack.c.h.b16 %v249
    %v1231 = vunpack.c.l.b16 %v250
    %v1232 = vunpack.c.h.b16 %v250
    %v1233 = vunpack.c.l.b16 %v251
    %v1234 = vunpack.c.h.b16 %v251
    %v1235 = vunpack.c.l.b16 %v252
    %v1236 = vunpack.c.h.b16 %v252
    %v1237 = vunpack.c.l.b16 %v253
    %v1238 = vunpack.c.h.b16 %v253
    %v1239 = vunpack.c.l.b16 %v254
    %v1240 = vunpack.c.h.b16 %v254
    %v1241 = vunpack.c.l.b16 %v255
    %v1242 = vunpack.c.h.b16 %v255
    %v1243 = vunpack.c.l.b16 %v256
    %v1244 = vunpack.c.h.b16 %v256
    %v1245 = vunpack.c.l.b16 %v257
    %v1246 = vunpack.c.h.b16 %v257
    %v1247 = vunpack.c.l.b16 %v258
    %v1248 = vunpack.c.h.b16 %v258
    %v1249 = vunpack.c.l.b16 %v259
    %v1250 = vunpack.c.h.b16 %v259
    %v1251 = vunpack.c.l.b16 %v260
    %v1252 = vunpack.c.h.b16 %v260
    %v1253 = vunpack.c.l.b16 %v261
    %v1254 = vunpack.c.h.b16 %v261
    %v1255 = vunpack.c.l.b16 %v262
    %v1256 = vunpack.c.h.b16 %v262
    %v1257 = vunpack.c.l.b16 %v263
    %v1258 = vunpack.c.h.b16 %v263
    %v1259 = vunpack.c.l.b16 %v264
    %v1260 = vunpack.c.h.b16 %v264
    %v1261 = vunpack.c.l.b16 %v265
    %v1262 = vunpack.c.h.b16 %v265
    %v1263 = vunpack.c.l.b16 %v266
    %v1264 = vunpack.c.h.b16 %v266
    %v1265 = vunpack.c.l.b16 %v267
    %v1266 = vunpack.c.h.b16 %v267
    %v1267 = vunpack.c.l.b16 %v268
    %v1268 = vunpack.c.h.b16 %v268
    %v1269 = vunpack.c.l.b16 %v269
    %v1270 = vunpack.c.h.b16 %v269
    %v1271 = vunpack.c.l.b16 %v270
    %v1272 = vunpack.c.h.b16 %v270
    %v1273 = vunpack.c.l.b16 %v271
    %v1274 = vunpack.c.h.b16 %v271
    %v1275 = vunpack.c.l.b16 %v272
    %v1276 = vunpack.c.h.b16 %v272
    %v1277 = vunpack.c.l.b16 %v273
    %v1278 = vunpack.c.h.b16 %v273
    %v1279 = vunpack.c.l.b16 %v274
    %v1280 = vunpack.c.h.b16 %v274
    %v1281 = vunpack.c.l.b16 %v275
    %v1282 = vunpack.c.h.b16 %v275
    %v1283 = vunpack.c.l.b16 %v276
    %v1284 = vunpack.c.h.b16 %v276
    %v1285 = vunpack.c.l.b16 %v277
    %v1286 = vunpack.c.h.b16 %v277
    %v1287 = vunpack.c.l.b16 %v278
    %v1288 = vunpack.c.h.b16 %v278
    %v1289 = vunpack.c.l.b16 %v279
    %v1290 = vunpack.c.h.b16 %v279
    %v1291 = vunpack.c.l.b16 %v280
    %v1292 = vunpack.c.h.b16 %v280
    %v1293 = vunpack.c.l.b16 %v281
    %v1294 = vunpack.c.h.b16 %v281
    %v1295 = vunpack.c.l.b16 %v282
    %v1296 = vunpack.c.h.b16 %v282
    %v1297 = vunpack.c.l.b16 %v283
    %v1298 = vunpack.c.h.b16 %v283
    %v1299 = vunpack.c.l.b16 %v284
    %v1300 = vunpack.c.h.b16 %v284
    %v1301 = vunpack.c.l.b16 %v285
    %v1302 = vunpack.c.h.b16 %v285
    %v1303 = vunpack.c.l.b16 %v286
    %v1304 = vunpack.c.h.b16 %v286
    %v1305 = vunpack.c.l.b16 %v287
    %v1306 = vunpack.c.h.b16 %v287
    %v1307 = vunpack.c.l.b16 %v288
    %v1308 = vunpack.c.h.b16 %v288
    %v1309 = vunpack.c.l.b16 %v289
    %v1310 = vunpack.c.h.b16 %v289
    %v1311 = vunpack.c.l.b16 %v290
    %v1312 = vunpack.c.h.b16 %v290
    %v1313 = vunpack.c.l.b16 %v291
    %v1314 = vunpack.c.h.b16 %v291
    %v1315 = vunpack.c.l.b16 %v292
    %v1316 = vunpack.c.h.b16 %v292
    %v1317 = vunpack.c.l.b16 %v293
    %v1318 = vunpack.c.h.b16 %v293
    %v1319 = vunpack.c.l.b16 %v294
    %v1320 = vunpack.c.h.b16 %v294
    %v1321 = vunpack.c.l.b16 %v295
    %v1322 = vunpack.c.h.b16 %v295
    %v1323 = vunpack.c.l.b16 %v296
    %v1324 = vunpack.c.h.b16 %v296
    %v1325 = vunpack.c.l.b16 %v297
    %v1326 = vunpack.c.h.b16 %v297
    %v1327 = vunpack.c.l.b16 %v298
    %v1328 = vunpack.c.h.b16 %v298
    %v1329 = vunpack.c.l.b16 %v299
    %v1330 = vunpack.c.h.b16 %v299
    %v1331 = vunpack.c.l.b16 %v300
    %v1332 = vunpack.c.h.b16 %v300
    %v1333 = vunpack.c.l.b16 %v301
    %v1334 = vunpack.c.h.b16 %v301
    %v1335 = vunpack.c.l.b16 %v302
    %v1336 = vunpack.c.h.b16 %v302
    %v1337 = vunpack.c.l.b16 %v303
    %v1338 = vunpack.c.h.b16 %v303
    %v1339 = vunpack.c.l.b16 %v304
    %v1340 = vunpack.c.h.b16 %v304
    %v1341 = vunpack.c.l.b16 %v305
    %v1342 = vunpack.c.h.b16 %v305
    %v1343 = vunpack.c.l.b16 %v306
    %v1344 = vunpack.c.h.b16 %v306
    %v1345 = vunpack.c.l.b16 %v307
    %v1346 = vunpack.c.h.b16 %v307
    %v1347 = vunpack.c.l.b16 %v308
    %v1348 = vunpack.c.h.b16 %v308
    %v1349 = vunpack.c.l.b16 %v309
    %v1350 = vunpack.c.h.b16 %v309
    %v1351 = vunpack.c.l.b16 %v310
    %v1352 = vunpack.c.h.b16 %v310
    %v1353 = vunpack.c.l.b16 %v311
    %v1354 = vunpack.c.h.b16 %v311
    %v1355 = vunpack.c.l.b16 %v312
    %v1356 = vunpack.c.h.b16 %v312
    %v1357 = vunpack.c.l.b16 %v313
    %v1358 = vunpack.c.h.b16 %v313
    %v1359 = vunpack.c.l.b16 %v314
    %v1360 = vunpack.c.h.b16 %v314
    %v1361 = vunpack.c.l.b16 %v315
    %v1362 = vunpack.c.h.b16 %v315
    %v1363 = vunpack.c.l.b16 %v316
    %v1364 = vunpack.c.h.b16 %v316
    %v1365 = vunpack.c.l.b16 %v317
    %v1366 = vunpack.c.h.b16 %v317
    %v1367 = vunpack.c.l.b16 %v318
    %v1368 = vunpack.c.h.b16 %v318
    %v1369 = vunpack.c.l.b16 %v319
    %v1370 = vunpack.c.h.b16 %v319
    %v1371 = vunpack.c.l.b16 %v320
    %v1372 = vunpack.c.h.b16 %v320
    %v1373 = vunpack.c.l.b16 %v321
    %v1374 = vunpack.c.h.b16 %v321
    %v1375 = vunpack.c.l.b16 %v322
    %v1376 = vunpack.c.h.b16 %v322
    %v1377 = vunpack.c.l.b16 %v323
    %v1378 = vunpack.c.h.b16 %v323
    %v1379 = vunpack.c.l.b16 %v324
    %v1380 = vunpack.c.h.b16 %v324
    %v1381 = vunpack.c.l.b16 %v325
    %v1382 = vunpack.c.h.b16 %v325
    %v1383 = vunpack.c.l.b16 %v326
    %v1384 = vunpack.c.h.b16 %v326
    %v1385 = vunpack.c.l.b16 %v327
    %v1386 = vunpack.c.h.b16 %v327
    %v1387 = vunpack.c.l.b16 %v328
    %v1388 = vunpack.c.h.b16 %v328
    %v1389 = vunpack.c.l.b16 %v329
    %v1390 = vunpack.c.h.b16 %v329
    %v1391 = vunpack.c.l.b16 %v330
    %v1392 = vunpack.c.h.b16 %v330
    %v1393 = vunpack.c.l.b16 %v331
    %v1394 = vunpack.c.h.b16 %v331
    %v1395 = vunpack.c.l.b16 %v332
    %v1396 = vunpack.c.h.b16 %v332
    %v1397 = vunpack.c.l.b16 %v333
    %v1398 = vunpack.c.h.b16 %v333
    %v1399 = vunpack.c.l.b16 %v334
    %v1400 = vunpack.c.h.b16 %v334
    %v1401 = vunpack.c.l.b16 %v335
    %v1402 = vunpack.c.h.b16 %v335
    %v1403 = vunpack.c.l.b16 %v336
    %v1404 = vunpack.c.h.b16 %v336
    %v1405 = vunpack.c.l.b16 %v337
    %v1406 = vunpack.c.h.b16 %v337
    %v1407 = vunpack.c.l.b16 %v338
    %v1408 = vunpack.c.h.b16 %v338
    %v1409 = vunpack.c.l.b16 %v339
    %v1410 = vunpack.c.h.b16 %v339
    %v1411 = vunpack.c.l.b16 %v340
    %v1412 = vunpack.c.h.b16 %v340
    %v1413 = vunpack.c.l.b16 %v341
    %v1414 = vunpack.c.h.b16 %v341
    %v1415 = vunpack.c.l.b16 %v342
    %v1416 = vunpack.c.h.b16 %v342
    %v1417 = vunpack.c.l.b16 %v343
    %v1418 = vunpack.c.h.b16 %v343
    %v1419 = vunpack.c.l.b16 %v344
    %v1420 = vunpack.c.h.b16 %v344
    %v1421 = vunpack.c.l.b16 %v345
    %v1422 = vunpack.c.h.b16 %v345
    %v1423 = vunpack.c.l.b16 %v346
    %v1424 = vunpack.c.h.b16 %v346
    %v1425 = vunpack.c.l.b16 %v347
    %v1426 = vunpack.c.h.b16 %v347
    %v1427 = vunpack.c.l.b16 %v348
    %v1428 = vunpack.c.h.b16 %v348
    %v1429 = vunpack.c.l.b16 %v349
    %v1430 = vunpack.c.h.b16 %v349
    %v1431 = vunpack.c.l.b16 %v350
    %v1432 = vunpack.c.h.b16 %v350
    %v1433 = vunpack.c.l.b16 %v351
    %v1434 = vunpack.c.h.b16 %v351
    %v1435 = vunpack.c.l.b16 %v352
    %v1436 = vunpack.c.h.b16 %v352
    %v1437 = vunpack.c.l.b16 %v353
    %v1438 = vunpack.c.h.b16 %v353
    %v1439 = vunpack.c.l.b16 %v354
    %v1440 = vunpack.c.h.b16 %v354
    %v1441 = vunpack.c.l.b16 %v355
    %v1442 = vunpack.c.h.b16 %v355
    %v1443 = vunpack.c.l.b16 %v356
    %v1444 = vunpack.c.h.b16 %v356
    %v1445 = vunpack.c.l.b16 %v357
    %v1446 = vunpack.c.h.b16 %v357
    %v1447 = vunpack.c.l.b16 %v358
    %v1448 = vunpack.c.h.b16 %v358
    %v1449 = vunpack.c.l.b16 %v359
    %v1450 = vunpack.c.h.b16 %v359
    %v1451 = vunpack.c.l.b16 %v360
    %v1452 = vunpack.c.h.b16 %v360
    %v1453 = vunpack.c.l.b16 %v361
    %v1454 = vunpack.c.h.b16 %v361
    %v1455 = vunpack.c.l.b16 %v362
    %v1456 = vunpack.c.h.b16 %v362
    %v1457 = vunpack.c.l.b16 %v363
    %v1458 = vunpack.c.h.b16 %v363
    %v1459 = vunpack.c.l.b16 %v364
    %v1460 = vunpack.c.h.b16 %v364
    %v1461 = vunpack.c.l.b16 %v365
    %v1462 = vunpack.c.h.b16 %v365
    %v1463 = vunpack.c.l.b16 %v366
    %v1464 = vunpack.c.h.b16 %v366
    %v1465 = vunpack.c.l.b16 %v367
    %v1466 = vunpack.c.h.b16 %v367
    %v1467 = vunpack.c.l.b16 %v368
    %v1468 = vunpack.c.h.b16 %v368
    %v1469 = vunpack.c.l.b16 %v369
    %v1470 = vunpack.c.h.b16 %v369
    %v1471 = vunpack.c.l.b16 %v370
    %v1472 = vunpack.c.h.b16 %v370
    %v1473 = vunpack.c.l.b16 %v371
    %v1474 = vunpack.c.h.b16 %v371
    %v1475 = vunpack.c.l.b16 %v372
    %v1476 = vunpack.c.h.b16 %v372
    %v1477 = vunpack.c.l.b16 %v373
    %v1478 = vunpack.c.h.b16 %v373
    %v1479 = vunpack.c.l.b16 %v374
    %v1480 = vunpack.c.h.b16 %v374
    %v1481 = vunpack.c.l.b16 %v375
    %v1482 = vunpack.c.h.b16 %v375
    %v1483 = vunpack.c.l.b16 %v376
    %v1484 = vunpack.c.h.b16 %v376
    %v1485 = vunpack.c.l.b16 %v377
    %v1486 = vunpack.c.h.b16 %v377
    %v1487 = vunpack.c.l.b16 %v378
    %v1488 = vunpack.c.h.b16 %v378
    %v1489 = vunpack.c.l.b16 %v379
    %v1490 = vunpack.c.h.b16 %v379
    %v1491 = vunpack.c.l.b16 %v380
    %v1492 = vunpack.c.h.b16 %v380
    %v1493 = vunpack.c.l.b16 %v381
    %v1494 = vunpack.c.h.b16 %v381
    %v1495 = vunpack.c.l.b16 %v382
    %v1496 = vunpack.c.h.b16 %v382
    %v1497 = vunpack.c.l.b16 %v383
    %v1498 = vunpack.c.h.b16 %v383
    %v1499 = vunpack.c.l.b16 %v384
    %v1500 = vunpack.c.h.b16 %v384
    %v1501 = vunpack.c.l.b16 %v385
    %v1502 = vunpack.c.h.b16 %v385
    %v1503 = vunpack.c.l.b16 %v386
    %v1504 = vunpack.c.h.b16 %v386
    %v1505 = vunpack.c.l.b16 %v387
    %v1506 = vunpack.c.h.b16 %v387
    %v1507 = vunpack.c.l.b16 %v388
    %v1508 = vunpack.c.h.b16 %v388
    %v1509 = vunpack.c.l.b16 %v389
    %v1510 = vunpack.c.h.b16 %v389
    %v1511 = vunpack.c.l.b16 %v390
    %v1512 = vunpack.c.h.b16 %v390
    %v1513 = vunpack.c.l.b16 %v391
    %v1514 = vunpack.c.h.b16 %v391
    %v1515 = vunpack.c.l.b16 %v392
    %v1516 = vunpack.c.h.b16 %v392
    %v1517 = vunpack.c.l.b16 %v393
    %v1518 = vunpack.c.h.b16 %v393
    %v1519 = vunpack.c.l.b16 %v394
    %v1520 = vunpack.c.h.b16 %v394
    %v1521 = vunpack.c.l.b16 %v395
    %v1522 = vunpack.c.h.b16 %v395
    %v1523 = vunpack.c.l.b16 %v396
    %v1524 = vunpack.c.h.b16 %v396
    %v1525 = vunpack.c.l.b16 %v397
    %v1526 = vunpack.c.h.b16 %v397
    %v1527 = vunpack.c.l.b16 %v398
    %v1528 = vunpack.c.h.b16 %v398
    %v1529 = vunpack.c.l.b16 %v399
    %v1530 = vunpack.c.h.b16 %v399
    %v1531 = vunpack.c.l.b16 %v400
    %v1532 = vunpack.c.h.b16 %v400
    %v1533 = vunpack.c.l.b16 %v401
    %v1534 = vunpack.c.h.b16 %v401
    %v1535 = vunpack.c.l.b16 %v402
    %v1536 = vunpack.c.h.b16 %v402
    %v1537 = vunpack.c.l.b16 %v403
    %v1538 = vunpack.c.h.b16 %v403
    %v1539 = vunpack.c.l.b16 %v404
    %v1540 = vunpack.c.h.b16 %v404
    %v1541 = vunpack.c.l.b16 %v405
    %v1542 = vunpack.c.h.b16 %v405
    %v1543 = vunpack.c.l.b16 %v406
    %v1544 = vunpack.c.h.b16 %v406
    %v1545 = vunpack.c.l.b16 %v407
    %v1546 = vunpack.c.h.b16 %v407
    %v1547 = vunpack.c.l.b16 %v408
    %v1548 = vunpack.c.h.b16 %v408
    %v1549 = vunpack.c.l.b16 %v409
    %v1550 = vunpack.c.h.b16 %v409
    %v1551 = vunpack.c.l.b16 %v410
    %v1552 = vunpack.c.h.b16 %v410
    %v1553 = vunpack.c.l.b16 %v411
    %v1554 = vunpack.c.h.b16 %v411
    %v1555 = vunpack.c.l.b16 %v412
    %v1556 = vunpack.c.h.b16 %v412
    %v1557 = vunpack.c.l.b16 %v413
    %v1558 = vunpack.c.h.b16 %v413
    %v1559 = vunpack.c.l.b16 %v414
    %v1560 = vunpack.c.h.b16 %v414
    %v1561 = vunpack.c.l.b16 %v415
    %v1562 = vunpack.c.h.b16 %v415
    %v1563 = vunpack.c.l.b16 %v416
    %v1564 = vunpack.c.h.b16 %v416
    %v1565 = vunpack.c.l.b16 %v417
    %v1566 = vunpack.c.h.b16 %v417
    %v1567 = vunpack.c.l.b16 %v418
    %v1568 = vunpack.c.h.b16 %v418
    %v1569 = vunpack.c.l.b16 %v419
    %v1570 = vunpack.c.h.b16 %v419
    %v1571 = vunpack.c.l.b16 %v420
    %v1572 = vunpack.c.h.b16 %v420
    %v1573 = vunpack.c.l.b16 %v421
    %v1574 = vunpack.c.h.b16 %v421
    %v1575 = vunpack.c.l.b16 %v422
    %v1576 = vunpack.c.h.b16 %v422
    %v1577 = vunpack.c.l.b16 %v423
    %v1578 = vunpack.c.h.b16 %v423
    %v1579 = vunpack.c.l.b16 %v424
    %v1580 = vunpack.c.h.b16 %v424
    %v1581 = vunpack.c.l.b16 %v425
    %v1582 = vunpack.c.h.b16 %v425
    %v1583 = vunpack.c.l.b16 %v426
    %v1584 = vunpack.c.h.b16 %v426
    %v1585 = vunpack.c.l.b16 %v427
    %v1586 = vunpack.c.h.b16 %v427
    %v1587 = vunpack.c.l.b16 %v428
    %v1588 = vunpack.c.h.b16 %v428
    %v1589 = vunpack.c.l.b16 %v429
    %v1590 = vunpack.c.h.b16 %v429
    %v1591 = vunpack.c.l.b16 %v430
    %v1592 = vunpack.c.h.b16 %v430
    %v1593 = vunpack.c.l.b16 %v431
    %v1594 = vunpack.c.h.b16 %v431
    %v1595 = vunpack.c.l.b16 %v432
    %v1596 = vunpack.c.h.b16 %v432
    %v1597 = vunpack.c.l.b16 %v433
    %v1598 = vunpack.c.h.b16 %v433
    %v1599 = vunpack.c.l.b16 %v434
    %v1600 = vunpack.c.h.b16 %v434
    %v1601 = vunpack.c.l.b16 %v435
    %v1602 = vunpack.c.h.b16 %v435
    %v1603 = vunpack.c.l.b16 %v436
    %v1604 = vunpack.c.h.b16 %v436
    %v1605 = vunpack.c.l.b16 %v437
    %v1606 = vunpack.c.h.b16 %v437
    %v1607 = vunpack.c.l.b16 %v438
    %v1608 = vunpack.c.h.b16 %v438
    %v1609 = vunpack.c.l.b16 %v439
    %v1610 = vunpack.c.h.b16 %v439
    %v1611 = vunpack.c.l.b16 %v440
    %v1612 = vunpack.c.h.b16 %v440
    %v1613 = vunpack.c.l.b16 %v441
    %v1614 = vunpack.c.h.b16 %v441
    %v1615 = vunpack.c.l.b16 %v442
    %v1616 = vunpack.c.h.b16 %v442
    %v1617 = vunpack.c.l.b16 %v443
    %v1618 = vunpack.c.h.b16 %v443
    %v1619 = vunpack.c.l.b16 %v444
    %v1620 = vunpack.c.h.b16 %v444
    %v1621 = vunpack.c.l.b16 %v445
    %v1622 = vunpack.c.h.b16 %v445
    %v1623 = vunpack.c.l.b16 %v446
    %v1624 = vunpack.c.h.b16 %v446
    %v1625 = vunpack.c.l.b16 %v447
    %v1626 = vunpack.c.h.b16 %v447
    %v1627 = vunpack.c.l.b16 %v448
    %v1628 = vunpack.c.h.b16 %v448
    %v1629 = vunpack.c.l.b16 %v449
    %v1630 = vunpack.c.h.b16 %v449
    %v1631 = vunpack.c.l.b16 %v450
    %v1632 = vunpack.c.h.b16 %v450
    %v1633 = vunpack.c.l.b16 %v451
    %v1634 = vunpack.c.h.b16 %v451
    %v1635 = vunpack.c.l.b16 %v452
    %v1636 = vunpack.c.h.b16 %v452
    %v1637 = vunpack.c.l.b16 %v453
    %v1638 = vunpack.c.h.b16 %v453
    %v1639 = vunpack.c.l.b16 %v454
    %v1640 = vunpack.c.h.b16 %v454
    %v1641 = vunpack.c.l.b16 %v455
    %v1642 = vunpack.c.h.b16 %v455
    %v1643 = vunpack.c.l.b16 %v456
    %v1644 = vunpack.c.h.b16 %v456
    %v1645 = vunpack.c.l.b16 %v457
    %v1646 = vunpack.c.h.b16 %v457
    %v1647 = vunpack.c.l.b16 %v458
    %v1648 = vunpack.c.h.b16 %v458
    %v1649 = vunpack.c.l.b16 %v459
    %v1650 = vunpack.c.h.b16 %v459
    %v1651 = vunpack.c.l.b16 %v460
    %v1652 = vunpack.c.h.b16 %v460
    %v1653 = vunpack.c.l.b16 %v461
    %v1654 = vunpack.c.h.b16 %v461
    %v1655 = vunpack.c.l.b16 %v462
    %v1656 = vunpack.c.h.b16 %v462
    %v1657 = vunpack.c.l.b16 %v463
    %v1658 = vunpack.c.h.b16 %v463
    %v1659 = vunpack.c.l.b16 %v464
    %v1660 = vunpack.c.h.b16 %v464
    %v1661 = vunpack.c.l.b16 %v465
    %v1662 = vunpack.c.h.b16 %v465
    %v1663 = vunpack.c.l.b16 %v466
    %v1664 = vunpack.c.h.b16 %v466
    %v1665 = vunpack.c.l.b16 %v467
    %v1666 = vunpack.c.h.b16 %v467
    %v1667 = vunpack.c.l.b16 %v468
    %v1668 = vunpack.c.h.b16 %v468
    %v1669 = vunpack.c.l.b16 %v469
    %v1670 = vunpack.c.h.b16 %v469
    %v1671 = vunpack.c.l.b16 %v470
    %v1672 = vunpack.c.h.b16 %v470
    %v1673 = vunpack.c.l.b16 %v471
    %v1674 = vunpack.c.h.b16 %v471
    %v1675 = vunpack.c.l.b16 %v472
    %v1676 = vunpack.c.h.b16 %v472
    %v1677 = vunpack.c.l.b16 %v473
    %v1678 = vunpack.c.h.b16 %v473
    %v1679 = vunpack.c.l.b16 %v474
    %v1680 = vunpack.c.h.b16 %v474
    %v1681 = vunpack.c.l.b16 %v475
    %v1682 = vunpack.c.h.b16 %v475
    %v1683 = vunpack.c.l.b16 %v476
    %v1684 = vunpack.c.h.b16 %v476
    %v1685 = vunpack.c.l.b16 %v477
    %v1686 = vunpack.c.h.b16 %v477
    %v1687 = vunpack.c.l.b16 %v478
    %v1688 = vunpack.c.h.b16 %v478
    %v1689 = vunpack.c.l.b16 %v479
    %v1690 = vunpack.c.h.b16 %v479
    %v1691 = vunpack.c.l.b16 %v480
    %v1692 = vunpack.c.h.b16 %v480
    %v1693 = vunpack.c.l.b16 %v481
    %v1694 = vunpack.c.h.b16 %v481
    %v1695 = vunpack.c.l.b16 %v482
    %v1696 = vunpack.c.h.b16 %v482
    %v1697 = vunpack.c.l.b16 %v483
    %v1698 = vunpack.c.h.b16 %v483
    %v1699 = vunpack.c.l.b16 %v484
    %v1700 = vunpack.c.h.b16 %v484
    %v1701 = vunpack.c.l.b16 %v485
    %v1702 = vunpack.c.h.b16 %v485
    %v1703 = vunpack.c.l.b16 %v486
    %v1704 = vunpack.c.h.b16 %v486
    %v1705 = vpack.c.b16 %v929, %v921
    %v1706 = vpack.c.b16 %v930, %v922
    %v1707 = vpack.c.b16 %v931, %v923
    %v1708 = vpack.c.b16 %v932, %v924
    %v1709 = vpack.c.b16 %v933, %v925
    %v1710 = vpack.c.b16 %v934, %v926
    %v1711 = vpack.c.b16 %v935, %v927
    %v1712 = vpack.c.b16 %v936, %v928
    %v1713 = vpack.c.b16 %v945, %v937
    %v1714 = vpack.c.b16 %v946, %v938
    %v1715 = vpack.c.b16 %v947, %v939
    %v1716 = vpack.c.b16 %v948, %v940
    %v1717 = vpack.c.b16 %v949, %v941
    %v1718 = vpack.c.b16 %v950, %v942
    %v1719 = vpack.c.b16 %v951, %v943
    %v1720 = vpack.c.b16 %v952, %v944
    %v1721 = vpack.c.b16 %v961, %v953
    %v1722 = vpack.c.b16 %v962, %v954
    %v1723 = vpack.c.b16 %v963, %v955
    %v1724 = vpack.c.b16 %v964, %v956
    %v1725 = vpack.c.b16 %v965, %v957
    %v1726 = vpack.c.b16 %v966, %v958
    %v1727 = vpack.c.b16 %v967, %v959
    %v1728 = vpack.c.b16 %v968, %v960
    %v1729 = vpack.c.b16 %v977, %v969
    %v1730 = vpack.c.b16 %v978, %v970
    %v1731 = vpack.c.b16 %v979, %v971
    %v1732 = vpack.c.b16 %v980, %v972
    %v1733 = vpack.c.b16 %v981, %v973
    %v1734 = vpack.c.b16 %v982, %v974
    %v1735 = vpack.c.b16 %v983, %v975
    %v1736 = vpack.c.b16 %v984, %v976
    %v1737 = vpack.c.b16 %v993, %v985
    %v1738 = vpack.c.b16 %v994, %v986
    %v1739 = vpack.c.b16 %v995, %v987
    %v1740 = vpack.c.b16 %v996, %v988
    %v1741 = vpack.c.b16 %v997, %v989
    %v1742 = vpack.c.b16 %v998, %v990
    %v1743 = vpack.c.b16 %v999, %v991
    %v1744 = vpack.c.b16 %v1000, %v992
    %v1745 = vpack.c.b16 %v1009, %v1001
    %v1746 = vpack.c.b16 %v1010, %v1002
    %v1747 = vpack.c.b16 %v1011, %v1003
    %v1748 = vpack.c.b16 %v1012, %v1004
    %v1749 = vpack.c.b16 %v1013, %v1005
    %v1750 = vpack.c.b16 %v1014, %v1006
    %v1751 = vpack.c.b16 %v1015, %v1007
    %v1752 = vpack.c.b16 %v1016, %v1008
    %v1753 = vpack.c.b16 %v1025, %v1017
    %v1754 = vpack.c.b16 %v1026, %v1018
    %v1755 = vpack.c.b16 %v1027, %v1019
    %v1756 = vpack.c.b16 %v1028, %v1020
    %v1757 = vpack.c.b16 %v1029, %v1021
    %v1758 = vpack.c.b16 %v1030, %v1022
    %v1759 = vpack.c.b16 %v1031, %v1023
    %v1760 = vpack.c.b16 %v1032, %v1024
    %v1761 = vpack.c.b16 %v1041, %v1033
    %v1762 = vpack.c.b16 %v1042, %v1034
    %v1763 = vpack.c.b16 %v1043, %v1035
    %v1764 = vpack.c.b16 %v1044, %v1036
    %v1765 = vpack.c.b16 %v1045, %v1037
    %v1766 = vpack.c.b16 %v1046, %v1038
    %v1767 = vpack.c.b16 %v1047, %v1039
    %v1768 = vpack.c.b16 %v1048, %v1040
    %v1769 = vpack.c.b16 %v1057, %v1049
    %v1770 = vpack.c.b16 %v1058, %v1050
    %v1771 = vpack.c.b16 %v1059, %v1051
    %v1772 = vpack.c.b16 %v1060, %v1052
    %v1773 = vpack.c.b16 %v1061, %v1053
    %v1774 = vpack.c.b16 %v1062, %v1054
    %v1775 = vpack.c.b16 %v1063, %v1055
    %v1776 = vpack.c.b16 %v1064, %v1056
    %v1777 = vpack.c.b16 %v1073, %v1065
    %v1778 = vpack.c.b16 %v1074, %v1066
    %v1779 = vpack.c.b16 %v1075, %v1067
    %v1780 = vpack.c.b16 %v1076, %v1068
    %v1781 = vpack.c.b16 %v1077, %v1069
    %v1782 = vpack.c.b16 %v1078, %v1070
    %v1783 = vpack.c.b16 %v1079, %v1071
    %v1784 = vpack.c.b16 %v1080, %v1072
    %v1785 = vpack.c.b16 %v1089, %v1081
    %v1786 = vpack.c.b16 %v1090, %v1082
    %v1787 = vpack.c.b16 %v1091, %v1083
    %v1788 = vpack.c.b16 %v1092, %v1084
    %v1789 = vpack.c.b16 %v1093, %v1085
    %v1790 = vpack.c.b16 %v1094, %v1086
    %v1791 = vpack.c.b16 %v1095, %v1087
    %v1792 = vpack.c.b16 %v1096, %v1088
    %v1793 = vpack.c.b16 %v1105, %v1097
    %v1794 = vpack.c.b16 %v1106, %v1098
    %v1795 = vpack.c.b16 %v1107, %v1099
    %v1796 = vpack.c.b16 %v1108, %v1100
    %v1797 = vpack.c.b16 %v1109, %v1101
    %v1798 = vpack.c.b16 %v1110, %v1102
    %v1799 = vpack.c.b16 %v1111, %v1103
    %v1800 = vpack.c.b16 %v1112, %v1104
    %v1801 = vpack.c.b16 %v1121, %v1113
    %v1802 = vpack.c.b16 %v1122, %v1114
    %v1803 = vpack.c.b16 %v1123, %v1115
    %v1804 = vpack.c.b16 %v1124, %v1116
    %v1805 = vpack.c.b16 %v1125, %v1117
    %v1806 = vpack.c.b16 %v1126, %v1118
    %v1807 = vpack.c.b16 %v1127, %v1119
    %v1808 = vpack.c.b16 %v1128, %v1120
    %v1809 = vpack.c.b16 %v1137, %v1129
    %v1810 = vpack.c.b16 %v1138, %v1130
    %v1811 = vpack.c.b16 %v1139, %v1131
    %v1812 = vpack.c.b16 %v1140, %v1132
    %v1813 = vpack.c.b16 %v1141, %v1133
    %v1814 = vpack.c.b16 %v1142, %v1134
    %v1815 = vpack.c.b16 %v1143, %v1135
    %v1816 = vpack.c.b16 %v1144, %v1136
    %v1817 = vpack.c.b16 %v1153, %v1145
    %v1818 = vpack.c.b16 %v1154, %v1146
    %v1819 = vpack.c.b16 %v1155, %v1147
    %v1820 = vpack.c.b16 %v1156, %v1148
    %v1821 = vpack.c.b16 %v1157, %v1149
    %v1822 = vpack.c.b16 %v1158, %v1150
    %v1823 = vpack.c.b16 %v1159, %v1151
    %v1824 = vpack.c.b16 %v1160, %v1152
    %v1825 = vpack.c.b16 %v1169, %v1161
    %v1826 = vpack.c.b16 %v1170, %v1162
    %v1827 = vpack.c.b16 %v1171, %v1163
    %v1828 = vpack.c.b16 %v1172, %v1164
    %v1829 = vpack.c.b16 %v1173, %v1165
    %v1830 = vpack.c.b16 %v1174, %v1166
    %v1831 = vpack.c.b16 %v1175, %v1167
    %v1832 = vpack.c.b16 %v1176, %v1168
    %v1833 = vpack.c.b16 %v1185, %v1177
    %v1834 = vpack.c.b16 %v1186, %v1178
    %v1835 = vpack.c.b16 %v1187, %v1179
    %v1836 = vpack.c.b16 %v1188, %v1180
    %v1837 = vpack.c.b16 %v1189, %v1181
    %v1838 = vpack.c.b16 %v1190, %v1182
    %v1839 = vpack.c.b16 %v1191, %v1183
    %v1840 = vpack.c.b16 %v1192, %v1184
    %v1841 = vpack.c.b16 %v1201, %v1193
    %v1842 = vpack.c.b16 %v1202, %v1194
    %v1843 = vpack.c.b16 %v1203, %v1195
    %v1844 = vpack.c.b16 %v1204, %v1196
    %v1845 = vpack.c.b16 %v1205, %v1197
    %v1846 = vpack.c.b16 %v1206, %v1198
    %v1847 = vpack.c.b16 %v1207, %v1199
    %v1848 = vpack.c.b16 %v1208, %v1200
    %v1849 = vpack.c.b16 %v1217, %v1209
    %v1850 = vpack.c.b16 %v1218, %v1210
    %v1851 = vpack.c.b16 %v1219, %v1211
    %v1852 = vpack.c.b16 %v1220, %v1212
    %v1853 = vpack.c.b16 %v1221, %v1213
    %v1854 = vpack.c.b16 %v1222, %v1214
    %v1855 = vpack.c.b16 %v1223, %v1215
    %v1856 = vpack.c.b16 %v1224, %v1216
    %v1857 = vpack.c.b16 %v1233, %v1225
    %v1858 = vpack.c.b16 %v1234, %v1226
    %v1859 = vpack.c.b16 %v1235, %v1227
    %v1860 = vpack.c.b16 %v1236, %v1228
    %v1861 = vpack.c.b16 %v1237, %v1229
    %v1862 = vpack.c.b16 %v1238, %v1230
    %v1863 = vpack.c.b16 %v1239, %v1231
    %v1864 = vpack.c.b16 %v1240, %v1232
    %v1865 = vpack.c.b16 %v1249, %v1241
    %v1866 = vpack.c.b16 %v1250, %v1242
    %v1867 = vpack.c.b16 %v1251, %v1243
    %v1868 = vpack.c.b16 %v1252, %v1244
    %v1869 = vpack.c.b16 %v1253, %v1245
    %v1870 = vpack.c.b16 %v1254, %v1246
    %v1871 = vpack.c.b16 %v1255, %v1247
    %v1872 = vpack.c.b16 %v1256, %v1248
    %v1873 = vpack.c.b16 %v1265, %v1257
    %v1874 = vpack.c.b16 %v1266, %v1258
    %v1875 = vpack.c.b16 %v1267, %v1259
    %v1876 = vpack.c.b16 %v1268, %v1260
    %v1877 = vpack.c.b16 %v1269, %v1261
    %v1878 = vpack.c.b16 %v1270, %v1262
    %v1879 = vpack.c.b16 %v1271, %v1263
    %v1880 = vpack.c.b16 %v1272, %v1264
    %v1881 = vpack.c.b16 %v1281, %v1273
    %v1882 = vpack.c.b16 %v1282, %v1274
    %v1883 = vpack.c.b16 %v1283, %v1275
    %v1884 = vpack.c.b16 %v1284, %v1276
    %v1885 = vpack.c.b16 %v1285, %v1277
    %v1886 = vpack.c.b16 %v1286, %v1278
    %v1887 = vpack.c.b16 %v1287, %v1279
    %v1888 = vpack.c.b16 %v1288, %v1280
    %v1889 = vpack.c.b16 %v1297, %v1289
    %v1890 = vpack.c.b16 %v1298, %v1290
    %v1891 = vpack.c.b16 %v1299, %v1291
    %v1892 = vpack.c.b16 %v1300, %v1292
    %v1893 = vpack.c.b16 %v1301, %v1293
    %v1894 = vpack.c.b16 %v1302, %v1294
    %v1895 = vpack.c.b16 %v1303, %v1295
    %v1896 = vpack.c.b16 %v1304, %v1296
    %v1897 = vpack.c.b16 %v1313, %v1305
    %v1898 = vpack.c.b16 %v1314, %v1306
    %v1899 = vpack.c.b16 %v1315, %v1307
    %v1900 = vpack.c.b16 %v1316, %v1308
    %v1901 = vpack.c.b16 %v1317, %v1309
    %v1902 = vpack.c.b16 %v1318, %v1310
    %v1903 = vpack.c.b16 %v1319, %v1311
    %v1904 = vpack.c.b16 %v1320, %v1312
    %v1905 = vpack.c.b16 %v1329, %v1321
    %v1906 = vpack.c.b16 %v1330, %v1322
    %v1907 = vpack.c.b16 %v1331, %v1323
    %v1908 = vpack.c.b16 %v1332, %v1324
    %v1909 = vpack.c.b16 %v1333, %v1325
    %v1910 = vpack.c.b16 %v1334, %v1326
    %v1911 = vpack.c.b16 %v1335, %v1327
    %v1912 = vpack.c.b16 %v1336, %v1328
    %v1913 = vpack.c.b16 %v1345, %v1337
    %v1914 = vpack.c.b16 %v1346, %v1338
    %v1915 = vpack.c.b16 %v1347, %v1339
    %v1916 = vpack.c.b16 %v1348, %v1340
    %v1917 = vpack.c.b16 %v1349, %v1341
    %v1918 = vpack.c.b16 %v1350, %v1342
    %v1919 = vpack.c.b16 %v1351, %v1343
    %v1920 = vpack.c.b16 %v1352, %v1344
    %v1921 = vpack.c.b16 %v1361, %v1353
    %v1922 = vpack.c.b16 %v1362, %v1354
    %v1923 = vpack.c.b16 %v1363, %v1355
    %v1924 = vpack.c.b16 %v1364, %v1356
    %v1925 = vpack.c.b16 %v1365, %v1357
    %v1926 = vpack.c.b16 %v1366, %v1358
    %v1927 = vpack.c.b16 %v1367, %v1359
    %v1928 = vpack.c.b16 %v1368, %v1360
    %v1929 = vpack.c.b16 %v1377, %v1369
    %v1930 = vpack.c.b16 %v1378, %v1370
    %v1931 = vpack.c.b16 %v1379, %v1371
    %v1932 = vpack.c.b16 %v1380, %v1372
    %v1933 = vpack.c.b16 %v1381, %v1373
    %v1934 = vpack.c.b16 %v1382, %v1374
    %v1935 = vpack.c.b16 %v1383, %v1375
    %v1936 = vpack.c.b16 %v1384, %v1376
    %v1937 = vpack.c.b16 %v1393, %v1385
    %v1938 = vpack.c.b16 %v1394, %v1386
    %v1939 = vpack.c.b16 %v1395, %v1387
    %v1940 = vpack.c.b16 %v1396, %v1388
    %v1941 = vpack.c.b16 %v1397, %v1389
    %v1942 = vpack.c.b16 %v1398, %v1390
    %v1943 = vpack.c.b16 %v1399, %v1391
    %v1944 = vpack.c.b16 %v1400, %v1392
    %v1945 = vpack.c.b16 %v1409, %v1401
    %v1946 = vpack.c.b16 %v1410, %v1402
    %v1947 = vpack.c.b16 %v1411, %v1403
    %v1948 = vpack.c.b16 %v1412, %v1404
    %v1949 = vpack.c.b16 %v1413, %v1405
    %v1950 = vpack.c.b16 %v1414, %v1406
    %v1951 = vpack.c.b16 %v1415, %v1407
    %v1952 = vpack.c.b16 %v1416, %v1408
    %v1953 = vpack.c.b16 %v1425, %v1417
    %v1954 = vpack.c.b16 %v1426, %v1418
    %v1955 = vpack.c.b16 %v1427, %v1419
    %v1956 = vpack.c.b16 %v1428, %v1420
    %v1957 = vpack.c.b16 %v1429, %v1421
    %v1958 = vpack.c.b16 %v1430, %v1422
    %v1959 = vpack.c.b16 %v1431, %v1423
    %v1960 = vpack.c.b16 %v1432, %v1424
    %v1961 = vpack.c.b16 %v1441, %v1433
    %v1962 = vpack.c.b16 %v1442, %v1434
    %v1963 = vpack.c.b16 %v1443, %v1435
    %v1964 = vpack.c.b16 %v1444, %v1436
    %v1965 = vpack.c.b16 %v1445, %v1437
    %v1966 = vpack.c.b16 %v1446, %v1438
    %v1967 = vpack.c.b16 %v1447, %v1439
    %v1968 = vpack.c.b16 %v1448, %v1440
    %v1969 = vpack.c.b16 %v1457, %v1449
    %v1970 = vpack.c.b16 %v1458, %v1450
    %v1971 = vpack.c.b16 %v1459, %v1451
    %v1972 = vpack.c.b16 %v1460, %v1452
    %v1973 = vpack.c.b16 %v1461, %v1453
    %v1974 = vpack.c.b16 %v1462, %v1454
    %v1975 = vpack.c.b16 %v1463, %v1455
    %v1976 = vpack.c.b16 %v1464, %v1456
    %v1977 = vpack.c.b16 %v1473, %v1465
    %v1978 = vpack.c.b16 %v1474, %v1466
    %v1979 = vpack.c.b16 %v1475, %v1467
    %v1980 = vpack.c.b16 %v1476, %v1468
    %v1981 = vpack.c.b16 %v1477, %v1469
    %v1982 = vpack.c.b16 %v1478, %v1470
    %v1983 = vpack.c.b16 %v1479, %v1471
    %v1984 = vpack.c.b16 %v1480, %v1472
    %v1985 = vpack.c.b16 %v1489, %v1481
    %v1986 = vpack.c.b16 %v1490, %v1482
    %v1987 = vpack.c.b16 %v1491, %v1483
    %v1988 = vpack.c.b16 %v1492, %v1484
    %v1989 = vpack.c.b16 %v1493, %v1485
    %v1990 = vpack.c.b16 %v1494, %v1486
    %v1991 = vpack.c.b16 %v1495, %v1487
    %v1992 = vpack.c.b16 %v1496, %v1488
    %v1993 = vpack.c.b16 %v1505, %v1497
    %v1994 = vpack.c.b16 %v1506, %v1498
    %v1995 = vpack.c.b16 %v1507, %v1499
    %v1996 = vpack.c.b16 %v1508, %v1500
    %v1997 = vpack.c.b16 %v1509, %v1501
    %v1998 = vpack.c.b16 %v1510, %v1502
    %v1999 = vpack.c.b16 %v1511, %v1503
    %v2000 = vpack.c.b16 %v1512, %v1504
    %v2001 = vpack.c.b16 %v1521, %v1513
    %v2002 = vpack.c.b16 %v1522, %v1514
    %v2003 = vpack.c.b16 %v1523, %v1515
    %v2004 = vpack.c.b16 %v1524, %v1516
    %v2005 = vpack.c.b16 %v1525, %v1517
    %v2006 = vpack.c.b16 %v1526, %v1518
    %v2007 = vpack.c.b16 %v1527, %v1519
    %v2008 = vpack.c.b16 %v1528, %v1520
    %v2009 = vpack.c.b16 %v1537, %v1529
    %v2010 = vpack.c.b16 %v1538, %v1530
    %v2011 = vpack.c.b16 %v1539, %v1531
    %v2012 = vpack.c.b16 %v1540, %v1532
    %v2013 = vpack.c.b16 %v1541, %v1533
    %v2014 = vpack.c.b16 %v1542, %v1534
    %v2015 = vpack.c.b16 %v1543, %v1535
    %v2016 = vpack.c.b16 %v1544, %v1536
    %v2017 = vpack.c.b16 %v1553, %v1545
    %v2018 = vpack.c.b16 %v1554, %v1546
    %v2019 = vpack.c.b16 %v1555, %v1547
    %v2020 = vpack.c.b16 %v1556, %v1548
    %v2021 = vpack.c.b16 %v1557, %v1549
    %v2022 = vpack.c.b16 %v1558, %v1550
    %v2023 = vpack.c.b16 %v1559, %v1551
    %v2024 = vpack.c.b16 %v1560, %v1552
    %v2025 = vpack.c.b16 %v1569, %v1561
    %v2026 = vpack.c.b16 %v1570, %v1562
    %v2027 = vpack.c.b16 %v1571, %v1563
    %v2028 = vpack.c.b16 %v1572, %v1564
    %v2029 = vpack.c.b16 %v1573, %v1565
    %v2030 = vpack.c.b16 %v1574, %v1566
    %v2031 = vpack.c.b16 %v1575, %v1567
    %v2032 = vpack.c.b16 %v1576, %v1568
    %v2033 = vpack.c.b16 %v1585, %v1577
    %v2034 = vpack.c.b16 %v1586, %v1578
    %v2035 = vpack.c.b16 %v1587, %v1579
    %v2036 = vpack.c.b16 %v1588, %v1580
    %v2037 = vpack.c.b16 %v1589, %v1581
    %v2038 = vpack.c.b16 %v1590, %v1582
    %v2039 = vpack.c.b16 %v1591, %v1583
    %v2040 = vpack.c.b16 %v1592, %v1584
    %v2041 = vpack.c.b16 %v1601, %v1593
    %v2042 = vpack.c.b16 %v1602, %v1594
    %v2043 = vpack.c.b16 %v1603, %v1595
    %v2044 = vpack.c.b16 %v1604, %v1596
    %v2045 = vpack.c.b16 %v1605, %v1597
    %v2046 = vpack.c.b16 %v1606, %v1598
    %v2047 = vpack.c.b16 %v1607, %v1599
    %v2048 = vpack.c.b16 %v1608, %v1600
    %v2049 = vpack.c.b16 %v1617, %v1609
    %v2050 = vpack.c.b16 %v1618, %v1610
    %v2051 = vpack.c.b16 %v1619, %v1611
    %v2052 = vpack.c.b16 %v1620, %v1612
    %v2053 = vpack.c.b16 %v1621, %v1613
    %v2054 = vpack.c.b16 %v1622, %v1614
    %v2055 = vpack.c.b16 %v1623, %v1615
    %v2056 = vpack.c.b16 %v1624, %v1616
    %v2057 = vpack.c.b16 %v1633, %v1625
    %v2058 = vpack.c.b16 %v1634, %v1626
    %v2059 = vpack.c.b16 %v1635, %v1627
    %v2060 = vpack.c.b16 %v1636, %v1628
    %v2061 = vpack.c.b16 %v1637, %v1629
    %v2062 = vpack.c.b16 %v1638, %v1630
    %v2063 = vpack.c.b16 %v1639, %v1631
    %v2064 = vpack.c.b16 %v1640, %v1632
    %v2065 = vpack.c.b16 %v1649, %v1641
    %v2066 = vpack.c.b16 %v1650, %v1642
    %v2067 = vpack.c.b16 %v1651, %v1643
    %v2068 = vpack.c.b16 %v1652, %v1644
    %v2069 = vpack.c.b16 %v1653, %v1645
    %v2070 = vpack.c.b16 %v1654, %v1646
    %v2071 = vpack.c.b16 %v1655, %v1647
    %v2072 = vpack.c.b16 %v1656, %v1648
    %v2073 = vpack.c.b16 %v1665, %v1657
    %v2074 = vpack.c.b16 %v1666, %v1658
    %v2075 = vpack.c.b16 %v1667, %v1659
    %v2076 = vpack.c.b16 %v1668, %v1660
    %v2077 = vpack.c.b16 %v1669, %v1661
    %v2078 = vpack.c.b16 %v1670, %v1662
    %v2079 = vpack.c.b16 %v1671, %v1663
    %v2080 = vpack.c.b16 %v1672, %v1664
    %v2081 = vpack.c.b16 %v1681, %v1673
    %v2082 = vpack.c.b16 %v1682, %v1674
    %v2083 = vpack.c.b16 %v1683, %v1675
    %v2084 = vpack.c.b16 %v1684, %v1676
    %v2085 = vpack.c.b16 %v1685, %v1677
    %v2086 = vpack.c.b16 %v1686, %v1678
    %v2087 = vpack.c.b16 %v1687, %v1679
    %v2088 = vpack.c.b16 %v1688, %v1680
    %v2089 = vpack.c.b16 %v1697, %v1689
    %v2090 = vpack.c.b16 %v1698, %v1690
    %v2091 = vpack.c.b16 %v1699, %v1691
    %v2092 = vpack.c.b16 %v1700, %v1692
    %v2093 = vpack.c.b16 %v1701, %v1693
    %v2094 = vpack.c.b16 %v1702, %v1694
    %v2095 = vpack.c.b16 %v1703, %v1695
    %v2096 = vpack.c.b16 %v1704, %v1696
    %vm2489 = vcmask 130048
    %v2491 = vsel %vm2489, %v94, 0
    %2493 = vmatprep.subr.bf16.mxu0 %v1762
    %2494 = vmatpush1.bf16.msra.mxu0 %v1761
    %2495 = vmatprep.subr.bf16.mxu0 %v1754
    %2496 = vmatpush1.bf16.msra.mxu0 %v1753
    %2497 = vmatprep.subr.bf16.mxu0 %v1746
    %2498 = vmatpush1.bf16.msra.mxu0 %v1745
    %2499 = vmatprep.subr.bf16.mxu0 %v1738
    %2500 = vmatpush1.bf16.msra.mxu0 %v1737
    %2501 = vmatprep.subr.bf16.mxu0 %v1730
    %2502 = vmatpush1.bf16.msra.mxu0 %v1729
    %2503 = vmatprep.subr.bf16.mxu0 %v1722
    %2504 = vmatpush1.bf16.msra.mxu0 %v1721
    %2505 = vmatprep.subr.bf16.mxu0 %v1714
    %2506 = vmatpush1.bf16.msra.mxu0 %v1713
    %2507 = vmatprep.subr.bf16.mxu0 %v1706
    %2508 = vmatpush1.bf16.msra.mxu0 %v1705
    %2509 = vmatprep.subr.bf16.mxu0 %v1826
    %2510 = vmatpush2.bf16.msra.mxu0 %v1825
    %2511 = vmatprep.subr.bf16.mxu0 %v1818
    %2512 = vmatpush2.bf16.msra.mxu0 %v1817
    %2513 = vmatprep.subr.bf16.mxu0 %v1810
    %2514 = vmatpush2.bf16.msra.mxu0 %v1809
    %2515 = vmatprep.subr.bf16.mxu0 %v1802
    %2516 = vmatpush2.bf16.msra.mxu0 %v1801
    %2517 = vmatprep.subr.bf16.mxu0 %v1794
    %2518 = vmatpush2.bf16.msra.mxu0 %v1793
    %2519 = vmatprep.subr.bf16.mxu0 %v1786
    %2520 = vmatpush2.bf16.msra.mxu0 %v1785
    %2521 = vmatprep.subr.bf16.mxu0 %v1778
    %2522 = vmatpush2.bf16.msra.mxu0 %v1777
    %2523 = vmatprep.subr.bf16.mxu0 %v1770
    %2524 = vmatpush2.bf16.msra.mxu0 %v1769
    %2525 = vmatprep.mubr.bf16.mxu0 %v89
    %2526 = vmatmul.mubr.bf16.gmra.mxu0 %v88
    %v2527 = vpop.f32.mrf.mxu0
    %v2528 = vadd.f32 %v492, %v2527
    %v2529 = vpop.f32.mrf.mxu0
    %v2530 = vadd.f32 %v496, %v2529
    %v2531 = vpop.f32.mrf.mxu0
    %v2532 = vadd.f32 %v492, %v2531
    %v2533 = vpop.f32.mrf.mxu0
    %v2534 = vadd.f32 %v496, %v2533
    %2535 = vdwg.mxu0
    %2536 = vmatprep.subr.bf16.mxu0 %v1890
    %2537 = vmatpush1.bf16.msra.mxu0 %v1889
    %2538 = vmatprep.subr.bf16.mxu0 %v1882
    %2539 = vmatpush1.bf16.msra.mxu0 %v1881
    %2540 = vmatprep.subr.bf16.mxu0 %v1874
    %2541 = vmatpush1.bf16.msra.mxu0 %v1873
    %2542 = vmatprep.subr.bf16.mxu0 %v1866
    %2543 = vmatpush1.bf16.msra.mxu0 %v1865
    %2544 = vmatprep.subr.bf16.mxu0 %v1858
    %2545 = vmatpush1.bf16.msra.mxu0 %v1857
    %2546 = vmatprep.subr.bf16.mxu0 %v1850
    %2547 = vmatpush1.bf16.msra.mxu0 %v1849
    %2548 = vmatprep.subr.bf16.mxu0 %v1842
    %2549 = vmatpush1.bf16.msra.mxu0 %v1841
    %2550 = vmatprep.subr.bf16.mxu0 %v1834
    %2551 = vmatpush1.bf16.msra.mxu0 %v1833
    %2552 = vmatprep.subr.bf16.mxu0 %v1954
    %2553 = vmatpush2.bf16.msra.mxu0 %v1953
    %2554 = vmatprep.subr.bf16.mxu0 %v1946
    %2555 = vmatpush2.bf16.msra.mxu0 %v1945
    %2556 = vmatprep.subr.bf16.mxu0 %v1938
    %2557 = vmatpush2.bf16.msra.mxu0 %v1937
    %2558 = vmatprep.subr.bf16.mxu0 %v1930
    %2559 = vmatpush2.bf16.msra.mxu0 %v1929
    %2560 = vmatprep.subr.bf16.mxu0 %v1922
    %2561 = vmatpush2.bf16.msra.mxu0 %v1921
    %2562 = vmatprep.subr.bf16.mxu0 %v1914
    %2563 = vmatpush2.bf16.msra.mxu0 %v1913
    %2564 = vmatprep.subr.bf16.mxu0 %v1906
    %2565 = vmatpush2.bf16.msra.mxu0 %v1905
    %2566 = vmatprep.subr.bf16.mxu0 %v1898
    %2567 = vmatpush2.bf16.msra.mxu0 %v1897
    %2568 = vmatprep.mubr.bf16.mxu0 %v91
    %2569 = vmatmul.mubr.bf16.gmra.mxu0 %v90
    %v2570 = vpop.f32.mrf.mxu0
    %v2571 = vadd.f32 %v2528, %v2570
    %v2572 = vpop.f32.mrf.mxu0
    %v2573 = vadd.f32 %v2530, %v2572
    %v2574 = vpop.f32.mrf.mxu0
    %v2575 = vadd.f32 %v2532, %v2574
    %v2576 = vpop.f32.mrf.mxu0
    %v2577 = vadd.f32 %v2534, %v2576
    %2578 = vdwg.mxu0
    %2579 = vmatprep.subr.bf16.mxu0 %v2018
    %2580 = vmatpush1.bf16.msra.mxu0 %v2017
    %2581 = vmatprep.subr.bf16.mxu0 %v2010
    %2582 = vmatpush1.bf16.msra.mxu0 %v2009
    %2583 = vmatprep.subr.bf16.mxu0 %v2002
    %2584 = vmatpush1.bf16.msra.mxu0 %v2001
    %2585 = vmatprep.subr.bf16.mxu0 %v1994
    %2586 = vmatpush1.bf16.msra.mxu0 %v1993
    %2587 = vmatprep.subr.bf16.mxu0 %v1986
    %2588 = vmatpush1.bf16.msra.mxu0 %v1985
    %2589 = vmatprep.subr.bf16.mxu0 %v1978
    %2590 = vmatpush1.bf16.msra.mxu0 %v1977
    %2591 = vmatprep.subr.bf16.mxu0 %v1970
    %2592 = vmatpush1.bf16.msra.mxu0 %v1969
    %2593 = vmatprep.subr.bf16.mxu0 %v1962
    %2594 = vmatpush1.bf16.msra.mxu0 %v1961
    %2595 = vmatprep.subr.bf16.mxu0 %v2082
    %2596 = vmatpush2.bf16.msra.mxu0 %v2081
    %2597 = vmatprep.subr.bf16.mxu0 %v2074
    %2598 = vmatpush2.bf16.msra.mxu0 %v2073
    %2599 = vmatprep.subr.bf16.mxu0 %v2066
    %2600 = vmatpush2.bf16.msra.mxu0 %v2065
    %2601 = vmatprep.subr.bf16.mxu0 %v2058
    %2602 = vmatpush2.bf16.msra.mxu0 %v2057
    %2603 = vmatprep.subr.bf16.mxu0 %v2050
    %2604 = vmatpush2.bf16.msra.mxu0 %v2049
    %2605 = vmatprep.subr.bf16.mxu0 %v2042
    %2606 = vmatpush2.bf16.msra.mxu0 %v2041
    %2607 = vmatprep.subr.bf16.mxu0 %v2034
    %2608 = vmatpush2.bf16.msra.mxu0 %v2033
    %2609 = vmatprep.subr.bf16.mxu0 %v2026
    %2610 = vmatpush2.bf16.msra.mxu0 %v2025
    %2611 = vmatprep.mubr.bf16.mxu0 %v93
    %2612 = vmatmul.mubr.bf16.gmra.mxu0 %v92
    %v2613 = vpop.f32.mrf.mxu0
    %v2614 = vadd.f32 %v2571, %v2613
    %v2615 = vpop.f32.mrf.mxu0
    %v2616 = vadd.f32 %v2573, %v2615
    %v2617 = vpop.f32.mrf.mxu0
    %v2618 = vadd.f32 %v2575, %v2617
    %v2619 = vpop.f32.mrf.mxu0
    %v2620 = vadd.f32 %v2577, %v2619
    %2621 = vdwg.mxu0
    %2622 = vmatprep.subr.bf16.mxu0 0
    %2623 = vmatpush1.bf16.msra.mxu0 0
    %2624 = vmatprep.subr.bf16.mxu0 0
    %2625 = vmatpush1.bf16.msra.mxu0 0
    %2626 = vmatprep.subr.bf16.mxu0 0
    %2627 = vmatpush1.bf16.msra.mxu0 0
    %2628 = vmatprep.subr.bf16.mxu0 0
    %2629 = vmatpush1.bf16.msra.mxu0 0
    %2630 = vmatprep.subr.bf16.mxu0 0
    %2631 = vmatpush1.bf16.msra.mxu0 0
    %2632 = vmatprep.subr.bf16.mxu0 0
    %2633 = vmatpush1.bf16.msra.mxu0 0
    %2634 = vmatprep.subr.bf16.mxu0 0
    %2635 = vmatpush1.bf16.msra.mxu0 0
    %2636 = vmatprep.subr.bf16.mxu0 %v2090
    %2637 = vmatpush1.bf16.msra.mxu0 %v2089
    %2638 = vmatprep.subr.bf16.mxu0 0
    %2639 = vmatpush2.bf16.msra.mxu0 0
    %2640 = vmatprep.subr.bf16.mxu0 0
    %2641 = vmatpush2.bf16.msra.mxu0 0
    %2642 = vmatprep.subr.bf16.mxu0 0
    %2643 = vmatpush2.bf16.msra.mxu0 0
    %2644 = vmatprep.subr.bf16.mxu0 0
    %2645 = vmatpush2.bf16.msra.mxu0 0
    %2646 = vmatprep.subr.bf16.mxu0 0
    %2647 = vmatpush2.bf16.msra.mxu0 0
    %2648 = vmatprep.subr.bf16.mxu0 0
    %2649 = vmatpush2.bf16.msra.mxu0 0
    %2650 = vmatprep.subr.bf16.mxu0 0
    %2651 = vmatpush2.bf16.msra.mxu0 0
    %2652 = vmatprep.subr.bf16.mxu0 0
    %2653 = vmatpush2.bf16.msra.mxu0 0
    %2654 = vmatprep.mubr.bf16.mxu0 0
    %2655 = vmatmul.mubr.bf16.gmra.mxu0 %v2491
    %v2656 = vpop.f32.mrf.mxu0
    %v2657 = vadd.f32 %v2614, %v2656
    %v2658 = vpop.f32.mrf.mxu0
    %v2659 = vadd.f32 %v2616, %v2658
    %v2660 = vpop.f32.mrf.mxu0
    %v2661 = vadd.f32 %v2618, %v2660
    %v2662 = vpop.f32.mrf.mxu0
    %v2663 = vadd.f32 %v2620, %v2662
    %2664 = vdwg.mxu0
    %2665 = vmatprep.subr.bf16.mxu0 %v1764
    %2666 = vmatpush1.bf16.msra.mxu0 %v1763
    %2667 = vmatprep.subr.bf16.mxu0 %v1756
    %2668 = vmatpush1.bf16.msra.mxu0 %v1755
    %2669 = vmatprep.subr.bf16.mxu0 %v1748
    %2670 = vmatpush1.bf16.msra.mxu0 %v1747
    %2671 = vmatprep.subr.bf16.mxu0 %v1740
    %2672 = vmatpush1.bf16.msra.mxu0 %v1739
    %2673 = vmatprep.subr.bf16.mxu0 %v1732
    %2674 = vmatpush1.bf16.msra.mxu0 %v1731
    %2675 = vmatprep.subr.bf16.mxu0 %v1724
    %2676 = vmatpush1.bf16.msra.mxu0 %v1723
    %2677 = vmatprep.subr.bf16.mxu0 %v1716
    %2678 = vmatpush1.bf16.msra.mxu0 %v1715
    %2679 = vmatprep.subr.bf16.mxu0 %v1708
    %2680 = vmatpush1.bf16.msra.mxu0 %v1707
    %2681 = vmatprep.subr.bf16.mxu0 %v1828
    %2682 = vmatpush2.bf16.msra.mxu0 %v1827
    %2683 = vmatprep.subr.bf16.mxu0 %v1820
    %2684 = vmatpush2.bf16.msra.mxu0 %v1819
    %2685 = vmatprep.subr.bf16.mxu0 %v1812
    %2686 = vmatpush2.bf16.msra.mxu0 %v1811
    %2687 = vmatprep.subr.bf16.mxu0 %v1804
    %2688 = vmatpush2.bf16.msra.mxu0 %v1803
    %2689 = vmatprep.subr.bf16.mxu0 %v1796
    %2690 = vmatpush2.bf16.msra.mxu0 %v1795
    %2691 = vmatprep.subr.bf16.mxu0 %v1788
    %2692 = vmatpush2.bf16.msra.mxu0 %v1787
    %2693 = vmatprep.subr.bf16.mxu0 %v1780
    %2694 = vmatpush2.bf16.msra.mxu0 %v1779
    %2695 = vmatprep.subr.bf16.mxu0 %v1772
    %2696 = vmatpush2.bf16.msra.mxu0 %v1771
    %2697 = vmatprep.mubr.bf16.mxu0 %v89
    %2698 = vmatmul.mubr.bf16.gmra.mxu0 %v88
    %v2699 = vpop.f32.mrf.mxu0
    %v2700 = vadd.f32 %v500, %v2699
    %v2701 = vpop.f32.mrf.mxu0
    %v2702 = vadd.f32 %v504, %v2701
    %v2703 = vpop.f32.mrf.mxu0
    %v2704 = vadd.f32 %v500, %v2703
    %v2705 = vpop.f32.mrf.mxu0
    %v2706 = vadd.f32 %v504, %v2705
    %2707 = vdwg.mxu0
    %2708 = vmatprep.subr.bf16.mxu0 %v1892
    %2709 = vmatpush1.bf16.msra.mxu0 %v1891
    %2710 = vmatprep.subr.bf16.mxu0 %v1884
    %2711 = vmatpush1.bf16.msra.mxu0 %v1883
    %2712 = vmatprep.subr.bf16.mxu0 %v1876
    %2713 = vmatpush1.bf16.msra.mxu0 %v1875
    %2714 = vmatprep.subr.bf16.mxu0 %v1868
    %2715 = vmatpush1.bf16.msra.mxu0 %v1867
    %2716 = vmatprep.subr.bf16.mxu0 %v1860
    %2717 = vmatpush1.bf16.msra.mxu0 %v1859
    %2718 = vmatprep.subr.bf16.mxu0 %v1852
    %2719 = vmatpush1.bf16.msra.mxu0 %v1851
    %2720 = vmatprep.subr.bf16.mxu0 %v1844
    %2721 = vmatpush1.bf16.msra.mxu0 %v1843
    %2722 = vmatprep.subr.bf16.mxu0 %v1836
    %2723 = vmatpush1.bf16.msra.mxu0 %v1835
    %2724 = vmatprep.subr.bf16.mxu0 %v1956
    %2725 = vmatpush2.bf16.msra.mxu0 %v1955
    %2726 = vmatprep.subr.bf16.mxu0 %v1948
    %2727 = vmatpush2.bf16.msra.mxu0 %v1947
    %2728 = vmatprep.subr.bf16.mxu0 %v1940
    %2729 = vmatpush2.bf16.msra.mxu0 %v1939
    %2730 = vmatprep.subr.bf16.mxu0 %v1932
    %2731 = vmatpush2.bf16.msra.mxu0 %v1931
    %2732 = vmatprep.subr.bf16.mxu0 %v1924
    %2733 = vmatpush2.bf16.msra.mxu0 %v1923
    %2734 = vmatprep.subr.bf16.mxu0 %v1916
    %2735 = vmatpush2.bf16.msra.mxu0 %v1915
    %2736 = vmatprep.subr.bf16.mxu0 %v1908
    %2737 = vmatpush2.bf16.msra.mxu0 %v1907
    %2738 = vmatprep.subr.bf16.mxu0 %v1900
    %2739 = vmatpush2.bf16.msra.mxu0 %v1899
    %2740 = vmatprep.mubr.bf16.mxu0 %v91
    %2741 = vmatmul.mubr.bf16.gmra.mxu0 %v90
    %v2742 = vpop.f32.mrf.mxu0
    %v2743 = vadd.f32 %v2700, %v2742
    %v2744 = vpop.f32.mrf.mxu0
    %v2745 = vadd.f32 %v2702, %v2744
    %v2746 = vpop.f32.mrf.mxu0
    %v2747 = vadd.f32 %v2704, %v2746
    %v2748 = vpop.f32.mrf.mxu0
    %v2749 = vadd.f32 %v2706, %v2748
    %2750 = vdwg.mxu0
    %2751 = vmatprep.subr.bf16.mxu0 %v2020
    %2752 = vmatpush1.bf16.msra.mxu0 %v2019
    %2753 = vmatprep.subr.bf16.mxu0 %v2012
    %2754 = vmatpush1.bf16.msra.mxu0 %v2011
    %2755 = vmatprep.subr.bf16.mxu0 %v2004
    %2756 = vmatpush1.bf16.msra.mxu0 %v2003
    %2757 = vmatprep.subr.bf16.mxu0 %v1996
    %2758 = vmatpush1.bf16.msra.mxu0 %v1995
    %2759 = vmatprep.subr.bf16.mxu0 %v1988
    %2760 = vmatpush1.bf16.msra.mxu0 %v1987
    %2761 = vmatprep.subr.bf16.mxu0 %v1980
    %2762 = vmatpush1.bf16.msra.mxu0 %v1979
    %2763 = vmatprep.subr.bf16.mxu0 %v1972
    %2764 = vmatpush1.bf16.msra.mxu0 %v1971
    %2765 = vmatprep.subr.bf16.mxu0 %v1964
    %2766 = vmatpush1.bf16.msra.mxu0 %v1963
    %2767 = vmatprep.subr.bf16.mxu0 %v2084
    %2768 = vmatpush2.bf16.msra.mxu0 %v2083
    %2769 = vmatprep.subr.bf16.mxu0 %v2076
    %2770 = vmatpush2.bf16.msra.mxu0 %v2075
    %2771 = vmatprep.subr.bf16.mxu0 %v2068
    %2772 = vmatpush2.bf16.msra.mxu0 %v2067
    %2773 = vmatprep.subr.bf16.mxu0 %v2060
    %2774 = vmatpush2.bf16.msra.mxu0 %v2059
    %2775 = vmatprep.subr.bf16.mxu0 %v2052
    %2776 = vmatpush2.bf16.msra.mxu0 %v2051
    %2777 = vmatprep.subr.bf16.mxu0 %v2044
    %2778 = vmatpush2.bf16.msra.mxu0 %v2043
    %2779 = vmatprep.subr.bf16.mxu0 %v2036
    %2780 = vmatpush2.bf16.msra.mxu0 %v2035
    %2781 = vmatprep.subr.bf16.mxu0 %v2028
    %2782 = vmatpush2.bf16.msra.mxu0 %v2027
    %2783 = vmatprep.mubr.bf16.mxu0 %v93
    %2784 = vmatmul.mubr.bf16.gmra.mxu0 %v92
    %v2785 = vpop.f32.mrf.mxu0
    %v2786 = vadd.f32 %v2743, %v2785
    %v2787 = vpop.f32.mrf.mxu0
    %v2788 = vadd.f32 %v2745, %v2787
    %v2789 = vpop.f32.mrf.mxu0
    %v2790 = vadd.f32 %v2747, %v2789
    %v2791 = vpop.f32.mrf.mxu0
    %v2792 = vadd.f32 %v2749, %v2791
    %2793 = vdwg.mxu0
    %2794 = vmatprep.subr.bf16.mxu0 0
    %2795 = vmatpush1.bf16.msra.mxu0 0
    %2796 = vmatprep.subr.bf16.mxu0 0
    %2797 = vmatpush1.bf16.msra.mxu0 0
    %2798 = vmatprep.subr.bf16.mxu0 0
    %2799 = vmatpush1.bf16.msra.mxu0 0
    %2800 = vmatprep.subr.bf16.mxu0 0
    %2801 = vmatpush1.bf16.msra.mxu0 0
    %2802 = vmatprep.subr.bf16.mxu0 0
    %2803 = vmatpush1.bf16.msra.mxu0 0
    %2804 = vmatprep.subr.bf16.mxu0 0
    %2805 = vmatpush1.bf16.msra.mxu0 0
    %2806 = vmatprep.subr.bf16.mxu0 0
    %2807 = vmatpush1.bf16.msra.mxu0 0
    %2808 = vmatprep.subr.bf16.mxu0 %v2092
    %2809 = vmatpush1.bf16.msra.mxu0 %v2091
    %2810 = vmatprep.subr.bf16.mxu0 0
    %2811 = vmatpush2.bf16.msra.mxu0 0
    %2812 = vmatprep.subr.bf16.mxu0 0
    %2813 = vmatpush2.bf16.msra.mxu0 0
    %2814 = vmatprep.subr.bf16.mxu0 0
    %2815 = vmatpush2.bf16.msra.mxu0 0
    %2816 = vmatprep.subr.bf16.mxu0 0
    %2817 = vmatpush2.bf16.msra.mxu0 0
    %2818 = vmatprep.subr.bf16.mxu0 0
    %2819 = vmatpush2.bf16.msra.mxu0 0
    %2820 = vmatprep.subr.bf16.mxu0 0
    %2821 = vmatpush2.bf16.msra.mxu0 0
    %2822 = vmatprep.subr.bf16.mxu0 0
    %2823 = vmatpush2.bf16.msra.mxu0 0
    %2824 = vmatprep.subr.bf16.mxu0 0
    %2825 = vmatpush2.bf16.msra.mxu0 0
    %2826 = vmatprep.mubr.bf16.mxu0 0
    %2827 = vmatmul.mubr.bf16.gmra.mxu0 %v2491
    %v2828 = vpop.f32.mrf.mxu0
    %v2829 = vadd.f32 %v2786, %v2828
    %v2830 = vpop.f32.mrf.mxu0
    %v2831 = vadd.f32 %v2788, %v2830
    %v2832 = vpop.f32.mrf.mxu0
    %v2833 = vadd.f32 %v2790, %v2832
    %v2834 = vpop.f32.mrf.mxu0
    %v2835 = vadd.f32 %v2792, %v2834
    %2836 = vdwg.mxu0
    %2837 = vmatprep.subr.bf16.mxu0 %v1766
    %2838 = vmatpush1.bf16.msra.mxu0 %v1765
    %2839 = vmatprep.subr.bf16.mxu0 %v1758
    %2840 = vmatpush1.bf16.msra.mxu0 %v1757
    %2841 = vmatprep.subr.bf16.mxu0 %v1750
    %2842 = vmatpush1.bf16.msra.mxu0 %v1749
    %2843 = vmatprep.subr.bf16.mxu0 %v1742
    %2844 = vmatpush1.bf16.msra.mxu0 %v1741
    %2845 = vmatprep.subr.bf16.mxu0 %v1734
    %2846 = vmatpush1.bf16.msra.mxu0 %v1733
    %2847 = vmatprep.subr.bf16.mxu0 %v1726
    %2848 = vmatpush1.bf16.msra.mxu0 %v1725
    %2849 = vmatprep.subr.bf16.mxu0 %v1718
    %2850 = vmatpush1.bf16.msra.mxu0 %v1717
    %2851 = vmatprep.subr.bf16.mxu0 %v1710
    %2852 = vmatpush1.bf16.msra.mxu0 %v1709
    %2853 = vmatprep.subr.bf16.mxu0 %v1830
    %2854 = vmatpush2.bf16.msra.mxu0 %v1829
    %2855 = vmatprep.subr.bf16.mxu0 %v1822
    %2856 = vmatpush2.bf16.msra.mxu0 %v1821
    %2857 = vmatprep.subr.bf16.mxu0 %v1814
    %2858 = vmatpush2.bf16.msra.mxu0 %v1813
    %2859 = vmatprep.subr.bf16.mxu0 %v1806
    %2860 = vmatpush2.bf16.msra.mxu0 %v1805
    %2861 = vmatprep.subr.bf16.mxu0 %v1798
    %2862 = vmatpush2.bf16.msra.mxu0 %v1797
    %2863 = vmatprep.subr.bf16.mxu0 %v1790
    %2864 = vmatpush2.bf16.msra.mxu0 %v1789
    %2865 = vmatprep.subr.bf16.mxu0 %v1782
    %2866 = vmatpush2.bf16.msra.mxu0 %v1781
    %2867 = vmatprep.subr.bf16.mxu0 %v1774
    %2868 = vmatpush2.bf16.msra.mxu0 %v1773
    %2869 = vmatprep.mubr.bf16.mxu0 %v89
    %2870 = vmatmul.mubr.bf16.gmra.mxu0 %v88
    %v2871 = vpop.f32.mrf.mxu0
    %v2872 = vadd.f32 %v508, %v2871
    %v2873 = vpop.f32.mrf.mxu0
    %v2874 = vadd.f32 %v512, %v2873
    %v2875 = vpop.f32.mrf.mxu0
    %v2876 = vadd.f32 %v508, %v2875
    %v2877 = vpop.f32.mrf.mxu0
    %v2878 = vadd.f32 %v512, %v2877
    %2879 = vdwg.mxu0
    %2880 = vmatprep.subr.bf16.mxu0 %v1894
    %2881 = vmatpush1.bf16.msra.mxu0 %v1893
    %2882 = vmatprep.subr.bf16.mxu0 %v1886
    %2883 = vmatpush1.bf16.msra.mxu0 %v1885
    %2884 = vmatprep.subr.bf16.mxu0 %v1878
    %2885 = vmatpush1.bf16.msra.mxu0 %v1877
    %2886 = vmatprep.subr.bf16.mxu0 %v1870
    %2887 = vmatpush1.bf16.msra.mxu0 %v1869
    %2888 = vmatprep.subr.bf16.mxu0 %v1862
    %2889 = vmatpush1.bf16.msra.mxu0 %v1861
    %2890 = vmatprep.subr.bf16.mxu0 %v1854
    %2891 = vmatpush1.bf16.msra.mxu0 %v1853
    %2892 = vmatprep.subr.bf16.mxu0 %v1846
    %2893 = vmatpush1.bf16.msra.mxu0 %v1845
    %2894 = vmatprep.subr.bf16.mxu0 %v1838
    %2895 = vmatpush1.bf16.msra.mxu0 %v1837
    %2896 = vmatprep.subr.bf16.mxu0 %v1958
    %2897 = vmatpush2.bf16.msra.mxu0 %v1957
    %2898 = vmatprep.subr.bf16.mxu0 %v1950
    %2899 = vmatpush2.bf16.msra.mxu0 %v1949
    %2900 = vmatprep.subr.bf16.mxu0 %v1942
    %2901 = vmatpush2.bf16.msra.mxu0 %v1941
    %2902 = vmatprep.subr.bf16.mxu0 %v1934
    %2903 = vmatpush2.bf16.msra.mxu0 %v1933
    %2904 = vmatprep.subr.bf16.mxu0 %v1926
    %2905 = vmatpush2.bf16.msra.mxu0 %v1925
    %2906 = vmatprep.subr.bf16.mxu0 %v1918
    %2907 = vmatpush2.bf16.msra.mxu0 %v1917
    %2908 = vmatprep.subr.bf16.mxu0 %v1910
    %2909 = vmatpush2.bf16.msra.mxu0 %v1909
    %2910 = vmatprep.subr.bf16.mxu0 %v1902
    %2911 = vmatpush2.bf16.msra.mxu0 %v1901
    %2912 = vmatprep.mubr.bf16.mxu0 %v91
    %2913 = vmatmul.mubr.bf16.gmra.mxu0 %v90
    %v2914 = vpop.f32.mrf.mxu0
    %v2915 = vadd.f32 %v2872, %v2914
    %v2916 = vpop.f32.mrf.mxu0
    %v2917 = vadd.f32 %v2874, %v2916
    %v2918 = vpop.f32.mrf.mxu0
    %v2919 = vadd.f32 %v2876, %v2918
    %v2920 = vpop.f32.mrf.mxu0
    %v2921 = vadd.f32 %v2878, %v2920
    %2922 = vdwg.mxu0
    %2923 = vmatprep.subr.bf16.mxu0 %v2022
    %2924 = vmatpush1.bf16.msra.mxu0 %v2021
    %2925 = vmatprep.subr.bf16.mxu0 %v2014
    %2926 = vmatpush1.bf16.msra.mxu0 %v2013
    %2927 = vmatprep.subr.bf16.mxu0 %v2006
    %2928 = vmatpush1.bf16.msra.mxu0 %v2005
    %2929 = vmatprep.subr.bf16.mxu0 %v1998
    %2930 = vmatpush1.bf16.msra.mxu0 %v1997
    %2931 = vmatprep.subr.bf16.mxu0 %v1990
    %2932 = vmatpush1.bf16.msra.mxu0 %v1989
    %2933 = vmatprep.subr.bf16.mxu0 %v1982
    %2934 = vmatpush1.bf16.msra.mxu0 %v1981
    %2935 = vmatprep.subr.bf16.mxu0 %v1974
    %2936 = vmatpush1.bf16.msra.mxu0 %v1973
    %2937 = vmatprep.subr.bf16.mxu0 %v1966
    %2938 = vmatpush1.bf16.msra.mxu0 %v1965
    %2939 = vmatprep.subr.bf16.mxu0 %v2086
    %2940 = vmatpush2.bf16.msra.mxu0 %v2085
    %2941 = vmatprep.subr.bf16.mxu0 %v2078
    %2942 = vmatpush2.bf16.msra.mxu0 %v2077
    %2943 = vmatprep.subr.bf16.mxu0 %v2070
    %2944 = vmatpush2.bf16.msra.mxu0 %v2069
    %2945 = vmatprep.subr.bf16.mxu0 %v2062
    %2946 = vmatpush2.bf16.msra.mxu0 %v2061
    %2947 = vmatprep.subr.bf16.mxu0 %v2054
    %2948 = vmatpush2.bf16.msra.mxu0 %v2053
    %2949 = vmatprep.subr.bf16.mxu0 %v2046
    %2950 = vmatpush2.bf16.msra.mxu0 %v2045
    %2951 = vmatprep.subr.bf16.mxu0 %v2038
    %2952 = vmatpush2.bf16.msra.mxu0 %v2037
    %2953 = vmatprep.subr.bf16.mxu0 %v2030
    %2954 = vmatpush2.bf16.msra.mxu0 %v2029
    %2955 = vmatprep.mubr.bf16.mxu0 %v93
    %2956 = vmatmul.mubr.bf16.gmra.mxu0 %v92
    %v2957 = vpop.f32.mrf.mxu0
    %v2958 = vadd.f32 %v2915, %v2957
    %v2959 = vpop.f32.mrf.mxu0
    %v2960 = vadd.f32 %v2917, %v2959
    %v2961 = vpop.f32.mrf.mxu0
    %v2962 = vadd.f32 %v2919, %v2961
    %v2963 = vpop.f32.mrf.mxu0
    %v2964 = vadd.f32 %v2921, %v2963
    %2965 = vdwg.mxu0
    %2966 = vmatprep.subr.bf16.mxu0 0
    %2967 = vmatpush1.bf16.msra.mxu0 0
    %2968 = vmatprep.subr.bf16.mxu0 0
    %2969 = vmatpush1.bf16.msra.mxu0 0
    %2970 = vmatprep.subr.bf16.mxu0 0
    %2971 = vmatpush1.bf16.msra.mxu0 0
    %2972 = vmatprep.subr.bf16.mxu0 0
    %2973 = vmatpush1.bf16.msra.mxu0 0
    %2974 = vmatprep.subr.bf16.mxu0 0
    %2975 = vmatpush1.bf16.msra.mxu0 0
    %2976 = vmatprep.subr.bf16.mxu0 0
    %2977 = vmatpush1.bf16.msra.mxu0 0
    %2978 = vmatprep.subr.bf16.mxu0 0
    %2979 = vmatpush1.bf16.msra.mxu0 0
    %2980 = vmatprep.subr.bf16.mxu0 %v2094
    %2981 = vmatpush1.bf16.msra.mxu0 %v2093
    %2982 = vmatprep.subr.bf16.mxu0 0
    %2983 = vmatpush2.bf16.msra.mxu0 0
    %2984 = vmatprep.subr.bf16.mxu0 0
    %2985 = vmatpush2.bf16.msra.mxu0 0
    %2986 = vmatprep.subr.bf16.mxu0 0
    %2987 = vmatpush2.bf16.msra.mxu0 0
    %2988 = vmatprep.subr.bf16.mxu0 0
    %2989 = vmatpush2.bf16.msra.mxu0 0
    %2990 = vmatprep.subr.bf16.mxu0 0
    %2991 = vmatpush2.bf16.msra.mxu0 0
    %2992 = vmatprep.subr.bf16.mxu0 0
    %2993 = vmatpush2.bf16.msra.mxu0 0
    %2994 = vmatprep.subr.bf16.mxu0 0
    %2995 = vmatpush2.bf16.msra.mxu0 0
    %2996 = vmatprep.subr.bf16.mxu0 0
    %2997 = vmatpush2.bf16.msra.mxu0 0
    %2998 = vmatprep.mubr.bf16.mxu0 0
    %2999 = vmatmul.mubr.bf16.gmra.mxu0 %v2491
    %v3000 = vpop.f32.mrf.mxu0
    %v3001 = vadd.f32 %v2958, %v3000
    %v3002 = vpop.f32.mrf.mxu0
    %v3003 = vadd.f32 %v2960, %v3002
    %v3004 = vpop.f32.mrf.mxu0
    %v3005 = vadd.f32 %v2962, %v3004
    %v3006 = vpop.f32.mrf.mxu0
    %v3007 = vadd.f32 %v2964, %v3006
    %3008 = vdwg.mxu0
    %3009 = vmatprep.subr.bf16.mxu0 %v1768
    %3010 = vmatpush1.bf16.msra.mxu0 %v1767
    %3011 = vmatprep.subr.bf16.mxu0 %v1760
    %3012 = vmatpush1.bf16.msra.mxu0 %v1759
    %3013 = vmatprep.subr.bf16.mxu0 %v1752
    %3014 = vmatpush1.bf16.msra.mxu0 %v1751
    %3015 = vmatprep.subr.bf16.mxu0 %v1744
    %3016 = vmatpush1.bf16.msra.mxu0 %v1743
    %3017 = vmatprep.subr.bf16.mxu0 %v1736
    %3018 = vmatpush1.bf16.msra.mxu0 %v1735
    %3019 = vmatprep.subr.bf16.mxu0 %v1728
    %3020 = vmatpush1.bf16.msra.mxu0 %v1727
    %3021 = vmatprep.subr.bf16.mxu0 %v1720
    %3022 = vmatpush1.bf16.msra.mxu0 %v1719
    %3023 = vmatprep.subr.bf16.mxu0 %v1712
    %3024 = vmatpush1.bf16.msra.mxu0 %v1711
    %3025 = vmatprep.subr.bf16.mxu0 %v1832
    %3026 = vmatpush2.bf16.msra.mxu0 %v1831
    %3027 = vmatprep.subr.bf16.mxu0 %v1824
    %3028 = vmatpush2.bf16.msra.mxu0 %v1823
    %3029 = vmatprep.subr.bf16.mxu0 %v1816
    %3030 = vmatpush2.bf16.msra.mxu0 %v1815
    %3031 = vmatprep.subr.bf16.mxu0 %v1808
    %3032 = vmatpush2.bf16.msra.mxu0 %v1807
    %3033 = vmatprep.subr.bf16.mxu0 %v1800
    %3034 = vmatpush2.bf16.msra.mxu0 %v1799
    %3035 = vmatprep.subr.bf16.mxu0 %v1792
    %3036 = vmatpush2.bf16.msra.mxu0 %v1791
    %3037 = vmatprep.subr.bf16.mxu0 %v1784
    %3038 = vmatpush2.bf16.msra.mxu0 %v1783
    %3039 = vmatprep.subr.bf16.mxu0 %v1776
    %3040 = vmatpush2.bf16.msra.mxu0 %v1775
    %3041 = vmatprep.mubr.bf16.mxu0 %v89
    %3042 = vmatmul.mubr.bf16.gmra.mxu0 %v88
    %v3043 = vpop.f32.mrf.mxu0
    %v3044 = vadd.f32 %v516, %v3043
    %v3045 = vpop.f32.mrf.mxu0
    %v3046 = vadd.f32 %v520, %v3045
    %v3047 = vpop.f32.mrf.mxu0
    %v3048 = vadd.f32 %v516, %v3047
    %v3049 = vpop.f32.mrf.mxu0
    %v3050 = vadd.f32 %v520, %v3049
    %3051 = vdwg.mxu0
    %3052 = vmatprep.subr.bf16.mxu0 %v1896
    %3053 = vmatpush1.bf16.msra.mxu0 %v1895
    %3054 = vmatprep.subr.bf16.mxu0 %v1888
    %3055 = vmatpush1.bf16.msra.mxu0 %v1887
    %3056 = vmatprep.subr.bf16.mxu0 %v1880
    %3057 = vmatpush1.bf16.msra.mxu0 %v1879
    %3058 = vmatprep.subr.bf16.mxu0 %v1872
    %3059 = vmatpush1.bf16.msra.mxu0 %v1871
    %3060 = vmatprep.subr.bf16.mxu0 %v1864
    %3061 = vmatpush1.bf16.msra.mxu0 %v1863
    %3062 = vmatprep.subr.bf16.mxu0 %v1856
    %3063 = vmatpush1.bf16.msra.mxu0 %v1855
    %3064 = vmatprep.subr.bf16.mxu0 %v1848
    %3065 = vmatpush1.bf16.msra.mxu0 %v1847
    %3066 = vmatprep.subr.bf16.mxu0 %v1840
    %3067 = vmatpush1.bf16.msra.mxu0 %v1839
    %3068 = vmatprep.subr.bf16.mxu0 %v1960
    %3069 = vmatpush2.bf16.msra.mxu0 %v1959
    %3070 = vmatprep.subr.bf16.mxu0 %v1952
    %3071 = vmatpush2.bf16.msra.mxu0 %v1951
    %3072 = vmatprep.subr.bf16.mxu0 %v1944
    %3073 = vmatpush2.bf16.msra.mxu0 %v1943
    %3074 = vmatprep.subr.bf16.mxu0 %v1936
    %3075 = vmatpush2.bf16.msra.mxu0 %v1935
    %3076 = vmatprep.subr.bf16.mxu0 %v1928
    %3077 = vmatpush2.bf16.msra.mxu0 %v1927
    %3078 = vmatprep.subr.bf16.mxu0 %v1920
    %3079 = vmatpush2.bf16.msra.mxu0 %v1919
    %3080 = vmatprep.subr.bf16.mxu0 %v1912
    %3081 = vmatpush2.bf16.msra.mxu0 %v1911
    %3082 = vmatprep.subr.bf16.mxu0 %v1904
    %3083 = vmatpush2.bf16.msra.mxu0 %v1903
    %3084 = vmatprep.mubr.bf16.mxu0 %v91
    %3085 = vmatmul.mubr.bf16.gmra.mxu0 %v90
    %v3086 = vpop.f32.mrf.mxu0
    %v3087 = vadd.f32 %v3044, %v3086
    %v3088 = vpop.f32.mrf.mxu0
    %v3089 = vadd.f32 %v3046, %v3088
    %v3090 = vpop.f32.mrf.mxu0
    %v3091 = vadd.f32 %v3048, %v3090
    %v3092 = vpop.f32.mrf.mxu0
    %v3093 = vadd.f32 %v3050, %v3092
    %3094 = vdwg.mxu0
    %3095 = vmatprep.subr.bf16.mxu0 %v2024
    %3096 = vmatpush1.bf16.msra.mxu0 %v2023
    %3097 = vmatprep.subr.bf16.mxu0 %v2016
    %3098 = vmatpush1.bf16.msra.mxu0 %v2015
    %3099 = vmatprep.subr.bf16.mxu0 %v2008
    %3100 = vmatpush1.bf16.msra.mxu0 %v2007
    %3101 = vmatprep.subr.bf16.mxu0 %v2000
    %3102 = vmatpush1.bf16.msra.mxu0 %v1999
    %3103 = vmatprep.subr.bf16.mxu0 %v1992
    %3104 = vmatpush1.bf16.msra.mxu0 %v1991
    %3105 = vmatprep.subr.bf16.mxu0 %v1984
    %3106 = vmatpush1.bf16.msra.mxu0 %v1983
    %3107 = vmatprep.subr.bf16.mxu0 %v1976
    %3108 = vmatpush1.bf16.msra.mxu0 %v1975
    %3109 = vmatprep.subr.bf16.mxu0 %v1968
    %3110 = vmatpush1.bf16.msra.mxu0 %v1967
    %3111 = vmatprep.subr.bf16.mxu0 %v2088
    %3112 = vmatpush2.bf16.msra.mxu0 %v2087
    %3113 = vmatprep.subr.bf16.mxu0 %v2080
    %3114 = vmatpush2.bf16.msra.mxu0 %v2079
    %3115 = vmatprep.subr.bf16.mxu0 %v2072
    %3116 = vmatpush2.bf16.msra.mxu0 %v2071
    %3117 = vmatprep.subr.bf16.mxu0 %v2064
    %3118 = vmatpush2.bf16.msra.mxu0 %v2063
    %3119 = vmatprep.subr.bf16.mxu0 %v2056
    %3120 = vmatpush2.bf16.msra.mxu0 %v2055
    %3121 = vmatprep.subr.bf16.mxu0 %v2048
    %3122 = vmatpush2.bf16.msra.mxu0 %v2047
    %3123 = vmatprep.subr.bf16.mxu0 %v2040
    %3124 = vmatpush2.bf16.msra.mxu0 %v2039
    %3125 = vmatprep.subr.bf16.mxu0 %v2032
    %3126 = vmatpush2.bf16.msra.mxu0 %v2031
    %3127 = vmatprep.mubr.bf16.mxu0 %v93
    %3128 = vmatmul.mubr.bf16.gmra.mxu0 %v92
    %v3129 = vpop.f32.mrf.mxu0
    %v3130 = vadd.f32 %v3087, %v3129
    %v3131 = vpop.f32.mrf.mxu0
    %v3132 = vadd.f32 %v3089, %v3131
    %v3133 = vpop.f32.mrf.mxu0
    %v3134 = vadd.f32 %v3091, %v3133
    %v3135 = vpop.f32.mrf.mxu0
    %v3136 = vadd.f32 %v3093, %v3135
    %3137 = vdwg.mxu0
    %3138 = vmatprep.subr.bf16.mxu0 0
    %3139 = vmatpush1.bf16.msra.mxu0 0
    %3140 = vmatprep.subr.bf16.mxu0 0
    %3141 = vmatpush1.bf16.msra.mxu0 0
    %3142 = vmatprep.subr.bf16.mxu0 0
    %3143 = vmatpush1.bf16.msra.mxu0 0
    %3144 = vmatprep.subr.bf16.mxu0 0
    %3145 = vmatpush1.bf16.msra.mxu0 0
    %3146 = vmatprep.subr.bf16.mxu0 0
    %3147 = vmatpush1.bf16.msra.mxu0 0
    %3148 = vmatprep.subr.bf16.mxu0 0
    %3149 = vmatpush1.bf16.msra.mxu0 0
    %3150 = vmatprep.subr.bf16.mxu0 0
    %3151 = vmatpush1.bf16.msra.mxu0 0
    %3152 = vmatprep.subr.bf16.mxu0 %v2096
    %3153 = vmatpush1.bf16.msra.mxu0 %v2095
    %3154 = vmatprep.subr.bf16.mxu0 0
    %3155 = vmatpush2.bf16.msra.mxu0 0
    %3156 = vmatprep.subr.bf16.mxu0 0
    %3157 = vmatpush2.bf16.msra.mxu0 0
    %3158 = vmatprep.subr.bf16.mxu0 0
    %3159 = vmatpush2.bf16.msra.mxu0 0
    %3160 = vmatprep.subr.bf16.mxu0 0
    %3161 = vmatpush2.bf16.msra.mxu0 0
    %3162 = vmatprep.subr.bf16.mxu0 0
    %3163 = vmatpush2.bf16.msra.mxu0 0
    %3164 = vmatprep.subr.bf16.mxu0 0
    %3165 = vmatpush2.bf16.msra.mxu0 0
    %3166 = vmatprep.subr.bf16.mxu0 0
    %3167 = vmatpush2.bf16.msra.mxu0 0
    %3168 = vmatprep.subr.bf16.mxu0 0
    %3169 = vmatpush2.bf16.msra.mxu0 0
    %3170 = vmatprep.mubr.bf16.mxu0 0
    %3171 = vmatmul.mubr.bf16.gmra.mxu0 %v2491
    %v3172 = vpop.f32.mrf.mxu0
    %v3173 = vadd.f32 %v3130, %v3172
    %v3174 = vpop.f32.mrf.mxu0
    %v3175 = vadd.f32 %v3132, %v3174
    %v3176 = vpop.f32.mrf.mxu0
    %v3177 = vadd.f32 %v3134, %v3176
    %v3178 = vpop.f32.mrf.mxu0
    %v3179 = vadd.f32 %v3136, %v3178
    %3180 = vdwg.mxu0
    %v3181 = vpack.c.bf16 %v2661, %v2657
    %v3182 = vpack.c.bf16 %v2663, %v2659
    %v3183 = vpack.c.bf16 %v2833, %v2829
    %v3184 = vpack.c.bf16 %v2835, %v2831
    %v3185 = vpack.c.bf16 %v3005, %v3001
    %v3186 = vpack.c.bf16 %v3007, %v3003
    %v3187 = vpack.c.bf16 %v3177, %v3173
    %v3188 = vpack.c.bf16 %v3179, %v3175
    %v3189 = vmul.bf16 %v3181, 1056980736
    %v3190 = vmul.bf16 %v3182, 1056980736
    %v3191 = vmul.bf16 %v3183, 1056980736
    %v3192 = vmul.bf16 %v3184, 1056980736
    %v3193 = vmul.bf16 %v3185, 1056980736
    %v3194 = vmul.bf16 %v3186, 1056980736
    %v3195 = vmul.bf16 %v3187, 1056980736
    %v3196 = vmul.bf16 %v3188, 1056980736
    %v3197 = vtanh.bf16.pop %v3189
    %v3198 = vtanh.bf16.pop %v3190
    %v3199 = vtanh.bf16.pop %v3191
    %v3200 = vtanh.bf16.pop %v3192
    %v3201 = vtanh.bf16.pop %v3193
    %v3202 = vtanh.bf16.pop %v3194
    %v3203 = vtanh.bf16.pop %v3195
    %v3204 = vtanh.bf16.pop %v3196
    %v3205 = vadd.bf16 %v3197, 1065369472
    %v3206 = vadd.bf16 %v3198, 1065369472
    %v3207 = vadd.bf16 %v3199, 1065369472
    %v3208 = vadd.bf16 %v3200, 1065369472
    %v3209 = vadd.bf16 %v3201, 1065369472
    %v3210 = vadd.bf16 %v3202, 1065369472
    %v3211 = vadd.bf16 %v3203, 1065369472
    %v3212 = vadd.bf16 %v3204, 1065369472
    %v3213 = vmul.bf16 %v3205, 1056980736
    %v3214 = vmul.bf16 %v3206, 1056980736
    %v3215 = vmul.bf16 %v3207, 1056980736
    %v3216 = vmul.bf16 %v3208, 1056980736
    %v3217 = vmul.bf16 %v3209, 1056980736
    %v3218 = vmul.bf16 %v3210, 1056980736
    %v3219 = vmul.bf16 %v3211, 1056980736
    %v3220 = vmul.bf16 %v3212, 1056980736
    %v3221 = vld [vmem:[#allocation6] sm:$0xf]
    %v3222 = vld [vmem:[#allocation6 + $0x4] sm:$0xf]
    %v3223 = vld [vmem:[#allocation6 + $0x8] sm:$0xf]
    %v3224 = vld [vmem:[#allocation6 + $0xc] sm:$0xf]
    %v3225 = vld [vmem:[#allocation6 + $0x10] sm:$0xf]
    %v3226 = vld [vmem:[#allocation6 + $0x14] sm:$0xf]
    %v3227 = vld [vmem:[#allocation6 + $0x18] sm:$0xf]
    %v3228 = vld [vmem:[#allocation6 + $0x1c] sm:$0xf]
    %v3229 = vld [vmem:[#allocation6 + $0x20] sm:$0xf]
    %v3230 = vld [vmem:[#allocation6 + $0x24] sm:$0xf]
    %v3231 = vld [vmem:[#allocation6 + $0x28] sm:$0xf]
    %v3232 = vld [vmem:[#allocation6 + $0x2c] sm:$0xf]
    %v3233 = vld [vmem:[#allocation6 + $0x30] sm:$0xf]
    %v3234 = vld [vmem:[#allocation6 + $0x34] sm:$0xf]
    %v3235 = vld [vmem:[#allocation6 + $0x38] sm:$0xf]
    %v3236 = vld [vmem:[#allocation6 + $0x3c] sm:$0xf]
    %v3237 = vld [vmem:[#allocation6 + $0x40] sm:$0xf]
    %v3238 = vld [vmem:[#allocation6 + $0x44] sm:$0xf]
    %v3239 = vld [vmem:[#allocation6 + $0x48] sm:$0xf]
    %v3240 = vld [vmem:[#allocation6 + $0x4c] sm:$0xf]
    %v3241 = vld [vmem:[#allocation6 + $0x50] sm:$0xf]
    %v3242 = vld [vmem:[#allocation6 + $0x54] sm:$0xf]
    %v3243 = vld [vmem:[#allocation6 + $0x58] sm:$0xf]
    %v3244 = vld [vmem:[#allocation6 + $0x5c] sm:$0xf]
    %v3245 = vld [vmem:[#allocation6 + $0x60] sm:$0xf]
    %v3246 = vld [vmem:[#allocation6 + $0x64] sm:$0xf]
    %v3247 = vld [vmem:[#allocation6 + $0x68] sm:$0xf]
    %v3248 = vld [vmem:[#allocation6 + $0x6c] sm:$0xf]
    %v3249 = vld [vmem:[#allocation6 + $0x70] sm:$0xf]
    %v3250 = vld [vmem:[#allocation6 + $0x74] sm:$0xf]
    %v3251 = vld [vmem:[#allocation6 + $0x78] sm:$0xf]
    %v3252 = vld [vmem:[#allocation6 + $0x7c] sm:$0xf]
    %v3253 = vld [vmem:[#allocation6 + $0x80] sm:$0xf]
    %v3254 = vld [vmem:[#allocation6 + $0x84] sm:$0xf]
    %v3255 = vld [vmem:[#allocation6 + $0x88] sm:$0xf]
    %v3256 = vld [vmem:[#allocation6 + $0x8c] sm:$0xf]
    %v3257 = vld [vmem:[#allocation6 + $0x90] sm:$0xf]
    %v3258 = vld [vmem:[#allocation6 + $0x94] sm:$0xf]
    %v3259 = vld [vmem:[#allocation6 + $0x98] sm:$0xf]
    %v3260 = vld [vmem:[#allocation6 + $0x9c] sm:$0xf]
    %v3261 = vld [vmem:[#allocation6 + $0xa0] sm:$0xf]
    %v3262 = vld [vmem:[#allocation6 + $0xa4] sm:$0xf]
    %v3263 = vld [vmem:[#allocation6 + $0xa8] sm:$0xf]
    %v3264 = vld [vmem:[#allocation6 + $0xac] sm:$0xf]
    %v3265 = vld [vmem:[#allocation6 + $0xb0] sm:$0xf]
    %v3266 = vld [vmem:[#allocation6 + $0xb4] sm:$0xf]
    %v3267 = vld [vmem:[#allocation6 + $0xb8] sm:$0xf]
    %v3268 = vld [vmem:[#allocation6 + $0xbc] sm:$0xf]
    %v3269 = vld [vmem:[#allocation6 + $0xc0] sm:$0xf]
    %v3270 = vld [vmem:[#allocation6 + $0xc4] sm:$0xf]
    %v3271 = vld [vmem:[#allocation6 + $0xc8] sm:$0xf]
    %v3272 = vld [vmem:[#allocation6 + $0xcc] sm:$0xf]
    %v3273 = vld [vmem:[#allocation6 + $0xd0] sm:$0xf]
    %v3274 = vld [vmem:[#allocation6 + $0xd4] sm:$0xf]
    %v3275 = vld [vmem:[#allocation6 + $0xd8] sm:$0xf]
    %v3276 = vld [vmem:[#allocation6 + $0xdc] sm:$0xf]
    %v3277 = vld [vmem:[#allocation6 + $0xe0] sm:$0xf]
    %v3278 = vld [vmem:[#allocation6 + $0xe4] sm:$0xf]
    %v3279 = vld [vmem:[#allocation6 + $0xe8] sm:$0xf]
    %v3280 = vld [vmem:[#allocation6 + $0xec] sm:$0xf]
    %v3281 = vld [vmem:[#allocation6 + $0xf0] sm:$0xf]
    %v3282 = vld [vmem:[#allocation6 + $0xf4] sm:$0xf]
    %v3283 = vld [vmem:[#allocation6 + $0xf8] sm:$0xf]
    %v3284 = vld [vmem:[#allocation6 + $0xfc] sm:$0xf]
    %v3285 = vld [vmem:[#allocation6 + $0x100] sm:$0xf]
    %v3286 = vld [vmem:[#allocation6 + $0x104] sm:$0xf]
    %v3287 = vld [vmem:[#allocation6 + $0x108] sm:$0xf]
    %v3288 = vld [vmem:[#allocation6 + $0x10c] sm:$0xf]
    %v3289 = vld [vmem:[#allocation6 + $0x110] sm:$0xf]
    %v3290 = vld [vmem:[#allocation6 + $0x114] sm:$0xf]
    %v3291 = vld [vmem:[#allocation6 + $0x118] sm:$0xf]
    %v3292 = vld [vmem:[#allocation6 + $0x11c] sm:$0xf]
    %v3293 = vld [vmem:[#allocation6 + $0x120] sm:$0xf]
    %v3294 = vld [vmem:[#allocation6 + $0x124] sm:$0xf]
    %v3295 = vld [vmem:[#allocation6 + $0x128] sm:$0xf]
    %v3296 = vld [vmem:[#allocation6 + $0x12c] sm:$0xf]
    %v3297 = vld [vmem:[#allocation6 + $0x130] sm:$0xf]
    %v3298 = vld [vmem:[#allocation6 + $0x134] sm:$0xf]
    %v3299 = vld [vmem:[#allocation6 + $0x138] sm:$0xf]
    %v3300 = vld [vmem:[#allocation6 + $0x13c] sm:$0xf]
    %v3301 = vld [vmem:[#allocation6 + $0x140] sm:$0xf]
    %v3302 = vld [vmem:[#allocation6 + $0x144] sm:$0xf]
    %v3303 = vld [vmem:[#allocation6 + $0x148] sm:$0xf]
    %v3304 = vld [vmem:[#allocation6 + $0x14c] sm:$0xf]
    %v3305 = vld [vmem:[#allocation6 + $0x150] sm:$0xf]
    %v3306 = vld [vmem:[#allocation6 + $0x154] sm:$0xf]
    %v3307 = vld [vmem:[#allocation6 + $0x158] sm:$0xf]
    %v3308 = vld [vmem:[#allocation6 + $0x15c] sm:$0xf]
    %v3309 = vld [vmem:[#allocation6 + $0x160] sm:$0xf]
    %v3310 = vld [vmem:[#allocation6 + $0x164] sm:$0xf]
    %v3311 = vld [vmem:[#allocation6 + $0x168] sm:$0xf]
    %v3312 = vld [vmem:[#allocation6 + $0x16c] sm:$0xf]
    %v3313 = vld [vmem:[#allocation6 + $0x170] sm:$0xf]
    %v3314 = vld [vmem:[#allocation6 + $0x174] sm:$0xf]
    %v3315 = vld [vmem:[#allocation6 + $0x178] sm:$0xf]
    %v3316 = vld [vmem:[#allocation6 + $0x17c] sm:$0xf]
    %v3317 = vld [vmem:[#allocation6 + $0x180] sm:$0xf]
    %v3318 = vld [vmem:[#allocation6 + $0x184] sm:$0xf]
    %v3319 = vld [vmem:[#allocation6 + $0x188] sm:$0xf]
    %v3320 = vld [vmem:[#allocation6 + $0x18c] sm:$0xf]
    %v3321 = vld [vmem:[#allocation6 + $0x190] sm:$0xf]
    %v3322 = vld [vmem:[#allocation6 + $0x194] sm:$0xf]
    %v3323 = vld [vmem:[#allocation6 + $0x198] sm:$0xf]
    %v3324 = vld [vmem:[#allocation6 + $0x19c] sm:$0xf]
    %v3325 = vld [vmem:[#allocation6 + $0x1a0] sm:$0xf]
    %v3326 = vld [vmem:[#allocation6 + $0x1a4] sm:$0xf]
    %v3327 = vld [vmem:[#allocation6 + $0x1a8] sm:$0xf]
    %v3328 = vld [vmem:[#allocation6 + $0x1ac] sm:$0xf]
    %v3329 = vld [vmem:[#allocation6 + $0x1b0] sm:$0xf]
    %v3330 = vld [vmem:[#allocation6 + $0x1b4] sm:$0xf]
    %v3331 = vld [vmem:[#allocation6 + $0x1b8] sm:$0xf]
    %v3332 = vld [vmem:[#allocation6 + $0x1bc] sm:$0xf]
    %v3333 = vld [vmem:[#allocation6 + $0x1c0] sm:$0xf]
    %v3334 = vld [vmem:[#allocation6 + $0x1c4] sm:$0xf]
    %v3335 = vld [vmem:[#allocation6 + $0x1c8] sm:$0xf]
    %v3336 = vld [vmem:[#allocation6 + $0x1cc] sm:$0xf]
    %v3337 = vld [vmem:[#allocation6 + $0x1d0] sm:$0xf]
    %v3338 = vld [vmem:[#allocation6 + $0x1d4] sm:$0xf]
    %v3339 = vld [vmem:[#allocation6 + $0x1d8] sm:$0xf]
    %v3340 = vld [vmem:[#allocation6 + $0x1dc] sm:$0xf]
    %v3341 = vld [vmem:[#allocation6 + $0x1e0] sm:$0xf]
    %v3342 = vld [vmem:[#allocation6 + $0x1e4] sm:$0xf]
    %v3343 = vld [vmem:[#allocation6 + $0x1e8] sm:$0xf]
    %v3344 = vld [vmem:[#allocation6 + $0x1ec] sm:$0xf]
    %v3345 = vld [vmem:[#allocation6 + $0x1f0] sm:$0xf]
    %v3346 = vld [vmem:[#allocation6 + $0x1f4] sm:$0xf]
    %v3347 = vld [vmem:[#allocation6 + $0x1f8] sm:$0xf]
    %v3348 = vld [vmem:[#allocation6 + $0x1fc] sm:$0xf]
    %v3349 = vld [vmem:[#allocation7] sm:$0x1]
    %v3351 = vlaneseq
    %v3352 = vshrl.u32 %v3351, 7
    %v3353 = vsub.s32 0, %v3352
    %v3354 = vrot.slane %v3349, %v3353
    %v3484 = vunpack.c.l.b16 %v3221
    %v3485 = vunpack.c.l.b16 %v3222
    %v3486 = vunpack.c.l.b16 %v3223
    %v3487 = vunpack.c.l.b16 %v3224
    %v3488 = vunpack.c.l.b16 %v3225
    %v3489 = vunpack.c.l.b16 %v3226
    %v3490 = vunpack.c.l.b16 %v3227
    %v3491 = vunpack.c.l.b16 %v3228
    %v3492 = vunpack.c.l.b16 %v3229
    %v3493 = vunpack.c.l.b16 %v3230
    %v3494 = vunpack.c.l.b16 %v3231
    %v3495 = vunpack.c.l.b16 %v3232
    %v3496 = vunpack.c.l.b16 %v3233
    %v3497 = vunpack.c.l.b16 %v3234
    %v3498 = vunpack.c.l.b16 %v3235
    %v3499 = vunpack.c.l.b16 %v3236
    %v3500 = vunpack.c.l.b16 %v3237
    %v3501 = vunpack.c.l.b16 %v3238
    %v3502 = vunpack.c.l.b16 %v3239
    %v3503 = vunpack.c.l.b16 %v3240
    %v3504 = vunpack.c.l.b16 %v3241
    %v3505 = vunpack.c.l.b16 %v3242
    %v3506 = vunpack.c.l.b16 %v3243
    %v3507 = vunpack.c.l.b16 %v3244
    %v3508 = vunpack.c.l.b16 %v3245
    %v3509 = vunpack.c.l.b16 %v3246
    %v3510 = vunpack.c.l.b16 %v3247
    %v3511 = vunpack.c.l.b16 %v3248
    %v3512 = vunpack.c.l.b16 %v3249
    %v3513 = vunpack.c.l.b16 %v3250
    %v3514 = vunpack.c.l.b16 %v3251
    %v3515 = vunpack.c.l.b16 %v3252
    %v3516 = vunpack.c.l.b16 %v3253
    %v3517 = vunpack.c.l.b16 %v3254
    %v3518 = vunpack.c.l.b16 %v3255
    %v3519 = vunpack.c.l.b16 %v3256
    %v3520 = vunpack.c.l.b16 %v3257
    %v3521 = vunpack.c.l.b16 %v3258
    %v3522 = vunpack.c.l.b16 %v3259
    %v3523 = vunpack.c.l.b16 %v3260
    %v3524 = vunpack.c.l.b16 %v3261
    %v3525 = vunpack.c.l.b16 %v3262
    %v3526 = vunpack.c.l.b16 %v3263
    %v3527 = vunpack.c.l.b16 %v3264
    %v3528 = vunpack.c.l.b16 %v3265
    %v3529 = vunpack.c.l.b16 %v3266
    %v3530 = vunpack.c.l.b16 %v3267
    %v3531 = vunpack.c.l.b16 %v3268
    %v3532 = vunpack.c.l.b16 %v3269
    %v3533 = vunpack.c.l.b16 %v3270
    %v3534 = vunpack.c.l.b16 %v3271
    %v3535 = vunpack.c.l.b16 %v3272
    %v3536 = vunpack.c.l.b16 %v3273
    %v3537 = vunpack.c.l.b16 %v3274
    %v3538 = vunpack.c.l.b16 %v3275
    %v3539 = vunpack.c.l.b16 %v3276
    %v3540 = vunpack.c.l.b16 %v3277
    %v3541 = vunpack.c.l.b16 %v3278
    %v3542 = vunpack.c.l.b16 %v3279
    %v3543 = vunpack.c.l.b16 %v3280
    %v3544 = vunpack.c.l.b16 %v3281
    %v3545 = vunpack.c.l.b16 %v3282
    %v3546 = vunpack.c.l.b16 %v3283
    %v3547 = vunpack.c.l.b16 %v3284
    %v3548 = vunpack.c.l.b16 %v3285
    %v3549 = vunpack.c.l.b16 %v3286
    %v3550 = vunpack.c.l.b16 %v3287
    %v3551 = vunpack.c.l.b16 %v3288
    %v3552 = vunpack.c.l.b16 %v3289
    %v3553 = vunpack.c.l.b16 %v3290
    %v3554 = vunpack.c.l.b16 %v3291
    %v3555 = vunpack.c.l.b16 %v3292
    %v3556 = vunpack.c.l.b16 %v3293
    %v3557 = vunpack.c.l.b16 %v3294
    %v3558 = vunpack.c.l.b16 %v3295
    %v3559 = vunpack.c.l.b16 %v3296
    %v3560 = vunpack.c.l.b16 %v3297
    %v3561 = vunpack.c.l.b16 %v3298
    %v3562 = vunpack.c.l.b16 %v3299
    %v3563 = vunpack.c.l.b16 %v3300
    %v3564 = vunpack.c.l.b16 %v3301
    %v3565 = vunpack.c.l.b16 %v3302
    %v3566 = vunpack.c.l.b16 %v3303
    %v3567 = vunpack.c.l.b16 %v3304
    %v3568 = vunpack.c.l.b16 %v3305
    %v3569 = vunpack.c.l.b16 %v3306
    %v3570 = vunpack.c.l.b16 %v3307
    %v3571 = vunpack.c.l.b16 %v3308
    %v3572 = vunpack.c.l.b16 %v3309
    %v3573 = vunpack.c.l.b16 %v3310
    %v3574 = vunpack.c.l.b16 %v3311
    %v3575 = vunpack.c.l.b16 %v3312
    %v3576 = vunpack.c.l.b16 %v3313
    %v3577 = vunpack.c.l.b16 %v3314
    %v3578 = vunpack.c.l.b16 %v3315
    %v3579 = vunpack.c.l.b16 %v3316
    %v3580 = vunpack.c.l.b16 %v3317
    %v3581 = vunpack.c.l.b16 %v3318
    %v3582 = vunpack.c.l.b16 %v3319
    %v3583 = vunpack.c.l.b16 %v3320
    %v3584 = vunpack.c.l.b16 %v3321
    %v3585 = vunpack.c.l.b16 %v3322
    %v3586 = vunpack.c.l.b16 %v3323
    %v3587 = vunpack.c.l.b16 %v3324
    %v3588 = vunpack.c.l.b16 %v3325
    %v3589 = vunpack.c.l.b16 %v3326
    %v3590 = vunpack.c.l.b16 %v3327
    %v3591 = vunpack.c.l.b16 %v3328
    %v3592 = vunpack.c.l.b16 %v3329
    %v3593 = vunpack.c.l.b16 %v3330
    %v3594 = vunpack.c.l.b16 %v3331
    %v3595 = vunpack.c.l.b16 %v3332
    %v3596 = vunpack.c.l.b16 %v3333
    %v3597 = vunpack.c.l.b16 %v3334
    %v3598 = vunpack.c.l.b16 %v3335
    %v3599 = vunpack.c.l.b16 %v3336
    %v3600 = vunpack.c.l.b16 %v3337
    %v3601 = vunpack.c.l.b16 %v3338
    %v3602 = vunpack.c.l.b16 %v3339
    %v3603 = vunpack.c.l.b16 %v3340
    %v3604 = vunpack.c.l.b16 %v3341
    %v3605 = vunpack.c.l.b16 %v3342
    %v3606 = vunpack.c.l.b16 %v3343
    %v3607 = vunpack.c.l.b16 %v3344
    %v3608 = vunpack.c.l.b16 %v3345
    %v3609 = vunpack.c.l.b16 %v3346
    %v3610 = vunpack.c.l.b16 %v3347
    %v3611 = vunpack.c.l.b16 %v3348
    %v3612 = vpack.c.b16 %v3485, %v3484
    %v3613 = vpack.c.b16 %v3487, %v3486
    %v3614 = vpack.c.b16 %v3489, %v3488
    %v3615 = vpack.c.b16 %v3491, %v3490
    %v3616 = vpack.c.b16 %v3493, %v3492
    %v3617 = vpack.c.b16 %v3495, %v3494
    %v3618 = vpack.c.b16 %v3497, %v3496
    %v3619 = vpack.c.b16 %v3499, %v3498
    %v3620 = vpack.c.b16 %v3501, %v3500
    %v3621 = vpack.c.b16 %v3503, %v3502
    %v3622 = vpack.c.b16 %v3505, %v3504
    %v3623 = vpack.c.b16 %v3507, %v3506
    %v3624 = vpack.c.b16 %v3509, %v3508
    %v3625 = vpack.c.b16 %v3511, %v3510
    %v3626 = vpack.c.b16 %v3513, %v3512
    %v3627 = vpack.c.b16 %v3515, %v3514
    %v3628 = vpack.c.b16 %v3517, %v3516
    %v3629 = vpack.c.b16 %v3519, %v3518
    %v3630 = vpack.c.b16 %v3521, %v3520
    %v3631 = vpack.c.b16 %v3523, %v3522
    %v3632 = vpack.c.b16 %v3525, %v3524
    %v3633 = vpack.c.b16 %v3527, %v3526
    %v3634 = vpack.c.b16 %v3529, %v3528
    %v3635 = vpack.c.b16 %v3531, %v3530
    %v3636 = vpack.c.b16 %v3533, %v3532
    %v3637 = vpack.c.b16 %v3535, %v3534
    %v3638 = vpack.c.b16 %v3537, %v3536
    %v3639 = vpack.c.b16 %v3539, %v3538
    %v3640 = vpack.c.b16 %v3541, %v3540
    %v3641 = vpack.c.b16 %v3543, %v3542
    %v3642 = vpack.c.b16 %v3545, %v3544
    %v3643 = vpack.c.b16 %v3547, %v3546
    %v3644 = vpack.c.b16 %v3549, %v3548
    %v3645 = vpack.c.b16 %v3551, %v3550
    %v3646 = vpack.c.b16 %v3553, %v3552
    %v3647 = vpack.c.b16 %v3555, %v3554
    %v3648 = vpack.c.b16 %v3557, %v3556
    %v3649 = vpack.c.b16 %v3559, %v3558
    %v3650 = vpack.c.b16 %v3561, %v3560
    %v3651 = vpack.c.b16 %v3563, %v3562
    %v3652 = vpack.c.b16 %v3565, %v3564
    %v3653 = vpack.c.b16 %v3567, %v3566
    %v3654 = vpack.c.b16 %v3569, %v3568
    %v3655 = vpack.c.b16 %v3571, %v3570
    %v3656 = vpack.c.b16 %v3573, %v3572
    %v3657 = vpack.c.b16 %v3575, %v3574
    %v3658 = vpack.c.b16 %v3577, %v3576
    %v3659 = vpack.c.b16 %v3579, %v3578
    %v3660 = vpack.c.b16 %v3581, %v3580
    %v3661 = vpack.c.b16 %v3583, %v3582
    %v3662 = vpack.c.b16 %v3585, %v3584
    %v3663 = vpack.c.b16 %v3587, %v3586
    %v3664 = vpack.c.b16 %v3589, %v3588
    %v3665 = vpack.c.b16 %v3591, %v3590
    %v3666 = vpack.c.b16 %v3593, %v3592
    %v3667 = vpack.c.b16 %v3595, %v3594
    %v3668 = vpack.c.b16 %v3597, %v3596
    %v3669 = vpack.c.b16 %v3599, %v3598
    %v3670 = vpack.c.b16 %v3601, %v3600
    %v3671 = vpack.c.b16 %v3603, %v3602
    %v3672 = vpack.c.b16 %v3605, %v3604
    %v3673 = vpack.c.b16 %v3607, %v3606
    %v3674 = vpack.c.b16 %v3609, %v3608
    %v3675 = vpack.c.b16 %v3611, %v3610
    %3740 = vmatprep.subr.bf16.mxu0 0
    %3741 = vmatpush1.bf16.msra.mxu0 %v3619
    %3742 = vmatprep.subr.bf16.mxu0 0
    %3743 = vmatpush1.bf16.msra.mxu0 %v3618
    %3744 = vmatprep.subr.bf16.mxu0 0
    %3745 = vmatpush1.bf16.msra.mxu0 %v3617
    %3746 = vmatprep.subr.bf16.mxu0 0
    %3747 = vmatpush1.bf16.msra.mxu0 %v3616
    %3748 = vmatprep.subr.bf16.mxu0 0
    %3749 = vmatpush1.bf16.msra.mxu0 %v3615
    %3750 = vmatprep.subr.bf16.mxu0 0
    %3751 = vmatpush1.bf16.msra.mxu0 %v3614
    %3752 = vmatprep.subr.bf16.mxu0 0
    %3753 = vmatpush1.bf16.msra.mxu0 %v3613
    %3754 = vmatprep.subr.bf16.mxu0 0
    %3755 = vmatpush1.bf16.msra.mxu0 %v3612
    %3756 = vmatprep.subr.bf16.mxu0 0
    %3757 = vmatpush2.bf16.msra.mxu0 %v3627
    %3758 = vmatprep.subr.bf16.mxu0 0
    %3759 = vmatpush2.bf16.msra.mxu0 %v3626
    %3760 = vmatprep.subr.bf16.mxu0 0
    %3761 = vmatpush2.bf16.msra.mxu0 %v3625
    %3762 = vmatprep.subr.bf16.mxu0 0
    %3763 = vmatpush2.bf16.msra.mxu0 %v3624
    %3764 = vmatprep.subr.bf16.mxu0 0
    %3765 = vmatpush2.bf16.msra.mxu0 %v3623
    %3766 = vmatprep.subr.bf16.mxu0 0
    %3767 = vmatpush2.bf16.msra.mxu0 %v3622
    %3768 = vmatprep.subr.bf16.mxu0 0
    %3769 = vmatpush2.bf16.msra.mxu0 %v3621
    %3770 = vmatprep.subr.bf16.mxu0 0
    %3771 = vmatpush2.bf16.msra.mxu0 %v3620
    %3772 = vmatprep.mubr.bf16.mxu0 %v3214
    %3773 = vmatmul.mubr.bf16.gmra.mxu0 %v3213
    %v3774 = vpop.f32.mrf.mxu0
    %v3775 = vadd.f32 %v3354, %v3774
    %v3776 = vpop.f32.mrf.mxu0
    %v3777 = vpop.f32.mrf.mxu0
    %v3778 = vadd.f32 %v3354, %v3777
    %v3779 = vpop.f32.mrf.mxu0
    %3780 = vdwg.mxu0
    %3781 = vmatprep.subr.bf16.mxu0 0
    %3782 = vmatpush1.bf16.msra.mxu0 %v3635
    %3783 = vmatprep.subr.bf16.mxu0 0
    %3784 = vmatpush1.bf16.msra.mxu0 %v3634
    %3785 = vmatprep.subr.bf16.mxu0 0
    %3786 = vmatpush1.bf16.msra.mxu0 %v3633
    %3787 = vmatprep.subr.bf16.mxu0 0
    %3788 = vmatpush1.bf16.msra.mxu0 %v3632
    %3789 = vmatprep.subr.bf16.mxu0 0
    %3790 = vmatpush1.bf16.msra.mxu0 %v3631
    %3791 = vmatprep.subr.bf16.mxu0 0
    %3792 = vmatpush1.bf16.msra.mxu0 %v3630
    %3793 = vmatprep.subr.bf16.mxu0 0
    %3794 = vmatpush1.bf16.msra.mxu0 %v3629
    %3795 = vmatprep.subr.bf16.mxu0 0
    %3796 = vmatpush1.bf16.msra.mxu0 %v3628
    %3797 = vmatprep.subr.bf16.mxu0 0
    %3798 = vmatpush2.bf16.msra.mxu0 %v3643
    %3799 = vmatprep.subr.bf16.mxu0 0
    %3800 = vmatpush2.bf16.msra.mxu0 %v3642
    %3801 = vmatprep.subr.bf16.mxu0 0
    %3802 = vmatpush2.bf16.msra.mxu0 %v3641
    %3803 = vmatprep.subr.bf16.mxu0 0
    %3804 = vmatpush2.bf16.msra.mxu0 %v3640
    %3805 = vmatprep.subr.bf16.mxu0 0
    %3806 = vmatpush2.bf16.msra.mxu0 %v3639
    %3807 = vmatprep.subr.bf16.mxu0 0
    %3808 = vmatpush2.bf16.msra.mxu0 %v3638
    %3809 = vmatprep.subr.bf16.mxu0 0
    %3810 = vmatpush2.bf16.msra.mxu0 %v3637
    %3811 = vmatprep.subr.bf16.mxu0 0
    %3812 = vmatpush2.bf16.msra.mxu0 %v3636
    %3813 = vmatprep.mubr.bf16.mxu0 %v3216
    %3814 = vmatmul.mubr.bf16.gmra.mxu0 %v3215
    %v3815 = vpop.f32.mrf.mxu0
    %v3816 = vadd.f32 %v3775, %v3815
    %v3817 = vpop.f32.mrf.mxu0
    %v3818 = vpop.f32.mrf.mxu0
    %v3819 = vadd.f32 %v3778, %v3818
    %v3820 = vpop.f32.mrf.mxu0
    %3821 = vdwg.mxu0
    %3822 = vmatprep.subr.bf16.mxu0 0
    %3823 = vmatpush1.bf16.msra.mxu0 %v3651
    %3824 = vmatprep.subr.bf16.mxu0 0
    %3825 = vmatpush1.bf16.msra.mxu0 %v3650
    %3826 = vmatprep.subr.bf16.mxu0 0
    %3827 = vmatpush1.bf16.msra.mxu0 %v3649
    %3828 = vmatprep.subr.bf16.mxu0 0
    %3829 = vmatpush1.bf16.msra.mxu0 %v3648
    %3830 = vmatprep.subr.bf16.mxu0 0
    %3831 = vmatpush1.bf16.msra.mxu0 %v3647
    %3832 = vmatprep.subr.bf16.mxu0 0
    %3833 = vmatpush1.bf16.msra.mxu0 %v3646
    %3834 = vmatprep.subr.bf16.mxu0 0
    %3835 = vmatpush1.bf16.msra.mxu0 %v3645
    %3836 = vmatprep.subr.bf16.mxu0 0
    %3837 = vmatpush1.bf16.msra.mxu0 %v3644
    %3838 = vmatprep.subr.bf16.mxu0 0
    %3839 = vmatpush2.bf16.msra.mxu0 %v3659
    %3840 = vmatprep.subr.bf16.mxu0 0
    %3841 = vmatpush2.bf16.msra.mxu0 %v3658
    %3842 = vmatprep.subr.bf16.mxu0 0
    %3843 = vmatpush2.bf16.msra.mxu0 %v3657
    %3844 = vmatprep.subr.bf16.mxu0 0
    %3845 = vmatpush2.bf16.msra.mxu0 %v3656
    %3846 = vmatprep.subr.bf16.mxu0 0
    %3847 = vmatpush2.bf16.msra.mxu0 %v3655
    %3848 = vmatprep.subr.bf16.mxu0 0
    %3849 = vmatpush2.bf16.msra.mxu0 %v3654
    %3850 = vmatprep.subr.bf16.mxu0 0
    %3851 = vmatpush2.bf16.msra.mxu0 %v3653
    %3852 = vmatprep.subr.bf16.mxu0 0
    %3853 = vmatpush2.bf16.msra.mxu0 %v3652
    %3854 = vmatprep.mubr.bf16.mxu0 %v3218
    %3855 = vmatmul.mubr.bf16.gmra.mxu0 %v3217
    %v3856 = vpop.f32.mrf.mxu0
    %v3857 = vadd.f32 %v3816, %v3856
    %v3858 = vpop.f32.mrf.mxu0
    %v3859 = vpop.f32.mrf.mxu0
    %v3860 = vadd.f32 %v3819, %v3859
    %v3861 = vpop.f32.mrf.mxu0
    %3862 = vdwg.mxu0
    %3863 = vmatprep.subr.bf16.mxu0 0
    %3864 = vmatpush1.bf16.msra.mxu0 %v3667
    %3865 = vmatprep.subr.bf16.mxu0 0
    %3866 = vmatpush1.bf16.msra.mxu0 %v3666
    %3867 = vmatprep.subr.bf16.mxu0 0
    %3868 = vmatpush1.bf16.msra.mxu0 %v3665
    %3869 = vmatprep.subr.bf16.mxu0 0
    %3870 = vmatpush1.bf16.msra.mxu0 %v3664
    %3871 = vmatprep.subr.bf16.mxu0 0
    %3872 = vmatpush1.bf16.msra.mxu0 %v3663
    %3873 = vmatprep.subr.bf16.mxu0 0
    %3874 = vmatpush1.bf16.msra.mxu0 %v3662
    %3875 = vmatprep.subr.bf16.mxu0 0
    %3876 = vmatpush1.bf16.msra.mxu0 %v3661
    %3877 = vmatprep.subr.bf16.mxu0 0
    %3878 = vmatpush1.bf16.msra.mxu0 %v3660
    %3879 = vmatprep.subr.bf16.mxu0 0
    %3880 = vmatpush2.bf16.msra.mxu0 %v3675
    %3881 = vmatprep.subr.bf16.mxu0 0
    %3882 = vmatpush2.bf16.msra.mxu0 %v3674
    %3883 = vmatprep.subr.bf16.mxu0 0
    %3884 = vmatpush2.bf16.msra.mxu0 %v3673
    %3885 = vmatprep.subr.bf16.mxu0 0
    %3886 = vmatpush2.bf16.msra.mxu0 %v3672
    %3887 = vmatprep.subr.bf16.mxu0 0
    %3888 = vmatpush2.bf16.msra.mxu0 %v3671
    %3889 = vmatprep.subr.bf16.mxu0 0
    %3890 = vmatpush2.bf16.msra.mxu0 %v3670
    %3891 = vmatprep.subr.bf16.mxu0 0
    %3892 = vmatpush2.bf16.msra.mxu0 %v3669
    %3893 = vmatprep.subr.bf16.mxu0 0
    %3894 = vmatpush2.bf16.msra.mxu0 %v3668
    %3895 = vmatprep.mubr.bf16.mxu0 %v3220
    %3896 = vmatmul.mubr.bf16.gmra.mxu0 %v3219
    %v3897 = vpop.f32.mrf.mxu0
    %v3898 = vadd.f32 %v3857, %v3897
    %v3899 = vpop.f32.mrf.mxu0
    %v3900 = vpop.f32.mrf.mxu0
    %v3901 = vadd.f32 %v3860, %v3900
    %v3902 = vpop.f32.mrf.mxu0
    %3903 = vdwg.mxu0
    %3904 = vmax.xlane.f32.xlu0 %v3898
    %v3905 = vpop.xlane.xlu0 %3904
    %3906 = vmax.xlane.f32.xlu0 %v3901
    %v3907 = vpop.xlane.xlu0 %3906
    %v3908 = vsub.f32 %v3898, %v3905
    %v3909 = vsub.f32 %v3901, %v3907
    %v3910 = vmul.f32 %v3908, 1.442695
    %v3911 = vpow.pop %v3910
    %v3912 = vmul.f32 %v3909, 1.442695
    %v3913 = vpow.pop %v3912
    %3914 = vadd.xlane.f32.xlu0 %v3911
    %v3915 = vpop.xlane.xlu0 %3914
    %3916 = vadd.xlane.f32.xlu0 %v3913
    %v3917 = vpop.xlane.xlu0 %3916
    %v3918 = vlog2.pop %v3915
    %v3919 = vmul.f32 %v3918, 0.6931472
    %v3920 = vlog2.pop %v3917
    %v3921 = vmul.f32 %v3920, 0.6931472
    %v3922 = vsub.f32 %v3908, %v3919
    %v3923 = vsub.f32 %v3909, %v3921
    %3924 = vst [vmem:[%s5] sm:$0xff] %v3922
    %3925 = vst [vmem:[%s5 + $0x8] sm:$0xff] %v3923
    // Predicated region
    $region38: #{dlnetwork_forward.1} parent=1 // pred_check
      _
    $region39: #{dlnetwork_forward.1} parent=1 // pred_check_branch
      %3927 = sbr.rel (0) target = $region41
    $region40: #{dlnetwork_forward.1} parent=1 // pred_region
      _
    $region41: #{dlnetwork_forward.1} parent=1 // pred_fallthru
      _
    // Predicated region
    $region42: #{dlnetwork_forward.1} parent=1 // pred_check
      _
    $region43: #{dlnetwork_forward.1} parent=1 // pred_check_branch
      %3929 = sbr.rel (0) target = $region45
    $region44: #{dlnetwork_forward.1} parent=1 // pred_region
      _
    $region45: #{dlnetwork_forward.1} parent=1 // pred_fallthru
      _
    %3930 = vsyncpa [#allocation3], 1
    %3931 = vsyncpa [#allocation5], 1
    %3932 = vsyncpa [#allocation8], 1

</llo_original>
